<compile_context>
chip_gen: v7x
topology: tpu7x:2x2x1
jax: 0.10.0
libtpu: 0.0.40
codegen_flags: <defaults>
</compile_context>

<pallas_src>
import functools
import math

import jax
import jax.numpy as jnp
from jax.experimental import pallas as pl
from jax.experimental.pallas import tpu as pltpu


def _film_mlp_kernel(pts_ref, w0_ref, b0_ref, wr_ref, br_ref, fr_ref, ph_ref,
                     o_ref, *, in_channels, num_rest_layers):
    """Fused FiLM-layer stack for one (batch, point-tile).

    pts_ref: (1, TM, Cin)       w0_ref: (Cin, C)   b0_ref: (1, C)
    wr_ref:  (Lr, C, C)         br_ref: (Lr, C)
    fr_ref / ph_ref: (1, L, C)  o_ref:  (1, TM, C)
    """
    x = pts_ref[0].astype(jnp.float32)                     # (TM, Cin)

    w0 = w0_ref[...].astype(jnp.float32)                   # (Cin, C)  (warp folded)
    fr = fr_ref[0]                                         # (L, C)
    ph = ph_ref[0]                                         # (L, C)

    # ---- First FiLM layer: contraction dim is tiny (Cin=3) -> VPU broadcasts.
    h = b0_ref[...].astype(jnp.float32)                    # (1, C) -> broadcasts
    for c in range(in_channels):
        h = h + x[:, c:c + 1] * w0[c:c + 1, :]             # (TM,1)*(1,C)->(TM,C)
    h = jnp.sin(fr[0:1, :] * h + ph[0:1, :])               # (TM, C)

    # ---- Remaining FiLM layers: MXU matmuls, hidden state stays resident.
    br = br_ref[...].astype(jnp.float32)                   # (Lr, C)
    for l in range(num_rest_layers):
        hl = jnp.dot(h, wr_ref[l].astype(jnp.float32),
                     preferred_element_type=jnp.float32) + br[l:l + 1, :]
        h = jnp.sin(fr[l + 1:l + 2, :] * hl + ph[l + 1:l + 2, :])

    o_ref[0] = h.astype(o_ref.dtype)


def mlp_network_forward(pts, wp, layer_weights, layer_biases,
                        style_weights, style_biases,
                        *, grid_scale=0.24, tile_m=512):
    """Pallas TPU forward of pi-GAN MLPNetwork.

    pts: (N, M, 3) | (N, R, K, 3) | (N, H, W, K, 3)
    wp:  (N, num_layers, w_dim)
    layer_weights[i]: (C_out, C_in_i), layer_biases[i]: (C_out,)
    style_weights[i]: (2*C_out, w_dim), style_biases[i]: (2*C_out,)
    Returns (N, M, C_out), same dtype as pts.
    """
    num_dims = pts.ndim
    assert num_dims in (3, 4, 5)
    N = pts.shape[0]
    c_in = pts.shape[-1]
    pts2 = pts.reshape(N, -1, c_in)
    M = pts2.shape[1]

    num_layers = len(layer_weights)
    c_out = layer_weights[0].shape[0]
    assert layer_weights[0].shape[1] == c_in

    # --- per-batch FiLM conditioning (tiny matmul, left to XLA in f32) -------
    freqs, phases = [], []
    for idx in range(num_layers):
        style = jnp.matmul(wp[:, idx].astype(jnp.float32),
                           style_weights[idx].T.astype(jnp.float32),
                           precision=jax.lax.Precision.HIGHEST)
        style = style + style_biases[idx].astype(jnp.float32)
        freqs.append(style[:, :c_out] * 15.0 + 30.0)
        phases.append(style[:, c_out:])
    freqs = jnp.stack(freqs, axis=1)                       # (N, L, C)
    phases = jnp.stack(phases, axis=1)                     # (N, L, C)

    # --- pack layer parameters ------------------------------------------------
    # UniformBoxWarp folded into the first-layer weight: (x*s)@W0^T == x@(s*W0^T)
    scale = 2.0 / grid_scale
    w0t = (layer_weights[0].T.astype(jnp.float32)) * jnp.float32(scale)  # (Cin, C)
    b0 = layer_biases[0].reshape(1, c_out).astype(jnp.float32)
    if num_layers >= 2:
        wrt = jnp.stack([w.T for w in layer_weights[1:]], 0).astype(jnp.float32)
        brt = jnp.stack(layer_biases[1:], 0).astype(jnp.float32)
        num_rest = num_layers - 1
    else:  # dummy (unused) blocks so the kernel signature stays fixed
        wrt = jnp.zeros((1, c_out, c_out), jnp.float32)
        brt = jnp.zeros((1, c_out), jnp.float32)
        num_rest = 0
    lr_blocks = wrt.shape[0]

    # --- tile the point axis (multiple of 8 rows per tile) --------------------
    tm = max(8, tile_m - tile_m % 8)
    tm = min(tm, max(8, ((M + 7) // 8) * 8))               # don't over-pad tiny M
    m_pad = int(pl.cdiv(M, tm)) * tm
    if m_pad != M:
        pts2 = jnp.pad(pts2, ((0, 0), (0, m_pad - M), (0, 0)))

    grid = (N, m_pad // tm)
    kernel = functools.partial(_film_mlp_kernel,
                               in_channels=c_in,
                               num_rest_layers=num_rest)

    out = pl.pallas_call(
        kernel,
        out_shape=jax.ShapeDtypeStruct((N, m_pad, c_out), pts.dtype),
        grid_spec=pltpu.PrefetchScalarGridSpec(
            num_scalar_prefetch=0,
            grid=grid,
            in_specs=[
                pl.BlockSpec((1, tm, c_in), lambda b, i: (b, i, 0)),       # pts
                pl.BlockSpec((c_in, c_out), lambda b, i: (0, 0)),          # W0^T (scaled)
                pl.BlockSpec((1, c_out), lambda b, i: (0, 0)),             # b0
                pl.BlockSpec((lr_blocks, c_out, c_out),
                             lambda b, i: (0, 0, 0)),                      # W_rest^T
                pl.BlockSpec((lr_blocks, c_out), lambda b, i: (0, 0)),     # b_rest
                pl.BlockSpec((1, num_layers, c_out), lambda b, i: (b, 0, 0)),  # freqs
                pl.BlockSpec((1, num_layers, c_out), lambda b, i: (b, 0, 0)),  # phases
            ],
            out_specs=pl.BlockSpec((1, tm, c_out), lambda b, i: (b, i, 0)),
        ),
        compiler_params=pltpu.CompilerParams(
            dimension_semantics=("parallel", "parallel")),
    )(pts2, w0t, b0, wrt, brt, freqs, phases)

    return out[:, :M, :]


def reference_forward(pts, wp, layer_weights, layer_biases,
                      style_weights, style_biases, *, grid_scale=0.24):
    """Plain-JAX reference mirroring the PyTorch MLPNetwork.forward."""
    N = pts.shape[0]
    x = pts.reshape(N, -1, pts.shape[-1]) * (2.0 / grid_scale)
    c_out = layer_weights[0].shape[0]
    for idx in range(len(layer_weights)):
        h = jnp.matmul(x, layer_weights[idx].T,
                       precision=jax.lax.Precision.HIGHEST) + layer_biases[idx]
        style = jnp.matmul(wp[:, idx], style_weights[idx].T,
                           precision=jax.lax.Precision.HIGHEST) + style_biases[idx]
        freq = style[:, None, :c_out] * 15.0 + 30.0
        phase = style[:, None, c_out:]
        x = jnp.sin(freq * h + phase)
    return x


if __name__ == "__main__":
    key = jax.random.PRNGKey(0)

    # Small shapes consistent with the module: pts (N, R, K, 3), wp (N, L, w_dim).
    N, R, K, C_IN = 2, 16, 16, 3               # -> 256 points per batch element
    W_DIM, NUM_LAYERS, OUT_CH = 32, 3, 128     # lane-dense hidden width
    GRID_SCALE = 0.24

    keys = jax.random.split(key, 2 + 4 * NUM_LAYERS)
    pts = jax.random.normal(keys[0], (N, R, K, C_IN), dtype=jnp.float32)
    wp = jax.random.normal(keys[1], (N, NUM_LAYERS, W_DIM), dtype=jnp.float32)

    layer_weights, layer_biases, style_weights, style_biases = [], [], [], []
    for i in range(NUM_LAYERS):
        cin = C_IN if i == 0 else OUT_CH
        kk = keys[2 + 4 * i: 2 + 4 * (i + 1)]
        bound = (1.0 / cin) if i == 0 else (math.sqrt(6.0 / cin) / 25.0)
        layer_weights.append(jax.random.uniform(
            kk[0], (OUT_CH, cin), minval=-bound, maxval=bound, dtype=jnp.float32))
        layer_biases.append(jax.random.uniform(
            kk[1], (OUT_CH,), minval=-1.0 / math.sqrt(cin),
            maxval=1.0 / math.sqrt(cin), dtype=jnp.float32))
        style_std = 0.25 * math.sqrt(2.0 / (1.0 + 0.2 ** 2) / W_DIM)
        style_weights.append(style_std * jax.random.normal(
            kk[2], (2 * OUT_CH, W_DIM), dtype=jnp.float32))
        style_biases.append(jax.random.uniform(
            kk[3], (2 * OUT_CH,), minval=-1.0 / math.sqrt(W_DIM),
            maxval=1.0 / math.sqrt(W_DIM), dtype=jnp.float32))

    out = mlp_network_forward(pts, wp, layer_weights, layer_biases,
                              style_weights, style_biases,
                              grid_scale=GRID_SCALE, tile_m=128)
    out = jax.block_until_ready(out)

    ref = reference_forward(pts, wp, layer_weights, layer_biases,
                            style_weights, style_biases, grid_scale=GRID_SCALE)
    ref = jax.block_until_ready(ref)

    assert out.shape == ref.shape and out.dtype == ref.dtype
    max_err = float(jnp.max(jnp.abs(out - ref)))
    assert max_err < 2e-2, f"max abs error too large: {max_err}"

    print("KERNEL_OK")
</pallas_src>

<mosaic_0001>
module attributes {stable_mosaic.version = 11 : i64} {
  func.func @_film_mlp_kernel(%arg0: i32, %arg1: i32, %arg2: memref<1x128x3xf32, #tpu.memory_space<vmem>>, %arg3: memref<3x128xf32, #tpu.memory_space<vmem>>, %arg4: memref<1x128xf32, #tpu.memory_space<vmem>>, %arg5: memref<2x128x128xf32, #tpu.memory_space<vmem>>, %arg6: memref<2x128xf32, #tpu.memory_space<vmem>>, %arg7: memref<1x3x128xf32, #tpu.memory_space<vmem>>, %arg8: memref<1x3x128xf32, #tpu.memory_space<vmem>>, %arg9: memref<1x128x128xf32, #tpu.memory_space<vmem>>) attributes {dimension_semantics = [#tpu.dimension_semantics<parallel>, #tpu.dimension_semantics<parallel>], iteration_bounds = array<i64: 2, 2>, scalar_prefetch = 0 : i64, scratch_operands = 0 : i64, tpu.core_type = #tpu.core_type<tc>, window_params = [{transform_indices = @transform_0, window_bounds = array<i64: 1, 128, 3>}, {pipeline_mode = #tpu.pipeline_mode<synchronous>, transform_indices = @transform_1, window_bounds = array<i64: 3, 128>}, {pipeline_mode = #tpu.pipeline_mode<synchronous>, transform_indices = @transform_2, window_bounds = array<i64: 1, 128>}, {pipeline_mode = #tpu.pipeline_mode<synchronous>, transform_indices = @transform_3, window_bounds = array<i64: 2, 128, 128>}, {pipeline_mode = #tpu.pipeline_mode<synchronous>, transform_indices = @transform_4, window_bounds = array<i64: 2, 128>}, {transform_indices = @transform_5, window_bounds = array<i64: 1, 3, 128>}, {transform_indices = @transform_6, window_bounds = array<i64: 1, 3, 128>}, {transform_indices = @transform_7, window_bounds = array<i64: 1, 128, 128>}]} {
    %c0 = arith.constant 0 : index
    %c0_0 = arith.constant 0 : index
    %c0_1 = arith.constant 0 : index
    %0 = vector.load %arg2[%c0, %c0_0, %c0_1] : memref<1x128x3xf32, #tpu.memory_space<vmem>>, vector<1x128x3xf32>
    %1 = vector.shape_cast %0 : vector<1x128x3xf32> to vector<128x3xf32>
    %c0_2 = arith.constant 0 : index
    %c0_3 = arith.constant 0 : index
    %2 = vector.load %arg3[%c0_2, %c0_3] : memref<3x128xf32, #tpu.memory_space<vmem>>, vector<3x128xf32>
    %c0_4 = arith.constant 0 : index
    %c0_5 = arith.constant 0 : index
    %c0_6 = arith.constant 0 : index
    %3 = vector.load %arg7[%c0_4, %c0_5, %c0_6] : memref<1x3x128xf32, #tpu.memory_space<vmem>>, vector<1x3x128xf32>
    %4 = vector.shape_cast %3 : vector<1x3x128xf32> to vector<3x128xf32>
    %c0_7 = arith.constant 0 : index
    %c0_8 = arith.constant 0 : index
    %c0_9 = arith.constant 0 : index
    %5 = vector.load %arg8[%c0_7, %c0_8, %c0_9] : memref<1x3x128xf32, #tpu.memory_space<vmem>>, vector<1x3x128xf32>
    %6 = vector.shape_cast %5 : vector<1x3x128xf32> to vector<3x128xf32>
    %c0_10 = arith.constant 0 : index
    %c0_11 = arith.constant 0 : index
    %7 = vector.load %arg4[%c0_10, %c0_11] : memref<1x128xf32, #tpu.memory_space<vmem>>, vector<1x128xf32>
    %8 = vector.extract_strided_slice %1 {offsets = [0, 0], sizes = [128, 1], strides = [1, 1]} : vector<128x3xf32> to vector<128x1xf32>
    %9 = vector.extract_strided_slice %2 {offsets = [0, 0], sizes = [1, 128], strides = [1, 1]} : vector<3x128xf32> to vector<1x128xf32>
    %10 = vector.broadcast %8 : vector<128x1xf32> to vector<128x128xf32>
    %11 = vector.broadcast %9 : vector<1x128xf32> to vector<128x128xf32>
    %12 = arith.mulf %10, %11 : vector<128x128xf32>
    %13 = vector.broadcast %7 : vector<1x128xf32> to vector<128x128xf32>
    %14 = arith.addf %13, %12 : vector<128x128xf32>
    %15 = vector.extract_strided_slice %1 {offsets = [0, 1], sizes = [128, 1], strides = [1, 1]} : vector<128x3xf32> to vector<128x1xf32>
    %16 = vector.extract_strided_slice %2 {offsets = [1, 0], sizes = [1, 128], strides = [1, 1]} : vector<3x128xf32> to vector<1x128xf32>
    %17 = vector.broadcast %15 : vector<128x1xf32> to vector<128x128xf32>
    %18 = vector.broadcast %16 : vector<1x128xf32> to vector<128x128xf32>
    %19 = arith.mulf %17, %18 : vector<128x128xf32>
    %20 = arith.addf %14, %19 : vector<128x128xf32>
    %21 = vector.extract_strided_slice %1 {offsets = [0, 2], sizes = [128, 1], strides = [1, 1]} : vector<128x3xf32> to vector<128x1xf32>
    %22 = vector.extract_strided_slice %2 {offsets = [2, 0], sizes = [1, 128], strides = [1, 1]} : vector<3x128xf32> to vector<1x128xf32>
    %23 = vector.broadcast %21 : vector<128x1xf32> to vector<128x128xf32>
    %24 = vector.broadcast %22 : vector<1x128xf32> to vector<128x128xf32>
    %25 = arith.mulf %23, %24 : vector<128x128xf32>
    %26 = arith.addf %20, %25 : vector<128x128xf32>
    %27 = vector.extract_strided_slice %4 {offsets = [0, 0], sizes = [1, 128], strides = [1, 1]} : vector<3x128xf32> to vector<1x128xf32>
    %28 = vector.broadcast %27 : vector<1x128xf32> to vector<128x128xf32>
    %29 = arith.mulf %28, %26 : vector<128x128xf32>
    %30 = vector.extract_strided_slice %6 {offsets = [0, 0], sizes = [1, 128], strides = [1, 1]} : vector<3x128xf32> to vector<1x128xf32>
    %31 = vector.broadcast %30 : vector<1x128xf32> to vector<128x128xf32>
    %32 = arith.addf %29, %31 : vector<128x128xf32>
    %33 = math.sin %32 : vector<128x128xf32>
    %c0_12 = arith.constant 0 : index
    %c0_13 = arith.constant 0 : index
    %34 = vector.load %arg6[%c0_12, %c0_13] : memref<2x128xf32, #tpu.memory_space<vmem>>, vector<2x128xf32>
    %c0_14 = arith.constant 0 : index
    %c0_15 = arith.constant 0 : index
    %c0_16 = arith.constant 0 : index
    %35 = vector.load %arg5[%c0_14, %c0_15, %c0_16] : memref<2x128x128xf32, #tpu.memory_space<vmem>>, vector<1x128x128xf32>
    %36 = vector.shape_cast %35 : vector<1x128x128xf32> to vector<128x128xf32>
    %cst = arith.constant dense<0.000000e+00> : vector<128x128xf32>
    %37 = tpu.matmul %33, %36, %cst {dimension_numbers = #tpu.dot_dimension_numbers<[1], [0], [0], [1], [0, 0, 1, 1], [], []>} : vector<128x128xf32>, vector<128x128xf32>, vector<128x128xf32> -> vector<128x128xf32>
    %38 = vector.extract_strided_slice %34 {offsets = [0, 0], sizes = [1, 128], strides = [1, 1]} : vector<2x128xf32> to vector<1x128xf32>
    %39 = vector.broadcast %38 : vector<1x128xf32> to vector<128x128xf32>
    %40 = arith.addf %37, %39 : vector<128x128xf32>
    %41 = vector.extract_strided_slice %4 {offsets = [1, 0], sizes = [1, 128], strides = [1, 1]} : vector<3x128xf32> to vector<1x128xf32>
    %42 = vector.broadcast %41 : vector<1x128xf32> to vector<128x128xf32>
    %43 = arith.mulf %42, %40 : vector<128x128xf32>
    %44 = vector.extract_strided_slice %6 {offsets = [1, 0], sizes = [1, 128], strides = [1, 1]} : vector<3x128xf32> to vector<1x128xf32>
    %45 = vector.broadcast %44 : vector<1x128xf32> to vector<128x128xf32>
    %46 = arith.addf %43, %45 : vector<128x128xf32>
    %47 = math.sin %46 : vector<128x128xf32>
    %c1 = arith.constant 1 : index
    %c0_17 = arith.constant 0 : index
    %c0_18 = arith.constant 0 : index
    %48 = vector.load %arg5[%c1, %c0_17, %c0_18] : memref<2x128x128xf32, #tpu.memory_space<vmem>>, vector<1x128x128xf32>
    %49 = vector.shape_cast %48 : vector<1x128x128xf32> to vector<128x128xf32>
    %cst_19 = arith.constant dense<0.000000e+00> : vector<128x128xf32>
    %50 = tpu.matmul %47, %49, %cst_19 {dimension_numbers = #tpu.dot_dimension_numbers<[1], [0], [0], [1], [0, 0, 1, 1], [], []>} : vector<128x128xf32>, vector<128x128xf32>, vector<128x128xf32> -> vector<128x128xf32>
    %51 = vector.extract_strided_slice %34 {offsets = [1, 0], sizes = [1, 128], strides = [1, 1]} : vector<2x128xf32> to vector<1x128xf32>
    %52 = vector.broadcast %51 : vector<1x128xf32> to vector<128x128xf32>
    %53 = arith.addf %50, %52 : vector<128x128xf32>
    %54 = vector.extract_strided_slice %4 {offsets = [2, 0], sizes = [1, 128], strides = [1, 1]} : vector<3x128xf32> to vector<1x128xf32>
    %55 = vector.broadcast %54 : vector<1x128xf32> to vector<128x128xf32>
    %56 = arith.mulf %55, %53 : vector<128x128xf32>
    %57 = vector.extract_strided_slice %6 {offsets = [2, 0], sizes = [1, 128], strides = [1, 1]} : vector<3x128xf32> to vector<1x128xf32>
    %58 = vector.broadcast %57 : vector<1x128xf32> to vector<128x128xf32>
    %59 = arith.addf %56, %58 : vector<128x128xf32>
    %60 = math.sin %59 : vector<128x128xf32>
    %c0_20 = arith.constant 0 : index
    %c0_21 = arith.constant 0 : index
    %c0_22 = arith.constant 0 : index
    %61 = vector.load %arg9[%c0_20, %c0_21, %c0_22] : memref<1x128x128xf32, #tpu.memory_space<vmem>>, vector<1x128x128xf32>
    %62 = vector.shape_cast %61 : vector<1x128x128xf32> to vector<128x128xf32>
    %63 = vector.shape_cast %60 : vector<128x128xf32> to vector<1x128x128xf32>
    tpu.vector_store %arg9[%c0_20, %c0_21, %c0_22], %63 {strides = array<i32>} : memref<1x128x128xf32, #tpu.memory_space<vmem>>, vector<1x128x128xf32>,
    return
  }
  func.func @transform_0(%arg0: i32, %arg1: i32) -> (i32, i32, i32) {
    %c0_i32 = arith.constant 0 : i32
    %c0_i32_0 = arith.constant 0 : i32
    return %arg0, %arg1, %c0_i32 : i32, i32, i32
  }
  func.func @transform_1(%arg0: i32, %arg1: i32) -> (i32, i32) {
    %c0_i32 = arith.constant 0 : i32
    %c0_i32_0 = arith.constant 0 : i32
    %c0_i32_1 = arith.constant 0 : i32
    return %c0_i32, %c0_i32_0 : i32, i32
  }
  func.func @transform_2(%arg0: i32, %arg1: i32) -> (i32, i32) {
    %c0_i32 = arith.constant 0 : i32
    %c0_i32_0 = arith.constant 0 : i32
    %c0_i32_1 = arith.constant 0 : i32
    return %c0_i32, %c0_i32_0 : i32, i32
  }
  func.func @transform_3(%arg0: i32, %arg1: i32) -> (i32, i32, i32) {
    %c0_i32 = arith.constant 0 : i32
    %c0_i32_0 = arith.constant 0 : i32
    %c0_i32_1 = arith.constant 0 : i32
    %c0_i32_2 = arith.constant 0 : i32
    return %c0_i32, %c0_i32_0, %c0_i32_1 : i32, i32, i32
  }
  func.func @transform_4(%arg0: i32, %arg1: i32) -> (i32, i32) {
    %c0_i32 = arith.constant 0 : i32
    %c0_i32_0 = arith.constant 0 : i32
    %c0_i32_1 = arith.constant 0 : i32
    return %c0_i32, %c0_i32_0 : i32, i32
  }
  func.func @transform_5(%arg0: i32, %arg1: i32) -> (i32, i32, i32) {
    %c0_i32 = arith.constant 0 : i32
    %c0_i32_0 = arith.constant 0 : i32
    %c0_i32_1 = arith.constant 0 : i32
    return %arg0, %c0_i32, %c0_i32_0 : i32, i32, i32
  }
  func.func @transform_6(%arg0: i32, %arg1: i32) -> (i32, i32, i32) {
    %c0_i32 = arith.constant 0 : i32
    %c0_i32_0 = arith.constant 0 : i32
    %c0_i32_1 = arith.constant 0 : i32
    return %arg0, %c0_i32, %c0_i32_0 : i32, i32, i32
  }
  func.func @transform_7(%arg0: i32, %arg1: i32) -> (i32, i32, i32) {
    %c0_i32 = arith.constant 0 : i32
    %c0_i32_0 = arith.constant 0 : i32
    return %arg0, %arg1, %c0_i32 : i32, i32, i32
  }
}

</mosaic_0001>

<llo_original>
// kernel: tpu_custom_call.1
$region0: #{tpu_custom_call.1}
  #allocation0 [shape = 'u32[]', space=smem, size = 0x4, offset = 0x4, fixed_abs, tag = 'smem constant byte address 0x4 - core index']
  #allocation1 [shape = 'u32[144,128]{1,0:T(1,128)}', space=vmem, size = 0x12000, scoped, tag = 'internal scratch']
  %s0 = inlined_call_operand.vmem [shape: f32[2,256,3], index: 0, kind: input, shape index: {}]
  %s1 = inlined_call_operand.vmem [shape: f32[3,128], index: 1, kind: input, shape index: {}]
  %s2 = inlined_call_operand.vmem [shape: f32[1,128], index: 2, kind: input, shape index: {}]
  %s3 = inlined_call_operand.vmem [shape: f32[2,128,128], index: 3, kind: input, shape index: {}]
  %s4 = inlined_call_operand.vmem [shape: f32[2,128], index: 4, kind: input, shape index: {}]
  %s5 = inlined_call_operand.vmem [shape: f32[2,3,128], index: 5, kind: input, shape index: {}]
  %s6 = inlined_call_operand.vmem [shape: f32[2,3,128], index: 6, kind: input, shape index: {}]
  %s7 = inlined_call_operand.hbm [shape: f32[2,256,128], index: 7, kind: output, shape index: {}]
  %s8 = sld [smem:[#allocation0]]
  $region61: #{tpu_custom_call.1} parent=0
    _
  %s10 = ssub.s32 1, %s8
  %s11 = scalar_select 0, %s10, %s8
  $region1: #{tpu_custom_call.1} parent=0
    #allocation2 [shape = 'u8[131072]{0}', space=vmem, size = 0x20000, scoped, tag = 'output window, operand 0']
    #allocation3 [shape = 's32[2]{0}', space=sflag, size = 0x8, scoped, tag = 'scoped memory for tpu_custom_call.1']
    %12 = vsyncpa [#allocation3], 0
    %s13 = scalar_lea.sflag [#allocation3], 1
    %14 = vsyncpa %s13, 0
    loop: start=0, step=1, limit=6
    $region2: #{tpu_custom_call.1} parent=1 // loop_pre_header
      _
    $region3: #{tpu_custom_call.1} parent=1 // loop_header
      %s16 = sphi 0, %s20
      %p17 = scmp.ge.s32.totalorder %s16, 6
      %s23 = sphi 0, %s35
      %s24 = sphi 0, %s31
      %s25 = sphi 0, %s23
      %s26 = sphi 0, %s24
      %s27 = sphi 0, %s25
      %s28 = sphi 0, %s26
      %s40 = sphi 0, %s42
      %s43 = sphi 0, %s40
      %s44 = sphi 0, %s43
      %s60 = sphi 0, %s44
      %s64 = sphi 0, %s64
      %s66 = sphi 0, %s64
      %s67 = sphi 0, %s66
      %s81 = sphi 0, %s67
      %s85 = sphi 0, %s85
      %s87 = sphi 0, %s85
      %s88 = sphi 0, %s87
      %s102 = sphi 0, %s88
      %s106 = sphi 0, %s106
      %s108 = sphi 0, %s106
      %s109 = sphi 0, %s108
      %s123 = sphi 0, %s109
      %s127 = sphi 0, %s127
      %s129 = sphi 0, %s127
      %s130 = sphi 0, %s129
      %s144 = sphi 0, %s130
      %s150 = sphi 0, %s152
      %s153 = sphi 0, %s150
      %s154 = sphi 0, %s153
      %s170 = sphi 0, %s154
      %s176 = sphi 0, %s178
      %s179 = sphi 0, %s176
      %s180 = sphi 0, %s179
      %s196 = sphi 0, %s180
      %s204 = sphi 0, %s206
      %s207 = sphi 0, %s204
      %s208 = sphi 0, %s207
      %s224 = sphi 0, %s208
    $region4: #{tpu_custom_call.1} parent=1 // loop_header_branch
      %19 = sbr.rel (%p17) target = $region8
    $region5: #{tpu_custom_call.1} parent=1 // loop_body
      %s21 = ssub.s32 %s16, 1
      %s22 = ssub.s32 %s16, 2
      %s29 = sadd.s32 1, %s24
      %p30 = scmp.ge.s32.totalorder %s29, 2
      %s31 = scalar_select %p30, 0, %s29
      %s32 = sadd.s32 1, %s23
      %s33 = scalar_select %p30, %s32, %s23
      %p34 = scmp.ge.s32.totalorder %s33, 2
      %s35 = scalar_select %p34, 0, %s33
      %s36 = ssub.s32 %s23, %s35
      %s37 = ssub.s32 %s24, %s31
      %s38 = sor.u32 %s36, %s37
      %p39 = scmp.eq.s32.totalorder %s38, 0
      %s41 = sadd.s32 %s40, 1
      %s42 = scalar_select %p39, %s40, %s41
      %p45 = pneg %p39
      %p46 = scmp.eq.s32.totalorder %s16, 3
      %p47 = por %p45, %p46
      %p48 = scmp.ne.s32.totalorder %s40, %s43
      %p49 = scmp.eq.s32.totalorder %s16, 0
      %p50 = por %p48, %p49
      %p51 = scmp.ne.s32.totalorder %s40, %s43
      %p52 = scmp.eq.s32.totalorder %s21, 3
      %p53 = por %p51, %p52
      %p54 = scmp.ne.s32.totalorder %s43, %s44
      %p55 = scmp.eq.s32.totalorder %s21, 0
      %p56 = por %p54, %p55
      %p57 = scmp.ne.s32.totalorder %s43, %s44
      %p58 = scmp.eq.s32.totalorder %s22, 3
      %p59 = por %p57, %p58
      %p61 = scmp.ne.s32.totalorder %s44, %s60
      %p62 = scmp.eq.s32.totalorder %s22, 0
      %p63 = por %p61, %p62
      %s65 = sadd.s32 %s64, 1
      %p68 = scmp.eq.s32.totalorder %s16, 3
      %p69 = scmp.ne.s32.totalorder %s64, %s66
      %p70 = scmp.eq.s32.totalorder %s16, 0
      %p71 = por %p69, %p70
      %p72 = scmp.ne.s32.totalorder %s64, %s66
      %p73 = scmp.eq.s32.totalorder %s21, 3
      %p74 = por %p72, %p73
      %p75 = scmp.ne.s32.totalorder %s66, %s67
      %p76 = scmp.eq.s32.totalorder %s21, 0
      %p77 = por %p75, %p76
      %p78 = scmp.ne.s32.totalorder %s66, %s67
      %p79 = scmp.eq.s32.totalorder %s22, 3
      %p80 = por %p78, %p79
      %p82 = scmp.ne.s32.totalorder %s67, %s81
      %p83 = scmp.eq.s32.totalorder %s22, 0
      %p84 = por %p82, %p83
      %s86 = sadd.s32 %s85, 1
      %p89 = scmp.eq.s32.totalorder %s16, 3
      %p90 = scmp.ne.s32.totalorder %s85, %s87
      %p91 = scmp.eq.s32.totalorder %s16, 0
      %p92 = por %p90, %p91
      %p93 = scmp.ne.s32.totalorder %s85, %s87
      %p94 = scmp.eq.s32.totalorder %s21, 3
      %p95 = por %p93, %p94
      %p96 = scmp.ne.s32.totalorder %s87, %s88
      %p97 = scmp.eq.s32.totalorder %s21, 0
      %p98 = por %p96, %p97
      %p99 = scmp.ne.s32.totalorder %s87, %s88
      %p100 = scmp.eq.s32.totalorder %s22, 3
      %p101 = por %p99, %p100
      %p103 = scmp.ne.s32.totalorder %s88, %s102
      %p104 = scmp.eq.s32.totalorder %s22, 0
      %p105 = por %p103, %p104
      %s107 = sadd.s32 %s106, 1
      %p110 = scmp.eq.s32.totalorder %s16, 3
      %p111 = scmp.ne.s32.totalorder %s106, %s108
      %p112 = scmp.eq.s32.totalorder %s16, 0
      %p113 = por %p111, %p112
      %p114 = scmp.ne.s32.totalorder %s106, %s108
      %p115 = scmp.eq.s32.totalorder %s21, 3
      %p116 = por %p114, %p115
      %p117 = scmp.ne.s32.totalorder %s108, %s109
      %p118 = scmp.eq.s32.totalorder %s21, 0
      %p119 = por %p117, %p118
      %p120 = scmp.ne.s32.totalorder %s108, %s109
      %p121 = scmp.eq.s32.totalorder %s22, 3
      %p122 = por %p120, %p121
      %p124 = scmp.ne.s32.totalorder %s109, %s123
      %p125 = scmp.eq.s32.totalorder %s22, 0
      %p126 = por %p124, %p125
      %s128 = sadd.s32 %s127, 1
      %p131 = scmp.eq.s32.totalorder %s16, 3
      %p132 = scmp.ne.s32.totalorder %s127, %s129
      %p133 = scmp.eq.s32.totalorder %s16, 0
      %p134 = por %p132, %p133
      %p135 = scmp.ne.s32.totalorder %s127, %s129
      %p136 = scmp.eq.s32.totalorder %s21, 3
      %p137 = por %p135, %p136
      %p138 = scmp.ne.s32.totalorder %s129, %s130
      %p139 = scmp.eq.s32.totalorder %s21, 0
      %p140 = por %p138, %p139
      %p141 = scmp.ne.s32.totalorder %s129, %s130
      %p142 = scmp.eq.s32.totalorder %s22, 3
      %p143 = por %p141, %p142
      %p145 = scmp.ne.s32.totalorder %s130, %s144
      %p146 = scmp.eq.s32.totalorder %s22, 0
      %p147 = por %p145, %p146
      %s148 = ssub.s32 %s23, %s35
      %p149 = scmp.eq.s32.totalorder %s148, 0
      %s151 = sadd.s32 %s150, 1
      %s152 = scalar_select %p149, %s150, %s151
      %p155 = pneg %p149
      %p156 = scmp.eq.s32.totalorder %s16, 3
      %p157 = por %p155, %p156
      %p158 = scmp.ne.s32.totalorder %s150, %s153
      %p159 = scmp.eq.s32.totalorder %s16, 0
      %p160 = por %p158, %p159
      %p161 = scmp.ne.s32.totalorder %s150, %s153
      %p162 = scmp.eq.s32.totalorder %s21, 3
      %p163 = por %p161, %p162
      %p164 = scmp.ne.s32.totalorder %s153, %s154
      %p165 = scmp.eq.s32.totalorder %s21, 0
      %p166 = por %p164, %p165
      %p167 = scmp.ne.s32.totalorder %s153, %s154
      %p168 = scmp.eq.s32.totalorder %s22, 3
      %p169 = por %p167, %p168
      %p171 = scmp.ne.s32.totalorder %s154, %s170
      %p172 = scmp.eq.s32.totalorder %s22, 0
      %p173 = por %p171, %p172
      %s174 = ssub.s32 %s23, %s35
      %p175 = scmp.eq.s32.totalorder %s174, 0
      %s177 = sadd.s32 %s176, 1
      %s178 = scalar_select %p175, %s176, %s177
      %p181 = pneg %p175
      %p182 = scmp.eq.s32.totalorder %s16, 3
      %p183 = por %p181, %p182
      %p184 = scmp.ne.s32.totalorder %s176, %s179
      %p185 = scmp.eq.s32.totalorder %s16, 0
      %p186 = por %p184, %p185
      %p187 = scmp.ne.s32.totalorder %s176, %s179
      %p188 = scmp.eq.s32.totalorder %s21, 3
      %p189 = por %p187, %p188
      %p190 = scmp.ne.s32.totalorder %s179, %s180
      %p191 = scmp.eq.s32.totalorder %s21, 0
      %p192 = por %p190, %p191
      %p193 = scmp.ne.s32.totalorder %s179, %s180
      %p194 = scmp.eq.s32.totalorder %s22, 3
      %p195 = por %p193, %p194
      %p197 = scmp.ne.s32.totalorder %s180, %s196
      %p198 = scmp.eq.s32.totalorder %s22, 0
      %p199 = por %p197, %p198
      %s200 = ssub.s32 %s23, %s35
      %s201 = ssub.s32 %s24, %s31
      %s202 = sor.u32 %s200, %s201
      %p203 = scmp.eq.s32.totalorder %s202, 0
      %s205 = sadd.s32 %s204, 1
      %s206 = scalar_select %p203, %s204, %s205
      %p209 = pneg %p203
      %p210 = scmp.eq.s32.totalorder %s16, 3
      %p211 = por %p209, %p210
      %p212 = scmp.ne.s32.totalorder %s204, %s207
      %p213 = scmp.eq.s32.totalorder %s16, 0
      %p214 = por %p212, %p213
      %p215 = scmp.ne.s32.totalorder %s204, %s207
      %p216 = scmp.eq.s32.totalorder %s21, 3
      %p217 = por %p215, %p216
      %p218 = scmp.ne.s32.totalorder %s207, %s208
      %p219 = scmp.eq.s32.totalorder %s21, 0
      %p220 = por %p218, %p219
      %p221 = scmp.ne.s32.totalorder %s207, %s208
      %p222 = scmp.eq.s32.totalorder %s22, 3
      %p223 = por %p221, %p222
      %p225 = scmp.ne.s32.totalorder %s208, %s224
      %p226 = scmp.eq.s32.totalorder %s22, 0
      %p227 = por %p225, %p226
      %p228 = scmp.le.s32.totalorder 1, %s16
      %p229 = scmp.lt.s32.totalorder %s16, 5
      %p230 = pnand %p228, %p229
      %p231 = pneg %p230
      // Predicated region
      $region9: #{tpu_custom_call.1} parent=5 // pred_check
        _
      $region10: #{tpu_custom_call.1} parent=5 // pred_check_branch
        %233 = sbr.rel (%p230) target = $region12
      $region11: #{tpu_custom_call.1} parent=5 // pred_region
        %s234 = ssub.s32 %s16, 1
        // Predicated region
        $region13: #{tpu_custom_call.1} parent=11 // pred_check
          %p235 = pneg %p77
        $region14: #{tpu_custom_call.1} parent=11 // pred_check_branch
          %237 = sbr.rel (%p235) target = $region16
        $region15: #{tpu_custom_call.1} parent=11 // pred_region
          _
        $region16: #{tpu_custom_call.1} parent=11 // pred_fallthru
          _
        // Predicated region
        $region17: #{tpu_custom_call.1} parent=11 // pred_check
          %p238 = pneg %p98
        $region18: #{tpu_custom_call.1} parent=11 // pred_check_branch
          %240 = sbr.rel (%p238) target = $region20
        $region19: #{tpu_custom_call.1} parent=11 // pred_region
          _
        $region20: #{tpu_custom_call.1} parent=11 // pred_fallthru
          _
        // Predicated region
        $region21: #{tpu_custom_call.1} parent=11 // pred_check
          %p241 = pneg %p119
        $region22: #{tpu_custom_call.1} parent=11 // pred_check_branch
          %243 = sbr.rel (%p241) target = $region24
        $region23: #{tpu_custom_call.1} parent=11 // pred_region
          _
        $region24: #{tpu_custom_call.1} parent=11 // pred_fallthru
          _
        // Predicated region
        $region25: #{tpu_custom_call.1} parent=11 // pred_check
          %p244 = pneg %p140
        $region26: #{tpu_custom_call.1} parent=11 // pred_check_branch
          %246 = sbr.rel (%p244) target = $region28
        $region27: #{tpu_custom_call.1} parent=11 // pred_region
          _
        $region28: #{tpu_custom_call.1} parent=11 // pred_fallthru
          _
      $region12: #{tpu_custom_call.1} parent=5 // pred_fallthru
        _
      %p247 = scmp.lt.s32.totalorder %s16, 4
      // Predicated region
      $region29: #{tpu_custom_call.1} parent=5 // pred_check
        %p248 = pneg %p247
      $region30: #{tpu_custom_call.1} parent=5 // pred_check_branch
        %250 = sbr.rel (%p248) target = $region32
      $region31: #{tpu_custom_call.1} parent=5 // pred_region
        // Predicated region
        $region33: #{tpu_custom_call.1} parent=31 // pred_check
          %p251 = pneg %p50
        $region34: #{tpu_custom_call.1} parent=31 // pred_check_branch
          %253 = sbr.rel (%p251) target = $region36
        $region35: #{tpu_custom_call.1} parent=31 // pred_region
          %s254 = smul.u32 16, %s24
          %p255 = scmp.lt.s32.totalorder %s23, 1
          %s256 = scalar_select %p255, %s23, 1
          %p257 = scmp.lt.s32.totalorder %s254, 31
          %s258 = scalar_select %p257, %s254, 31
          %s259 = smul.addr %s256, 32
          %s260 = sadd.s32 %s258, %s259
          %s261 = smul.addr %s260, 8
          %s262 = scalar_lea.vmem %s0, %s261
          %s263 = smul.u32 16, %s24
        $region36: #{tpu_custom_call.1} parent=31 // pred_fallthru
          _
        // Predicated region
        $region37: #{tpu_custom_call.1} parent=31 // pred_check
          %p264 = pneg %p160
        $region38: #{tpu_custom_call.1} parent=31 // pred_check_branch
          %266 = sbr.rel (%p264) target = $region40
        $region39: #{tpu_custom_call.1} parent=31 // pred_region
          %p267 = scmp.lt.s32.totalorder %s23, 1
          %s268 = scalar_select %p267, %s23, 1
          %s269 = smul.addr %s268, 4
          %s270 = scalar_lea.vmem %s5, %s269
        $region40: #{tpu_custom_call.1} parent=31 // pred_fallthru
          _
        // Predicated region
        $region41: #{tpu_custom_call.1} parent=31 // pred_check
          %p271 = pneg %p186
        $region42: #{tpu_custom_call.1} parent=31 // pred_check_branch
          %273 = sbr.rel (%p271) target = $region44
        $region43: #{tpu_custom_call.1} parent=31 // pred_region
          %p274 = scmp.lt.s32.totalorder %s23, 1
          %s275 = scalar_select %p274, %s23, 1
          %s276 = smul.addr %s275, 4
          %s277 = scalar_lea.vmem %s6, %s276
        $region44: #{tpu_custom_call.1} parent=31 // pred_fallthru
          _
      $region32: #{tpu_custom_call.1} parent=5 // pred_fallthru
        _
      %p278 = scmp.le.s32.totalorder 1, %s16
      %p279 = scmp.lt.s32.totalorder %s16, 5
      %p280 = pnand %p278, %p279
      %p281 = pneg %p280
      // Predicated region
      $region45: #{tpu_custom_call.1} parent=5 // pred_check
        _
      $region46: #{tpu_custom_call.1} parent=5 // pred_check_branch
        %283 = sbr.rel (%p280) target = $region48
      $region47: #{tpu_custom_call.1} parent=5 // pred_region
        %s284 = ssub.s32 %s16, 1
        %s285 = smul.u32 16, %s26
        %p286 = scmp.lt.s32.totalorder %s25, 1
        %s287 = scalar_select %p286, %s25, 1
        %p288 = scmp.lt.s32.totalorder %s285, 31
        %s289 = scalar_select %p288, %s285, 31
        %s290 = smul.addr %s287, 32
        %s291 = sadd.s32 %s289, %s290
        %s292 = smul.addr %s291, 8
        %s293 = scalar_lea.vmem %s0, %s292
        %p294 = pneg %p56
        %p295 = pneg %p53
        %p296 = pneg %p77
        %p297 = pneg %p74
        %p298 = pneg %p98
        %p299 = pneg %p95
        %p300 = pneg %p119
        %p301 = pneg %p116
        %p302 = pneg %p140
        %p303 = pneg %p137
        %p304 = scmp.lt.s32.totalorder %s25, 1
        %s305 = scalar_select %p304, %s25, 1
        %s306 = smul.addr %s305, 4
        %s307 = scalar_lea.vmem %s5, %s306
        %p308 = pneg %p166
        %p309 = pneg %p163
        %p310 = scmp.lt.s32.totalorder %s25, 1
        %s311 = scalar_select %p310, %s25, 1
        %s312 = smul.addr %s311, 4
        %s313 = scalar_lea.vmem %s6, %s312
        %p314 = pneg %p192
        %p315 = pneg %p189
        %p316 = pneg %p220
        %p317 = pneg %p217
        %s318 = sand.u32 %s207, 1
        %s319 = scalar_lea.sflag [#allocation3], %s318
        %s320 = sand.u32 %s207, 1
        %s321 = smul.addr %s320, 128
        %s322 = scalar_lea.vmem [#allocation2], %s321
        %s323 = smul.u32 16, %s26
        %p324 = scmp.lt.s32.totalorder %s25, 1
        %s325 = scalar_select %p324, %s25, 1
        %p326 = scmp.lt.s32.totalorder %s323, 31
        %s327 = scalar_select %p326, %s323, 31
        %s328 = smul.addr %s325, 32
        %s329 = sadd.s32 %s327, %s328
        %s330 = smul.addr %s329, 8
        %s331 = scalar_lea.vmem %s0, %s330
        %s332 = smul.u32 16, %s26
        %p333 = scmp.lt.s32.totalorder %s25, 1
        %s334 = scalar_select %p333, %s25, 1
        %s335 = smul.addr %s334, 4
        %s336 = scalar_lea.vmem %s5, %s335
        %p337 = scmp.lt.s32.totalorder %s25, 1
        %s338 = scalar_select %p337, %s25, 1
        %s339 = smul.addr %s338, 4
        %s340 = scalar_lea.vmem %s6, %s339
        %s341 = smul.u32 16, %s26
        %v342 = vld [vmem:[%s331] sm:$0xff]
        %v343 = vld [vmem:[%s331 + $0x8] sm:$0xff]
        %v344 = vld [vmem:[%s331 + $0x10] sm:$0xff]
        %v345 = vld [vmem:[%s331 + $0x18] sm:$0xff]
        %v346 = vld [vmem:[%s331 + $0x20] sm:$0xff]
        %v347 = vld [vmem:[%s331 + $0x28] sm:$0xff]
        %v348 = vld [vmem:[%s331 + $0x30] sm:$0xff]
        %v349 = vld [vmem:[%s331 + $0x38] sm:$0xff]
        %v350 = vld [vmem:[%s331 + $0x40] sm:$0xff]
        %v351 = vld [vmem:[%s331 + $0x48] sm:$0xff]
        %v352 = vld [vmem:[%s331 + $0x50] sm:$0xff]
        %v353 = vld [vmem:[%s331 + $0x58] sm:$0xff]
        %v354 = vld [vmem:[%s331 + $0x60] sm:$0xff]
        %v355 = vld [vmem:[%s331 + $0x68] sm:$0xff]
        %v356 = vld [vmem:[%s331 + $0x70] sm:$0xff]
        %v357 = vld [vmem:[%s331 + $0x78] sm:$0xff]
        %v358 = vld [vmem:[%s1] sm:$0x7]
        %v359 = vld [vmem:[%s336] sm:$0x7]
        %v360 = vld [vmem:[%s340] sm:$0x7]
        %v361 = vld [vmem:[%s2] sm:$0x1]
        %363 = vset.pattern.permute.xlu0 0
        %364 = vperm.xlu0 %363, %v342
        %v365 = vpop.permute.xlu0 %364
        %368 = vset.pattern.permute.xlu0 0
        %369 = vperm.xlu0 %368, %v343
        %v370 = vpop.permute.xlu0 %369
        %373 = vset.pattern.permute.xlu0 0
        %374 = vperm.xlu0 %373, %v344
        %v375 = vpop.permute.xlu0 %374
        %378 = vset.pattern.permute.xlu0 0
        %379 = vperm.xlu0 %378, %v345
        %v380 = vpop.permute.xlu0 %379
        %383 = vset.pattern.permute.xlu0 0
        %384 = vperm.xlu0 %383, %v346
        %v385 = vpop.permute.xlu0 %384
        %388 = vset.pattern.permute.xlu0 0
        %389 = vperm.xlu0 %388, %v347
        %v390 = vpop.permute.xlu0 %389
        %393 = vset.pattern.permute.xlu0 0
        %394 = vperm.xlu0 %393, %v348
        %v395 = vpop.permute.xlu0 %394
        %398 = vset.pattern.permute.xlu0 0
        %399 = vperm.xlu0 %398, %v349
        %v400 = vpop.permute.xlu0 %399
        %403 = vset.pattern.permute.xlu0 0
        %404 = vperm.xlu0 %403, %v350
        %v405 = vpop.permute.xlu0 %404
        %408 = vset.pattern.permute.xlu0 0
        %409 = vperm.xlu0 %408, %v351
        %v410 = vpop.permute.xlu0 %409
        %413 = vset.pattern.permute.xlu0 0
        %414 = vperm.xlu0 %413, %v352
        %v415 = vpop.permute.xlu0 %414
        %418 = vset.pattern.permute.xlu0 0
        %419 = vperm.xlu0 %418, %v353
        %v420 = vpop.permute.xlu0 %419
        %423 = vset.pattern.permute.xlu0 0
        %424 = vperm.xlu0 %423, %v354
        %v425 = vpop.permute.xlu0 %424
        %428 = vset.pattern.permute.xlu0 0
        %429 = vperm.xlu0 %428, %v355
        %v430 = vpop.permute.xlu0 %429
        %433 = vset.pattern.permute.xlu0 0
        %434 = vperm.xlu0 %433, %v356
        %v435 = vpop.permute.xlu0 %434
        %438 = vset.pattern.permute.xlu0 0
        %439 = vperm.xlu0 %438, %v357
        %v440 = vpop.permute.xlu0 %439
        %v442 = vlaneseq
        %v443 = vshrl.u32 %v442, 7
        %v444 = vsub.s32 0, %v443
        %v445 = vrot.slane %v358, %v444
        %v446 = vmul.f32 %v365, %v445
        %v447 = vmul.f32 %v370, %v445
        %v448 = vmul.f32 %v375, %v445
        %v449 = vmul.f32 %v380, %v445
        %v450 = vmul.f32 %v385, %v445
        %v451 = vmul.f32 %v390, %v445
        %v452 = vmul.f32 %v395, %v445
        %v453 = vmul.f32 %v400, %v445
        %v454 = vmul.f32 %v405, %v445
        %v455 = vmul.f32 %v410, %v445
        %v456 = vmul.f32 %v415, %v445
        %v457 = vmul.f32 %v420, %v445
        %v458 = vmul.f32 %v425, %v445
        %v459 = vmul.f32 %v430, %v445
        %v460 = vmul.f32 %v435, %v445
        %v461 = vmul.f32 %v440, %v445
        %v463 = vlaneseq
        %v464 = vshrl.u32 %v463, 7
        %v465 = vsub.s32 0, %v464
        %v466 = vrot.slane %v361, %v465
        %v468 = vadd.f32 %v466, %v446
        %v469 = vadd.f32 %v466, %v447
        %v470 = vadd.f32 %v466, %v448
        %v471 = vadd.f32 %v466, %v449
        %v472 = vadd.f32 %v466, %v450
        %v473 = vadd.f32 %v466, %v451
        %v474 = vadd.f32 %v466, %v452
        %v475 = vadd.f32 %v466, %v453
        %v476 = vadd.f32 %v466, %v454
        %v477 = vadd.f32 %v466, %v455
        %v478 = vadd.f32 %v466, %v456
        %v479 = vadd.f32 %v466, %v457
        %v480 = vadd.f32 %v466, %v458
        %v481 = vadd.f32 %v466, %v459
        %v482 = vadd.f32 %v466, %v460
        %v483 = vadd.f32 %v466, %v461
        %484 = vset.pattern.permute.xlu0 1
        %485 = vperm.xlu0 %484, %v342
        %v486 = vpop.permute.xlu0 %485
        %488 = vset.pattern.permute.xlu0 1
        %489 = vperm.xlu0 %488, %v343
        %v490 = vpop.permute.xlu0 %489
        %492 = vset.pattern.permute.xlu0 1
        %493 = vperm.xlu0 %492, %v344
        %v494 = vpop.permute.xlu0 %493
        %496 = vset.pattern.permute.xlu0 1
        %497 = vperm.xlu0 %496, %v345
        %v498 = vpop.permute.xlu0 %497
        %500 = vset.pattern.permute.xlu0 1
        %501 = vperm.xlu0 %500, %v346
        %v502 = vpop.permute.xlu0 %501
        %504 = vset.pattern.permute.xlu0 1
        %505 = vperm.xlu0 %504, %v347
        %v506 = vpop.permute.xlu0 %505
        %508 = vset.pattern.permute.xlu0 1
        %509 = vperm.xlu0 %508, %v348
        %v510 = vpop.permute.xlu0 %509
        %512 = vset.pattern.permute.xlu0 1
        %513 = vperm.xlu0 %512, %v349
        %v514 = vpop.permute.xlu0 %513
        %516 = vset.pattern.permute.xlu0 1
        %517 = vperm.xlu0 %516, %v350
        %v518 = vpop.permute.xlu0 %517
        %520 = vset.pattern.permute.xlu0 1
        %521 = vperm.xlu0 %520, %v351
        %v522 = vpop.permute.xlu0 %521
        %524 = vset.pattern.permute.xlu0 1
        %525 = vperm.xlu0 %524, %v352
        %v526 = vpop.permute.xlu0 %525
        %528 = vset.pattern.permute.xlu0 1
        %529 = vperm.xlu0 %528, %v353
        %v530 = vpop.permute.xlu0 %529
        %532 = vset.pattern.permute.xlu0 1
        %533 = vperm.xlu0 %532, %v354
        %v534 = vpop.permute.xlu0 %533
        %536 = vset.pattern.permute.xlu0 1
        %537 = vperm.xlu0 %536, %v355
        %v538 = vpop.permute.xlu0 %537
        %540 = vset.pattern.permute.xlu0 1
        %541 = vperm.xlu0 %540, %v356
        %v542 = vpop.permute.xlu0 %541
        %544 = vset.pattern.permute.xlu0 1
        %545 = vperm.xlu0 %544, %v357
        %v546 = vpop.permute.xlu0 %545
        %v548 = vlaneseq
        %v549 = vshrl.u32 %v548, 7
        %v550 = vsub.s32 1, %v549
        %v551 = vrot.slane %v358, %v550
        %v552 = vmul.f32 %v486, %v551
        %v553 = vmul.f32 %v490, %v551
        %v554 = vmul.f32 %v494, %v551
        %v555 = vmul.f32 %v498, %v551
        %v556 = vmul.f32 %v502, %v551
        %v557 = vmul.f32 %v506, %v551
        %v558 = vmul.f32 %v510, %v551
        %v559 = vmul.f32 %v514, %v551
        %v560 = vmul.f32 %v518, %v551
        %v561 = vmul.f32 %v522, %v551
        %v562 = vmul.f32 %v526, %v551
        %v563 = vmul.f32 %v530, %v551
        %v564 = vmul.f32 %v534, %v551
        %v565 = vmul.f32 %v538, %v551
        %v566 = vmul.f32 %v542, %v551
        %v567 = vmul.f32 %v546, %v551
        %v568 = vadd.f32 %v468, %v552
        %v569 = vadd.f32 %v469, %v553
        %v570 = vadd.f32 %v470, %v554
        %v571 = vadd.f32 %v471, %v555
        %v572 = vadd.f32 %v472, %v556
        %v573 = vadd.f32 %v473, %v557
        %v574 = vadd.f32 %v474, %v558
        %v575 = vadd.f32 %v475, %v559
        %v576 = vadd.f32 %v476, %v560
        %v577 = vadd.f32 %v477, %v561
        %v578 = vadd.f32 %v478, %v562
        %v579 = vadd.f32 %v479, %v563
        %v580 = vadd.f32 %v480, %v564
        %v581 = vadd.f32 %v481, %v565
        %v582 = vadd.f32 %v482, %v566
        %v583 = vadd.f32 %v483, %v567
        %584 = vset.pattern.permute.xlu0 2
        %585 = vperm.xlu0 %584, %v342
        %v586 = vpop.permute.xlu0 %585
        %588 = vset.pattern.permute.xlu0 2
        %589 = vperm.xlu0 %588, %v343
        %v590 = vpop.permute.xlu0 %589
        %592 = vset.pattern.permute.xlu0 2
        %593 = vperm.xlu0 %592, %v344
        %v594 = vpop.permute.xlu0 %593
        %596 = vset.pattern.permute.xlu0 2
        %597 = vperm.xlu0 %596, %v345
        %v598 = vpop.permute.xlu0 %597
        %600 = vset.pattern.permute.xlu0 2
        %601 = vperm.xlu0 %600, %v346
        %v602 = vpop.permute.xlu0 %601
        %604 = vset.pattern.permute.xlu0 2
        %605 = vperm.xlu0 %604, %v347
        %v606 = vpop.permute.xlu0 %605
        %608 = vset.pattern.permute.xlu0 2
        %609 = vperm.xlu0 %608, %v348
        %v610 = vpop.permute.xlu0 %609
        %612 = vset.pattern.permute.xlu0 2
        %613 = vperm.xlu0 %612, %v349
        %v614 = vpop.permute.xlu0 %613
        %616 = vset.pattern.permute.xlu0 2
        %617 = vperm.xlu0 %616, %v350
        %v618 = vpop.permute.xlu0 %617
        %620 = vset.pattern.permute.xlu0 2
        %621 = vperm.xlu0 %620, %v351
        %v622 = vpop.permute.xlu0 %621
        %624 = vset.pattern.permute.xlu0 2
        %625 = vperm.xlu0 %624, %v352
        %v626 = vpop.permute.xlu0 %625
        %628 = vset.pattern.permute.xlu0 2
        %629 = vperm.xlu0 %628, %v353
        %v630 = vpop.permute.xlu0 %629
        %632 = vset.pattern.permute.xlu0 2
        %633 = vperm.xlu0 %632, %v354
        %v634 = vpop.permute.xlu0 %633
        %636 = vset.pattern.permute.xlu0 2
        %637 = vperm.xlu0 %636, %v355
        %v638 = vpop.permute.xlu0 %637
        %640 = vset.pattern.permute.xlu0 2
        %641 = vperm.xlu0 %640, %v356
        %v642 = vpop.permute.xlu0 %641
        %644 = vset.pattern.permute.xlu0 2
        %645 = vperm.xlu0 %644, %v357
        %v646 = vpop.permute.xlu0 %645
        %v648 = vlaneseq
        %v649 = vshrl.u32 %v648, 7
        %v650 = vsub.s32 2, %v649
        %v651 = vrot.slane %v358, %v650
        %v652 = vmul.f32 %v586, %v651
        %v653 = vmul.f32 %v590, %v651
        %v654 = vmul.f32 %v594, %v651
        %v655 = vmul.f32 %v598, %v651
        %v656 = vmul.f32 %v602, %v651
        %v657 = vmul.f32 %v606, %v651
        %v658 = vmul.f32 %v610, %v651
        %v659 = vmul.f32 %v614, %v651
        %v660 = vmul.f32 %v618, %v651
        %v661 = vmul.f32 %v622, %v651
        %v662 = vmul.f32 %v626, %v651
        %v663 = vmul.f32 %v630, %v651
        %v664 = vmul.f32 %v634, %v651
        %v665 = vmul.f32 %v638, %v651
        %v666 = vmul.f32 %v642, %v651
        %v667 = vmul.f32 %v646, %v651
        %v668 = vadd.f32 %v568, %v652
        %v669 = vadd.f32 %v569, %v653
        %v670 = vadd.f32 %v570, %v654
        %v671 = vadd.f32 %v571, %v655
        %v672 = vadd.f32 %v572, %v656
        %v673 = vadd.f32 %v573, %v657
        %v674 = vadd.f32 %v574, %v658
        %v675 = vadd.f32 %v575, %v659
        %v676 = vadd.f32 %v576, %v660
        %v677 = vadd.f32 %v577, %v661
        %v678 = vadd.f32 %v578, %v662
        %v679 = vadd.f32 %v579, %v663
        %v680 = vadd.f32 %v580, %v664
        %v681 = vadd.f32 %v581, %v665
        %v682 = vadd.f32 %v582, %v666
        %v683 = vadd.f32 %v583, %v667
        %v684 = vlaneseq
        %v685 = vshrl.u32 %v684, 7
        %v686 = vsub.s32 0, %v685
        %v687 = vrot.slane %v359, %v686
        %v688 = vmul.f32 %v687, %v668
        %v689 = vmul.f32 %v687, %v669
        %v690 = vmul.f32 %v687, %v670
        %v691 = vmul.f32 %v687, %v671
        %v692 = vmul.f32 %v687, %v672
        %v693 = vmul.f32 %v687, %v673
        %v694 = vmul.f32 %v687, %v674
        %v695 = vmul.f32 %v687, %v675
        %v696 = vmul.f32 %v687, %v676
        %v697 = vmul.f32 %v687, %v677
        %v698 = vmul.f32 %v687, %v678
        %v699 = vmul.f32 %v687, %v679
        %v700 = vmul.f32 %v687, %v680
        %v701 = vmul.f32 %v687, %v681
        %v702 = vmul.f32 %v687, %v682
        %v703 = vmul.f32 %v687, %v683
        %v704 = vlaneseq
        %v705 = vshrl.u32 %v704, 7
        %v706 = vsub.s32 0, %v705
        %v707 = vrot.slane %v360, %v706
        %v708 = vadd.f32 %v688, %v707
        %v709 = vadd.f32 %v689, %v707
        %v710 = vadd.f32 %v690, %v707
        %v711 = vadd.f32 %v691, %v707
        %v712 = vadd.f32 %v692, %v707
        %v713 = vadd.f32 %v693, %v707
        %v714 = vadd.f32 %v694, %v707
        %v715 = vadd.f32 %v695, %v707
        %v716 = vadd.f32 %v696, %v707
        %v717 = vadd.f32 %v697, %v707
        %v718 = vadd.f32 %v698, %v707
        %v719 = vadd.f32 %v699, %v707
        %v720 = vadd.f32 %v700, %v707
        %v721 = vadd.f32 %v701, %v707
        %v722 = vadd.f32 %v702, %v707
        %v723 = vadd.f32 %v703, %v707
        %v724 = vand.u32 2147483647, %v708
        %vm725 = vcmp.le.f32.partialorder %v724, 0.7853982
        %vm726 = vcmp.lt.s32.totalorder %v708, 0
        %v727 = vand.u32 %v708, 2139095040
        %v728 = vshrl.u32 %v727, 23
        %v729 = vsub.s32 %v728, 127
        %v730 = vand.u32 2147483647, %v708
        %v731 = vand.u32 %v730, 8388607
        %v732 = vor.u32 %v731, 8388608
        %v733 = vsub.s32 0, %v732
        %v734 = vadd.s32 %v729, 1
        %vm735 = vcmp.gt.s32.totalorder %v734, 0
        %v736 = vsel %vm735, %v734, 0
        %v737 = vshrl.u32 %v736, 5
        %v738 = vand.u32 %v736, 31
        %v739 = vsub.s32 32, %v738
        %v740 = vshrl.u32 683565275, %v739
        %v741 = vshll.u32 683565275, %v738
        %v742 = vshrl.u32 2475754826, %v739
        %v743 = vor.u32 %v741, %v742
        %v744 = vshll.u32 2475754826, %v738
        %v745 = vshrl.u32 2131351028, %v739
        %v746 = vor.u32 %v744, %v745
        %v747 = vshll.u32 2131351028, %v738
        %v748 = vshrl.u32 2102212464, %v739
        %v749 = vor.u32 %v747, %v748
        %v750 = vshll.u32 2102212464, %v738
        %v751 = vshrl.u32 920167782, %v739
        %v752 = vor.u32 %v750, %v751
        %v753 = vshll.u32 920167782, %v738
        %v754 = vshrl.u32 1326507024, %v739
        %v755 = vor.u32 %v753, %v754
        %vm756 = vcmp.lt.s32.totalorder %v737, 1
        %vm757 = vcmp.lt.s32.totalorder %v737, 2
        %vm758 = vcmp.lt.s32.totalorder %v737, 3
        %vm759 = vcmp.lt.s32.totalorder %v737, 4
        %v760 = vsel %vm756, %v740, %v743
        %v761 = vsel %vm759, %v749, 2102212464
        %v762 = vsel %vm758, %v746, %v761
        %v763 = vsel %vm757, %v760, %v762
        %v764 = vsel %vm756, %v743, %v746
        %v765 = vsel %vm759, %v752, 920167782
        %v766 = vsel %vm758, %v749, %v765
        %v767 = vsel %vm757, %v764, %v766
        %v768 = vsel %vm756, %v746, %v749
        %v769 = vsel %vm759, %v755, 1326507024
        %v770 = vsel %vm758, %v752, %v769
        %v771 = vsel %vm757, %v768, %v770
        %v772 = vshll.u32 %v732, 8
        %v773 = vmul.u32.u64.compose %v772, %v771
        %v774 = vextract.low.u32 %v773
        %v775 = vextract.high.u32 %v773
        %v776 = vmul.u32.u64.compose %v772, %v767
        %v777 = vextract.low.u32 %v776
        %v778 = vextract.high.u32 %v776
        %v779 = vmul.u32 %v772, %v763
        %v780 = vadd.s32 %v775, %v777
        %vm781 = vc.u32 %v775, %v777
        %v782 = vadd.s32 %v778, 1
        %v783 = vsel %vm781, %v782, %v778
        %v784 = vadd.s32 %v779, %v783
        %v785 = vadd.s32 %v784, 536870912
        %v786 = vshrl.u32 %v785, 30
        %v787 = vshll.u32 %v786, 30
        %v788 = vsub.s32 %v784, %v787
        %vm789 = vcmp.lt.s32.totalorder %v788, 0
        %v790 = vsub.s32 0, %v788
        %v791 = vsel %vm789, %v790, %v788
        %v792 = vclz %v791
        %v793 = vsub.s32 %v792, 2
        %vm794 = vcmp.gt.s32.totalorder 0, %v793
        %v795 = vsel %vm794, 0, %v793
        %v796 = vsub.s32 32, %v795
        %v797 = vshll.u32 %v788, %v795
        %v798 = vshrl.u32 %v780, %v796
        %v799 = vor.u32 %v797, %v798
        %v800 = vsub.s32 4294967266, %v795
        %v801 = vadd.s32 %v800, 127
        %v802 = vshll.u32 %v801, 23
        %v803 = vor.u32 4788187, %v802
        %v804 = vand.u32 2147483647, %v803
        %v806 = vcvt.s32.f32 %v799
        %v807 = vmul.f32 %v806, %v804
        %v808 = vxor.u32 %v807, 2147483648
        %v809 = vsel %vm726, %v808, %v807
        %v810 = vsub.s32 4, %v786
        %v811 = vsel %vm726, %v810, %v786
        %v812 = vsel %vm725, %v708, %v809
        %v813 = vsel %vm725, 0, %v811
        %v814 = vcosq.f32.pop %v812
        %v815 = vsinq.f32.pop %v812
        %vm816 = vweird.f32 %v708
        %v817 = vadd.s32 %v813, 3
        %v818 = vand.u32 %v817, 3
        %vm819 = vcmp.lt.s32.totalorder %v818, 2
        %vm820 = vcmp.eq.s32.totalorder %v818, 0
        %v821 = vxor.u32 %v815, 2147483648
        %v822 = vsel %vm820, %v814, %v821
        %vm823 = vcmp.eq.s32.totalorder %v818, 2
        %v824 = vxor.u32 %v814, 2147483648
        %v825 = vsel %vm823, %v824, %v815
        %v826 = vsel %vm819, %v822, %v825
        %v827 = vsel %vm816, nan, %v826
        %v828 = vand.u32 2147483647, %v709
        %vm829 = vcmp.le.f32.partialorder %v828, 0.7853982
        %vm830 = vcmp.lt.s32.totalorder %v709, 0
        %v831 = vand.u32 %v709, 2139095040
        %v832 = vshrl.u32 %v831, 23
        %v833 = vsub.s32 %v832, 127
        %v834 = vand.u32 2147483647, %v709
        %v835 = vand.u32 %v834, 8388607
        %v836 = vor.u32 %v835, 8388608
        %v837 = vsub.s32 0, %v836
        %v838 = vadd.s32 %v833, 1
        %vm839 = vcmp.gt.s32.totalorder %v838, 0
        %v840 = vsel %vm839, %v838, 0
        %v841 = vshrl.u32 %v840, 5
        %v842 = vand.u32 %v840, 31
        %v843 = vsub.s32 32, %v842
        %v844 = vshrl.u32 683565275, %v843
        %v845 = vshll.u32 683565275, %v842
        %v846 = vshrl.u32 2475754826, %v843
        %v847 = vor.u32 %v845, %v846
        %v848 = vshll.u32 2475754826, %v842
        %v849 = vshrl.u32 2131351028, %v843
        %v850 = vor.u32 %v848, %v849
        %v851 = vshll.u32 2131351028, %v842
        %v852 = vshrl.u32 2102212464, %v843
        %v853 = vor.u32 %v851, %v852
        %v854 = vshll.u32 2102212464, %v842
        %v855 = vshrl.u32 920167782, %v843
        %v856 = vor.u32 %v854, %v855
        %v857 = vshll.u32 920167782, %v842
        %v858 = vshrl.u32 1326507024, %v843
        %v859 = vor.u32 %v857, %v858
        %vm860 = vcmp.lt.s32.totalorder %v841, 1
        %vm861 = vcmp.lt.s32.totalorder %v841, 2
        %vm862 = vcmp.lt.s32.totalorder %v841, 3
        %vm863 = vcmp.lt.s32.totalorder %v841, 4
        %v864 = vsel %vm860, %v844, %v847
        %v865 = vsel %vm863, %v853, 2102212464
        %v866 = vsel %vm862, %v850, %v865
        %v867 = vsel %vm861, %v864, %v866
        %v868 = vsel %vm860, %v847, %v850
        %v869 = vsel %vm863, %v856, 920167782
        %v870 = vsel %vm862, %v853, %v869
        %v871 = vsel %vm861, %v868, %v870
        %v872 = vsel %vm860, %v850, %v853
        %v873 = vsel %vm863, %v859, 1326507024
        %v874 = vsel %vm862, %v856, %v873
        %v875 = vsel %vm861, %v872, %v874
        %v876 = vshll.u32 %v836, 8
        %v877 = vmul.u32.u64.compose %v876, %v875
        %v878 = vextract.low.u32 %v877
        %v879 = vextract.high.u32 %v877
        %v880 = vmul.u32.u64.compose %v876, %v871
        %v881 = vextract.low.u32 %v880
        %v882 = vextract.high.u32 %v880
        %v883 = vmul.u32 %v876, %v867
        %v884 = vadd.s32 %v879, %v881
        %vm885 = vc.u32 %v879, %v881
        %v886 = vadd.s32 %v882, 1
        %v887 = vsel %vm885, %v886, %v882
        %v888 = vadd.s32 %v883, %v887
        %v889 = vadd.s32 %v888, 536870912
        %v890 = vshrl.u32 %v889, 30
        %v891 = vshll.u32 %v890, 30
        %v892 = vsub.s32 %v888, %v891
        %vm893 = vcmp.lt.s32.totalorder %v892, 0
        %v894 = vsub.s32 0, %v892
        %v895 = vsel %vm893, %v894, %v892
        %v896 = vclz %v895
        %v897 = vsub.s32 %v896, 2
        %vm898 = vcmp.gt.s32.totalorder 0, %v897
        %v899 = vsel %vm898, 0, %v897
        %v900 = vsub.s32 32, %v899
        %v901 = vshll.u32 %v892, %v899
        %v902 = vshrl.u32 %v884, %v900
        %v903 = vor.u32 %v901, %v902
        %v904 = vsub.s32 4294967266, %v899
        %v905 = vadd.s32 %v904, 127
        %v906 = vshll.u32 %v905, 23
        %v907 = vor.u32 4788187, %v906
        %v908 = vand.u32 2147483647, %v907
        %v910 = vcvt.s32.f32 %v903
        %v911 = vmul.f32 %v910, %v908
        %v912 = vxor.u32 %v911, 2147483648
        %v913 = vsel %vm830, %v912, %v911
        %v914 = vsub.s32 4, %v890
        %v915 = vsel %vm830, %v914, %v890
        %v916 = vsel %vm829, %v709, %v913
        %v917 = vsel %vm829, 0, %v915
        %v918 = vcosq.f32.pop %v916
        %v919 = vsinq.f32.pop %v916
        %vm920 = vweird.f32 %v709
        %v921 = vadd.s32 %v917, 3
        %v922 = vand.u32 %v921, 3
        %vm923 = vcmp.lt.s32.totalorder %v922, 2
        %vm924 = vcmp.eq.s32.totalorder %v922, 0
        %v925 = vxor.u32 %v919, 2147483648
        %v926 = vsel %vm924, %v918, %v925
        %vm927 = vcmp.eq.s32.totalorder %v922, 2
        %v928 = vxor.u32 %v918, 2147483648
        %v929 = vsel %vm927, %v928, %v919
        %v930 = vsel %vm923, %v926, %v929
        %v931 = vsel %vm920, nan, %v930
        %v932 = vand.u32 2147483647, %v710
        %vm933 = vcmp.le.f32.partialorder %v932, 0.7853982
        %vm934 = vcmp.lt.s32.totalorder %v710, 0
        %v935 = vand.u32 %v710, 2139095040
        %v936 = vshrl.u32 %v935, 23
        %v937 = vsub.s32 %v936, 127
        %v938 = vand.u32 2147483647, %v710
        %v939 = vand.u32 %v938, 8388607
        %v940 = vor.u32 %v939, 8388608
        %v941 = vsub.s32 0, %v940
        %v942 = vadd.s32 %v937, 1
        %vm943 = vcmp.gt.s32.totalorder %v942, 0
        %v944 = vsel %vm943, %v942, 0
        %v945 = vshrl.u32 %v944, 5
        %v946 = vand.u32 %v944, 31
        %v947 = vsub.s32 32, %v946
        %v948 = vshrl.u32 683565275, %v947
        %v949 = vshll.u32 683565275, %v946
        %v950 = vshrl.u32 2475754826, %v947
        %v951 = vor.u32 %v949, %v950
        %v952 = vshll.u32 2475754826, %v946
        %v953 = vshrl.u32 2131351028, %v947
        %v954 = vor.u32 %v952, %v953
        %v955 = vshll.u32 2131351028, %v946
        %v956 = vshrl.u32 2102212464, %v947
        %v957 = vor.u32 %v955, %v956
        %v958 = vshll.u32 2102212464, %v946
        %v959 = vshrl.u32 920167782, %v947
        %v960 = vor.u32 %v958, %v959
        %v961 = vshll.u32 920167782, %v946
        %v962 = vshrl.u32 1326507024, %v947
        %v963 = vor.u32 %v961, %v962
        %vm964 = vcmp.lt.s32.totalorder %v945, 1
        %vm965 = vcmp.lt.s32.totalorder %v945, 2
        %vm966 = vcmp.lt.s32.totalorder %v945, 3
        %vm967 = vcmp.lt.s32.totalorder %v945, 4
        %v968 = vsel %vm964, %v948, %v951
        %v969 = vsel %vm967, %v957, 2102212464
        %v970 = vsel %vm966, %v954, %v969
        %v971 = vsel %vm965, %v968, %v970
        %v972 = vsel %vm964, %v951, %v954
        %v973 = vsel %vm967, %v960, 920167782
        %v974 = vsel %vm966, %v957, %v973
        %v975 = vsel %vm965, %v972, %v974
        %v976 = vsel %vm964, %v954, %v957
        %v977 = vsel %vm967, %v963, 1326507024
        %v978 = vsel %vm966, %v960, %v977
        %v979 = vsel %vm965, %v976, %v978
        %v980 = vshll.u32 %v940, 8
        %v981 = vmul.u32.u64.compose %v980, %v979
        %v982 = vextract.low.u32 %v981
        %v983 = vextract.high.u32 %v981
        %v984 = vmul.u32.u64.compose %v980, %v975
        %v985 = vextract.low.u32 %v984
        %v986 = vextract.high.u32 %v984
        %v987 = vmul.u32 %v980, %v971
        %v988 = vadd.s32 %v983, %v985
        %vm989 = vc.u32 %v983, %v985
        %v990 = vadd.s32 %v986, 1
        %v991 = vsel %vm989, %v990, %v986
        %v992 = vadd.s32 %v987, %v991
        %v993 = vadd.s32 %v992, 536870912
        %v994 = vshrl.u32 %v993, 30
        %v995 = vshll.u32 %v994, 30
        %v996 = vsub.s32 %v992, %v995
        %vm997 = vcmp.lt.s32.totalorder %v996, 0
        %v998 = vsub.s32 0, %v996
        %v999 = vsel %vm997, %v998, %v996
        %v1000 = vclz %v999
        %v1001 = vsub.s32 %v1000, 2
        %vm1002 = vcmp.gt.s32.totalorder 0, %v1001
        %v1003 = vsel %vm1002, 0, %v1001
        %v1004 = vsub.s32 32, %v1003
        %v1005 = vshll.u32 %v996, %v1003
        %v1006 = vshrl.u32 %v988, %v1004
        %v1007 = vor.u32 %v1005, %v1006
        %v1008 = vsub.s32 4294967266, %v1003
        %v1009 = vadd.s32 %v1008, 127
        %v1010 = vshll.u32 %v1009, 23
        %v1011 = vor.u32 4788187, %v1010
        %v1012 = vand.u32 2147483647, %v1011
        %v1014 = vcvt.s32.f32 %v1007
        %v1015 = vmul.f32 %v1014, %v1012
        %v1016 = vxor.u32 %v1015, 2147483648
        %v1017 = vsel %vm934, %v1016, %v1015
        %v1018 = vsub.s32 4, %v994
        %v1019 = vsel %vm934, %v1018, %v994
        %v1020 = vsel %vm933, %v710, %v1017
        %v1021 = vsel %vm933, 0, %v1019
        %v1022 = vcosq.f32.pop %v1020
        %v1023 = vsinq.f32.pop %v1020
        %vm1024 = vweird.f32 %v710
        %v1025 = vadd.s32 %v1021, 3
        %v1026 = vand.u32 %v1025, 3
        %vm1027 = vcmp.lt.s32.totalorder %v1026, 2
        %vm1028 = vcmp.eq.s32.totalorder %v1026, 0
        %v1029 = vxor.u32 %v1023, 2147483648
        %v1030 = vsel %vm1028, %v1022, %v1029
        %vm1031 = vcmp.eq.s32.totalorder %v1026, 2
        %v1032 = vxor.u32 %v1022, 2147483648
        %v1033 = vsel %vm1031, %v1032, %v1023
        %v1034 = vsel %vm1027, %v1030, %v1033
        %v1035 = vsel %vm1024, nan, %v1034
        %v1036 = vand.u32 2147483647, %v711
        %vm1037 = vcmp.le.f32.partialorder %v1036, 0.7853982
        %vm1038 = vcmp.lt.s32.totalorder %v711, 0
        %v1039 = vand.u32 %v711, 2139095040
        %v1040 = vshrl.u32 %v1039, 23
        %v1041 = vsub.s32 %v1040, 127
        %v1042 = vand.u32 2147483647, %v711
        %v1043 = vand.u32 %v1042, 8388607
        %v1044 = vor.u32 %v1043, 8388608
        %v1045 = vsub.s32 0, %v1044
        %v1046 = vadd.s32 %v1041, 1
        %vm1047 = vcmp.gt.s32.totalorder %v1046, 0
        %v1048 = vsel %vm1047, %v1046, 0
        %v1049 = vshrl.u32 %v1048, 5
        %v1050 = vand.u32 %v1048, 31
        %v1051 = vsub.s32 32, %v1050
        %v1052 = vshrl.u32 683565275, %v1051
        %v1053 = vshll.u32 683565275, %v1050
        %v1054 = vshrl.u32 2475754826, %v1051
        %v1055 = vor.u32 %v1053, %v1054
        %v1056 = vshll.u32 2475754826, %v1050
        %v1057 = vshrl.u32 2131351028, %v1051
        %v1058 = vor.u32 %v1056, %v1057
        %v1059 = vshll.u32 2131351028, %v1050
        %v1060 = vshrl.u32 2102212464, %v1051
        %v1061 = vor.u32 %v1059, %v1060
        %v1062 = vshll.u32 2102212464, %v1050
        %v1063 = vshrl.u32 920167782, %v1051
        %v1064 = vor.u32 %v1062, %v1063
        %v1065 = vshll.u32 920167782, %v1050
        %v1066 = vshrl.u32 1326507024, %v1051
        %v1067 = vor.u32 %v1065, %v1066
        %vm1068 = vcmp.lt.s32.totalorder %v1049, 1
        %vm1069 = vcmp.lt.s32.totalorder %v1049, 2
        %vm1070 = vcmp.lt.s32.totalorder %v1049, 3
        %vm1071 = vcmp.lt.s32.totalorder %v1049, 4
        %v1072 = vsel %vm1068, %v1052, %v1055
        %v1073 = vsel %vm1071, %v1061, 2102212464
        %v1074 = vsel %vm1070, %v1058, %v1073
        %v1075 = vsel %vm1069, %v1072, %v1074
        %v1076 = vsel %vm1068, %v1055, %v1058
        %v1077 = vsel %vm1071, %v1064, 920167782
        %v1078 = vsel %vm1070, %v1061, %v1077
        %v1079 = vsel %vm1069, %v1076, %v1078
        %v1080 = vsel %vm1068, %v1058, %v1061
        %v1081 = vsel %vm1071, %v1067, 1326507024
        %v1082 = vsel %vm1070, %v1064, %v1081
        %v1083 = vsel %vm1069, %v1080, %v1082
        %v1084 = vshll.u32 %v1044, 8
        %v1085 = vmul.u32.u64.compose %v1084, %v1083
        %v1086 = vextract.low.u32 %v1085
        %v1087 = vextract.high.u32 %v1085
        %v1088 = vmul.u32.u64.compose %v1084, %v1079
        %v1089 = vextract.low.u32 %v1088
        %v1090 = vextract.high.u32 %v1088
        %v1091 = vmul.u32 %v1084, %v1075
        %v1092 = vadd.s32 %v1087, %v1089
        %vm1093 = vc.u32 %v1087, %v1089
        %v1094 = vadd.s32 %v1090, 1
        %v1095 = vsel %vm1093, %v1094, %v1090
        %v1096 = vadd.s32 %v1091, %v1095
        %v1097 = vadd.s32 %v1096, 536870912
        %v1098 = vshrl.u32 %v1097, 30
        %v1099 = vshll.u32 %v1098, 30
        %v1100 = vsub.s32 %v1096, %v1099
        %vm1101 = vcmp.lt.s32.totalorder %v1100, 0
        %v1102 = vsub.s32 0, %v1100
        %v1103 = vsel %vm1101, %v1102, %v1100
        %v1104 = vclz %v1103
        %v1105 = vsub.s32 %v1104, 2
        %vm1106 = vcmp.gt.s32.totalorder 0, %v1105
        %v1107 = vsel %vm1106, 0, %v1105
        %v1108 = vsub.s32 32, %v1107
        %v1109 = vshll.u32 %v1100, %v1107
        %v1110 = vshrl.u32 %v1092, %v1108
        %v1111 = vor.u32 %v1109, %v1110
        %v1112 = vsub.s32 4294967266, %v1107
        %v1113 = vadd.s32 %v1112, 127
        %v1114 = vshll.u32 %v1113, 23
        %v1115 = vor.u32 4788187, %v1114
        %v1116 = vand.u32 2147483647, %v1115
        %v1118 = vcvt.s32.f32 %v1111
        %v1119 = vmul.f32 %v1118, %v1116
        %v1120 = vxor.u32 %v1119, 2147483648
        %v1121 = vsel %vm1038, %v1120, %v1119
        %v1122 = vsub.s32 4, %v1098
        %v1123 = vsel %vm1038, %v1122, %v1098
        %v1124 = vsel %vm1037, %v711, %v1121
        %v1125 = vsel %vm1037, 0, %v1123
        %v1126 = vcosq.f32.pop %v1124
        %v1127 = vsinq.f32.pop %v1124
        %vm1128 = vweird.f32 %v711
        %v1129 = vadd.s32 %v1125, 3
        %v1130 = vand.u32 %v1129, 3
        %vm1131 = vcmp.lt.s32.totalorder %v1130, 2
        %vm1132 = vcmp.eq.s32.totalorder %v1130, 0
        %v1133 = vxor.u32 %v1127, 2147483648
        %v1134 = vsel %vm1132, %v1126, %v1133
        %vm1135 = vcmp.eq.s32.totalorder %v1130, 2
        %v1136 = vxor.u32 %v1126, 2147483648
        %v1137 = vsel %vm1135, %v1136, %v1127
        %v1138 = vsel %vm1131, %v1134, %v1137
        %v1139 = vsel %vm1128, nan, %v1138
        %v1140 = vand.u32 2147483647, %v712
        %vm1141 = vcmp.le.f32.partialorder %v1140, 0.7853982
        %vm1142 = vcmp.lt.s32.totalorder %v712, 0
        %v1143 = vand.u32 %v712, 2139095040
        %v1144 = vshrl.u32 %v1143, 23
        %v1145 = vsub.s32 %v1144, 127
        %v1146 = vand.u32 2147483647, %v712
        %v1147 = vand.u32 %v1146, 8388607
        %v1148 = vor.u32 %v1147, 8388608
        %v1149 = vsub.s32 0, %v1148
        %v1150 = vadd.s32 %v1145, 1
        %vm1151 = vcmp.gt.s32.totalorder %v1150, 0
        %v1152 = vsel %vm1151, %v1150, 0
        %v1153 = vshrl.u32 %v1152, 5
        %v1154 = vand.u32 %v1152, 31
        %v1155 = vsub.s32 32, %v1154
        %v1156 = vshrl.u32 683565275, %v1155
        %v1157 = vshll.u32 683565275, %v1154
        %v1158 = vshrl.u32 2475754826, %v1155
        %v1159 = vor.u32 %v1157, %v1158
        %v1160 = vshll.u32 2475754826, %v1154
        %v1161 = vshrl.u32 2131351028, %v1155
        %v1162 = vor.u32 %v1160, %v1161
        %v1163 = vshll.u32 2131351028, %v1154
        %v1164 = vshrl.u32 2102212464, %v1155
        %v1165 = vor.u32 %v1163, %v1164
        %v1166 = vshll.u32 2102212464, %v1154
        %v1167 = vshrl.u32 920167782, %v1155
        %v1168 = vor.u32 %v1166, %v1167
        %v1169 = vshll.u32 920167782, %v1154
        %v1170 = vshrl.u32 1326507024, %v1155
        %v1171 = vor.u32 %v1169, %v1170
        %vm1172 = vcmp.lt.s32.totalorder %v1153, 1
        %vm1173 = vcmp.lt.s32.totalorder %v1153, 2
        %vm1174 = vcmp.lt.s32.totalorder %v1153, 3
        %vm1175 = vcmp.lt.s32.totalorder %v1153, 4
        %v1176 = vsel %vm1172, %v1156, %v1159
        %v1177 = vsel %vm1175, %v1165, 2102212464
        %v1178 = vsel %vm1174, %v1162, %v1177
        %v1179 = vsel %vm1173, %v1176, %v1178
        %v1180 = vsel %vm1172, %v1159, %v1162
        %v1181 = vsel %vm1175, %v1168, 920167782
        %v1182 = vsel %vm1174, %v1165, %v1181
        %v1183 = vsel %vm1173, %v1180, %v1182
        %v1184 = vsel %vm1172, %v1162, %v1165
        %v1185 = vsel %vm1175, %v1171, 1326507024
        %v1186 = vsel %vm1174, %v1168, %v1185
        %v1187 = vsel %vm1173, %v1184, %v1186
        %v1188 = vshll.u32 %v1148, 8
        %v1189 = vmul.u32.u64.compose %v1188, %v1187
        %v1190 = vextract.low.u32 %v1189
        %v1191 = vextract.high.u32 %v1189
        %v1192 = vmul.u32.u64.compose %v1188, %v1183
        %v1193 = vextract.low.u32 %v1192
        %v1194 = vextract.high.u32 %v1192
        %v1195 = vmul.u32 %v1188, %v1179
        %v1196 = vadd.s32 %v1191, %v1193
        %vm1197 = vc.u32 %v1191, %v1193
        %v1198 = vadd.s32 %v1194, 1
        %v1199 = vsel %vm1197, %v1198, %v1194
        %v1200 = vadd.s32 %v1195, %v1199
        %v1201 = vadd.s32 %v1200, 536870912
        %v1202 = vshrl.u32 %v1201, 30
        %v1203 = vshll.u32 %v1202, 30
        %v1204 = vsub.s32 %v1200, %v1203
        %vm1205 = vcmp.lt.s32.totalorder %v1204, 0
        %v1206 = vsub.s32 0, %v1204
        %v1207 = vsel %vm1205, %v1206, %v1204
        %v1208 = vclz %v1207
        %v1209 = vsub.s32 %v1208, 2
        %vm1210 = vcmp.gt.s32.totalorder 0, %v1209
        %v1211 = vsel %vm1210, 0, %v1209
        %v1212 = vsub.s32 32, %v1211
        %v1213 = vshll.u32 %v1204, %v1211
        %v1214 = vshrl.u32 %v1196, %v1212
        %v1215 = vor.u32 %v1213, %v1214
        %v1216 = vsub.s32 4294967266, %v1211
        %v1217 = vadd.s32 %v1216, 127
        %v1218 = vshll.u32 %v1217, 23
        %v1219 = vor.u32 4788187, %v1218
        %v1220 = vand.u32 2147483647, %v1219
        %v1222 = vcvt.s32.f32 %v1215
        %v1223 = vmul.f32 %v1222, %v1220
        %v1224 = vxor.u32 %v1223, 2147483648
        %v1225 = vsel %vm1142, %v1224, %v1223
        %v1226 = vsub.s32 4, %v1202
        %v1227 = vsel %vm1142, %v1226, %v1202
        %v1228 = vsel %vm1141, %v712, %v1225
        %v1229 = vsel %vm1141, 0, %v1227
        %v1230 = vcosq.f32.pop %v1228
        %v1231 = vsinq.f32.pop %v1228
        %vm1232 = vweird.f32 %v712
        %v1233 = vadd.s32 %v1229, 3
        %v1234 = vand.u32 %v1233, 3
        %vm1235 = vcmp.lt.s32.totalorder %v1234, 2
        %vm1236 = vcmp.eq.s32.totalorder %v1234, 0
        %v1237 = vxor.u32 %v1231, 2147483648
        %v1238 = vsel %vm1236, %v1230, %v1237
        %vm1239 = vcmp.eq.s32.totalorder %v1234, 2
        %v1240 = vxor.u32 %v1230, 2147483648
        %v1241 = vsel %vm1239, %v1240, %v1231
        %v1242 = vsel %vm1235, %v1238, %v1241
        %v1243 = vsel %vm1232, nan, %v1242
        %v1244 = vand.u32 2147483647, %v713
        %vm1245 = vcmp.le.f32.partialorder %v1244, 0.7853982
        %vm1246 = vcmp.lt.s32.totalorder %v713, 0
        %v1247 = vand.u32 %v713, 2139095040
        %v1248 = vshrl.u32 %v1247, 23
        %v1249 = vsub.s32 %v1248, 127
        %v1250 = vand.u32 2147483647, %v713
        %v1251 = vand.u32 %v1250, 8388607
        %v1252 = vor.u32 %v1251, 8388608
        %v1253 = vsub.s32 0, %v1252
        %v1254 = vadd.s32 %v1249, 1
        %vm1255 = vcmp.gt.s32.totalorder %v1254, 0
        %v1256 = vsel %vm1255, %v1254, 0
        %v1257 = vshrl.u32 %v1256, 5
        %v1258 = vand.u32 %v1256, 31
        %v1259 = vsub.s32 32, %v1258
        %v1260 = vshrl.u32 683565275, %v1259
        %v1261 = vshll.u32 683565275, %v1258
        %v1262 = vshrl.u32 2475754826, %v1259
        %v1263 = vor.u32 %v1261, %v1262
        %v1264 = vshll.u32 2475754826, %v1258
        %v1265 = vshrl.u32 2131351028, %v1259
        %v1266 = vor.u32 %v1264, %v1265
        %v1267 = vshll.u32 2131351028, %v1258
        %v1268 = vshrl.u32 2102212464, %v1259
        %v1269 = vor.u32 %v1267, %v1268
        %v1270 = vshll.u32 2102212464, %v1258
        %v1271 = vshrl.u32 920167782, %v1259
        %v1272 = vor.u32 %v1270, %v1271
        %v1273 = vshll.u32 920167782, %v1258
        %v1274 = vshrl.u32 1326507024, %v1259
        %v1275 = vor.u32 %v1273, %v1274
        %vm1276 = vcmp.lt.s32.totalorder %v1257, 1
        %vm1277 = vcmp.lt.s32.totalorder %v1257, 2
        %vm1278 = vcmp.lt.s32.totalorder %v1257, 3
        %vm1279 = vcmp.lt.s32.totalorder %v1257, 4
        %v1280 = vsel %vm1276, %v1260, %v1263
        %v1281 = vsel %vm1279, %v1269, 2102212464
        %v1282 = vsel %vm1278, %v1266, %v1281
        %v1283 = vsel %vm1277, %v1280, %v1282
        %v1284 = vsel %vm1276, %v1263, %v1266
        %v1285 = vsel %vm1279, %v1272, 920167782
        %v1286 = vsel %vm1278, %v1269, %v1285
        %v1287 = vsel %vm1277, %v1284, %v1286
        %v1288 = vsel %vm1276, %v1266, %v1269
        %v1289 = vsel %vm1279, %v1275, 1326507024
        %v1290 = vsel %vm1278, %v1272, %v1289
        %v1291 = vsel %vm1277, %v1288, %v1290
        %v1292 = vshll.u32 %v1252, 8
        %v1293 = vmul.u32.u64.compose %v1292, %v1291
        %v1294 = vextract.low.u32 %v1293
        %v1295 = vextract.high.u32 %v1293
        %v1296 = vmul.u32.u64.compose %v1292, %v1287
        %v1297 = vextract.low.u32 %v1296
        %v1298 = vextract.high.u32 %v1296
        %v1299 = vmul.u32 %v1292, %v1283
        %v1300 = vadd.s32 %v1295, %v1297
        %vm1301 = vc.u32 %v1295, %v1297
        %v1302 = vadd.s32 %v1298, 1
        %v1303 = vsel %vm1301, %v1302, %v1298
        %v1304 = vadd.s32 %v1299, %v1303
        %v1305 = vadd.s32 %v1304, 536870912
        %v1306 = vshrl.u32 %v1305, 30
        %v1307 = vshll.u32 %v1306, 30
        %v1308 = vsub.s32 %v1304, %v1307
        %vm1309 = vcmp.lt.s32.totalorder %v1308, 0
        %v1310 = vsub.s32 0, %v1308
        %v1311 = vsel %vm1309, %v1310, %v1308
        %v1312 = vclz %v1311
        %v1313 = vsub.s32 %v1312, 2
        %vm1314 = vcmp.gt.s32.totalorder 0, %v1313
        %v1315 = vsel %vm1314, 0, %v1313
        %v1316 = vsub.s32 32, %v1315
        %v1317 = vshll.u32 %v1308, %v1315
        %v1318 = vshrl.u32 %v1300, %v1316
        %v1319 = vor.u32 %v1317, %v1318
        %v1320 = vsub.s32 4294967266, %v1315
        %v1321 = vadd.s32 %v1320, 127
        %v1322 = vshll.u32 %v1321, 23
        %v1323 = vor.u32 4788187, %v1322
        %v1324 = vand.u32 2147483647, %v1323
        %v1326 = vcvt.s32.f32 %v1319
        %v1327 = vmul.f32 %v1326, %v1324
        %v1328 = vxor.u32 %v1327, 2147483648
        %v1329 = vsel %vm1246, %v1328, %v1327
        %v1330 = vsub.s32 4, %v1306
        %v1331 = vsel %vm1246, %v1330, %v1306
        %v1332 = vsel %vm1245, %v713, %v1329
        %v1333 = vsel %vm1245, 0, %v1331
        %v1334 = vcosq.f32.pop %v1332
        %v1335 = vsinq.f32.pop %v1332
        %vm1336 = vweird.f32 %v713
        %v1337 = vadd.s32 %v1333, 3
        %v1338 = vand.u32 %v1337, 3
        %vm1339 = vcmp.lt.s32.totalorder %v1338, 2
        %vm1340 = vcmp.eq.s32.totalorder %v1338, 0
        %v1341 = vxor.u32 %v1335, 2147483648
        %v1342 = vsel %vm1340, %v1334, %v1341
        %vm1343 = vcmp.eq.s32.totalorder %v1338, 2
        %v1344 = vxor.u32 %v1334, 2147483648
        %v1345 = vsel %vm1343, %v1344, %v1335
        %v1346 = vsel %vm1339, %v1342, %v1345
        %v1347 = vsel %vm1336, nan, %v1346
        %v1348 = vand.u32 2147483647, %v714
        %vm1349 = vcmp.le.f32.partialorder %v1348, 0.7853982
        %vm1350 = vcmp.lt.s32.totalorder %v714, 0
        %v1351 = vand.u32 %v714, 2139095040
        %v1352 = vshrl.u32 %v1351, 23
        %v1353 = vsub.s32 %v1352, 127
        %v1354 = vand.u32 2147483647, %v714
        %v1355 = vand.u32 %v1354, 8388607
        %v1356 = vor.u32 %v1355, 8388608
        %v1357 = vsub.s32 0, %v1356
        %v1358 = vadd.s32 %v1353, 1
        %vm1359 = vcmp.gt.s32.totalorder %v1358, 0
        %v1360 = vsel %vm1359, %v1358, 0
        %v1361 = vshrl.u32 %v1360, 5
        %v1362 = vand.u32 %v1360, 31
        %v1363 = vsub.s32 32, %v1362
        %v1364 = vshrl.u32 683565275, %v1363
        %v1365 = vshll.u32 683565275, %v1362
        %v1366 = vshrl.u32 2475754826, %v1363
        %v1367 = vor.u32 %v1365, %v1366
        %v1368 = vshll.u32 2475754826, %v1362
        %v1369 = vshrl.u32 2131351028, %v1363
        %v1370 = vor.u32 %v1368, %v1369
        %v1371 = vshll.u32 2131351028, %v1362
        %v1372 = vshrl.u32 2102212464, %v1363
        %v1373 = vor.u32 %v1371, %v1372
        %v1374 = vshll.u32 2102212464, %v1362
        %v1375 = vshrl.u32 920167782, %v1363
        %v1376 = vor.u32 %v1374, %v1375
        %v1377 = vshll.u32 920167782, %v1362
        %v1378 = vshrl.u32 1326507024, %v1363
        %v1379 = vor.u32 %v1377, %v1378
        %vm1380 = vcmp.lt.s32.totalorder %v1361, 1
        %vm1381 = vcmp.lt.s32.totalorder %v1361, 2
        %vm1382 = vcmp.lt.s32.totalorder %v1361, 3
        %vm1383 = vcmp.lt.s32.totalorder %v1361, 4
        %v1384 = vsel %vm1380, %v1364, %v1367
        %v1385 = vsel %vm1383, %v1373, 2102212464
        %v1386 = vsel %vm1382, %v1370, %v1385
        %v1387 = vsel %vm1381, %v1384, %v1386
        %v1388 = vsel %vm1380, %v1367, %v1370
        %v1389 = vsel %vm1383, %v1376, 920167782
        %v1390 = vsel %vm1382, %v1373, %v1389
        %v1391 = vsel %vm1381, %v1388, %v1390
        %v1392 = vsel %vm1380, %v1370, %v1373
        %v1393 = vsel %vm1383, %v1379, 1326507024
        %v1394 = vsel %vm1382, %v1376, %v1393
        %v1395 = vsel %vm1381, %v1392, %v1394
        %v1396 = vshll.u32 %v1356, 8
        %v1397 = vmul.u32.u64.compose %v1396, %v1395
        %v1398 = vextract.low.u32 %v1397
        %v1399 = vextract.high.u32 %v1397
        %v1400 = vmul.u32.u64.compose %v1396, %v1391
        %v1401 = vextract.low.u32 %v1400
        %v1402 = vextract.high.u32 %v1400
        %v1403 = vmul.u32 %v1396, %v1387
        %v1404 = vadd.s32 %v1399, %v1401
        %vm1405 = vc.u32 %v1399, %v1401
        %v1406 = vadd.s32 %v1402, 1
        %v1407 = vsel %vm1405, %v1406, %v1402
        %v1408 = vadd.s32 %v1403, %v1407
        %v1409 = vadd.s32 %v1408, 536870912
        %v1410 = vshrl.u32 %v1409, 30
        %v1411 = vshll.u32 %v1410, 30
        %v1412 = vsub.s32 %v1408, %v1411
        %vm1413 = vcmp.lt.s32.totalorder %v1412, 0
        %v1414 = vsub.s32 0, %v1412
        %v1415 = vsel %vm1413, %v1414, %v1412
        %v1416 = vclz %v1415
        %v1417 = vsub.s32 %v1416, 2
        %vm1418 = vcmp.gt.s32.totalorder 0, %v1417
        %v1419 = vsel %vm1418, 0, %v1417
        %v1420 = vsub.s32 32, %v1419
        %v1421 = vshll.u32 %v1412, %v1419
        %v1422 = vshrl.u32 %v1404, %v1420
        %v1423 = vor.u32 %v1421, %v1422
        %v1424 = vsub.s32 4294967266, %v1419
        %v1425 = vadd.s32 %v1424, 127
        %v1426 = vshll.u32 %v1425, 23
        %v1427 = vor.u32 4788187, %v1426
        %v1428 = vand.u32 2147483647, %v1427
        %v1430 = vcvt.s32.f32 %v1423
        %v1431 = vmul.f32 %v1430, %v1428
        %v1432 = vxor.u32 %v1431, 2147483648
        %v1433 = vsel %vm1350, %v1432, %v1431
        %v1434 = vsub.s32 4, %v1410
        %v1435 = vsel %vm1350, %v1434, %v1410
        %v1436 = vsel %vm1349, %v714, %v1433
        %v1437 = vsel %vm1349, 0, %v1435
        %v1438 = vcosq.f32.pop %v1436
        %v1439 = vsinq.f32.pop %v1436
        %vm1440 = vweird.f32 %v714
        %v1441 = vadd.s32 %v1437, 3
        %v1442 = vand.u32 %v1441, 3
        %vm1443 = vcmp.lt.s32.totalorder %v1442, 2
        %vm1444 = vcmp.eq.s32.totalorder %v1442, 0
        %v1445 = vxor.u32 %v1439, 2147483648
        %v1446 = vsel %vm1444, %v1438, %v1445
        %vm1447 = vcmp.eq.s32.totalorder %v1442, 2
        %v1448 = vxor.u32 %v1438, 2147483648
        %v1449 = vsel %vm1447, %v1448, %v1439
        %v1450 = vsel %vm1443, %v1446, %v1449
        %v1451 = vsel %vm1440, nan, %v1450
        %v1452 = vand.u32 2147483647, %v715
        %vm1453 = vcmp.le.f32.partialorder %v1452, 0.7853982
        %vm1454 = vcmp.lt.s32.totalorder %v715, 0
        %v1455 = vand.u32 %v715, 2139095040
        %v1456 = vshrl.u32 %v1455, 23
        %v1457 = vsub.s32 %v1456, 127
        %v1458 = vand.u32 2147483647, %v715
        %v1459 = vand.u32 %v1458, 8388607
        %v1460 = vor.u32 %v1459, 8388608
        %v1461 = vsub.s32 0, %v1460
        %v1462 = vadd.s32 %v1457, 1
        %vm1463 = vcmp.gt.s32.totalorder %v1462, 0
        %v1464 = vsel %vm1463, %v1462, 0
        %v1465 = vshrl.u32 %v1464, 5
        %v1466 = vand.u32 %v1464, 31
        %v1467 = vsub.s32 32, %v1466
        %v1468 = vshrl.u32 683565275, %v1467
        %v1469 = vshll.u32 683565275, %v1466
        %v1470 = vshrl.u32 2475754826, %v1467
        %v1471 = vor.u32 %v1469, %v1470
        %v1472 = vshll.u32 2475754826, %v1466
        %v1473 = vshrl.u32 2131351028, %v1467
        %v1474 = vor.u32 %v1472, %v1473
        %v1475 = vshll.u32 2131351028, %v1466
        %v1476 = vshrl.u32 2102212464, %v1467
        %v1477 = vor.u32 %v1475, %v1476
        %v1478 = vshll.u32 2102212464, %v1466
        %v1479 = vshrl.u32 920167782, %v1467
        %v1480 = vor.u32 %v1478, %v1479
        %v1481 = vshll.u32 920167782, %v1466
        %v1482 = vshrl.u32 1326507024, %v1467
        %v1483 = vor.u32 %v1481, %v1482
        %vm1484 = vcmp.lt.s32.totalorder %v1465, 1
        %vm1485 = vcmp.lt.s32.totalorder %v1465, 2
        %vm1486 = vcmp.lt.s32.totalorder %v1465, 3
        %vm1487 = vcmp.lt.s32.totalorder %v1465, 4
        %v1488 = vsel %vm1484, %v1468, %v1471
        %v1489 = vsel %vm1487, %v1477, 2102212464
        %v1490 = vsel %vm1486, %v1474, %v1489
        %v1491 = vsel %vm1485, %v1488, %v1490
        %v1492 = vsel %vm1484, %v1471, %v1474
        %v1493 = vsel %vm1487, %v1480, 920167782
        %v1494 = vsel %vm1486, %v1477, %v1493
        %v1495 = vsel %vm1485, %v1492, %v1494
        %v1496 = vsel %vm1484, %v1474, %v1477
        %v1497 = vsel %vm1487, %v1483, 1326507024
        %v1498 = vsel %vm1486, %v1480, %v1497
        %v1499 = vsel %vm1485, %v1496, %v1498
        %v1500 = vshll.u32 %v1460, 8
        %v1501 = vmul.u32.u64.compose %v1500, %v1499
        %v1502 = vextract.low.u32 %v1501
        %v1503 = vextract.high.u32 %v1501
        %v1504 = vmul.u32.u64.compose %v1500, %v1495
        %v1505 = vextract.low.u32 %v1504
        %v1506 = vextract.high.u32 %v1504
        %v1507 = vmul.u32 %v1500, %v1491
        %v1508 = vadd.s32 %v1503, %v1505
        %vm1509 = vc.u32 %v1503, %v1505
        %v1510 = vadd.s32 %v1506, 1
        %v1511 = vsel %vm1509, %v1510, %v1506
        %v1512 = vadd.s32 %v1507, %v1511
        %v1513 = vadd.s32 %v1512, 536870912
        %v1514 = vshrl.u32 %v1513, 30
        %v1515 = vshll.u32 %v1514, 30
        %v1516 = vsub.s32 %v1512, %v1515
        %vm1517 = vcmp.lt.s32.totalorder %v1516, 0
        %v1518 = vsub.s32 0, %v1516
        %v1519 = vsel %vm1517, %v1518, %v1516
        %v1520 = vclz %v1519
        %v1521 = vsub.s32 %v1520, 2
        %vm1522 = vcmp.gt.s32.totalorder 0, %v1521
        %v1523 = vsel %vm1522, 0, %v1521
        %v1524 = vsub.s32 32, %v1523
        %v1525 = vshll.u32 %v1516, %v1523
        %v1526 = vshrl.u32 %v1508, %v1524
        %v1527 = vor.u32 %v1525, %v1526
        %v1528 = vsub.s32 4294967266, %v1523
        %v1529 = vadd.s32 %v1528, 127
        %v1530 = vshll.u32 %v1529, 23
        %v1531 = vor.u32 4788187, %v1530
        %v1532 = vand.u32 2147483647, %v1531
        %v1534 = vcvt.s32.f32 %v1527
        %v1535 = vmul.f32 %v1534, %v1532
        %v1536 = vxor.u32 %v1535, 2147483648
        %v1537 = vsel %vm1454, %v1536, %v1535
        %v1538 = vsub.s32 4, %v1514
        %v1539 = vsel %vm1454, %v1538, %v1514
        %v1540 = vsel %vm1453, %v715, %v1537
        %v1541 = vsel %vm1453, 0, %v1539
        %v1542 = vcosq.f32.pop %v1540
        %v1543 = vsinq.f32.pop %v1540
        %vm1544 = vweird.f32 %v715
        %v1545 = vadd.s32 %v1541, 3
        %v1546 = vand.u32 %v1545, 3
        %vm1547 = vcmp.lt.s32.totalorder %v1546, 2
        %vm1548 = vcmp.eq.s32.totalorder %v1546, 0
        %v1549 = vxor.u32 %v1543, 2147483648
        %v1550 = vsel %vm1548, %v1542, %v1549
        %vm1551 = vcmp.eq.s32.totalorder %v1546, 2
        %v1552 = vxor.u32 %v1542, 2147483648
        %v1553 = vsel %vm1551, %v1552, %v1543
        %v1554 = vsel %vm1547, %v1550, %v1553
        %v1555 = vsel %vm1544, nan, %v1554
        %v1556 = vand.u32 2147483647, %v716
        %vm1557 = vcmp.le.f32.partialorder %v1556, 0.7853982
        %vm1558 = vcmp.lt.s32.totalorder %v716, 0
        %v1559 = vand.u32 %v716, 2139095040
        %v1560 = vshrl.u32 %v1559, 23
        %v1561 = vsub.s32 %v1560, 127
        %v1562 = vand.u32 2147483647, %v716
        %v1563 = vand.u32 %v1562, 8388607
        %v1564 = vor.u32 %v1563, 8388608
        %v1565 = vsub.s32 0, %v1564
        %v1566 = vadd.s32 %v1561, 1
        %vm1567 = vcmp.gt.s32.totalorder %v1566, 0
        %v1568 = vsel %vm1567, %v1566, 0
        %v1569 = vshrl.u32 %v1568, 5
        %v1570 = vand.u32 %v1568, 31
        %v1571 = vsub.s32 32, %v1570
        %v1572 = vshrl.u32 683565275, %v1571
        %v1573 = vshll.u32 683565275, %v1570
        %v1574 = vshrl.u32 2475754826, %v1571
        %v1575 = vor.u32 %v1573, %v1574
        %v1576 = vshll.u32 2475754826, %v1570
        %v1577 = vshrl.u32 2131351028, %v1571
        %v1578 = vor.u32 %v1576, %v1577
        %v1579 = vshll.u32 2131351028, %v1570
        %v1580 = vshrl.u32 2102212464, %v1571
        %v1581 = vor.u32 %v1579, %v1580
        %v1582 = vshll.u32 2102212464, %v1570
        %v1583 = vshrl.u32 920167782, %v1571
        %v1584 = vor.u32 %v1582, %v1583
        %v1585 = vshll.u32 920167782, %v1570
        %v1586 = vshrl.u32 1326507024, %v1571
        %v1587 = vor.u32 %v1585, %v1586
        %vm1588 = vcmp.lt.s32.totalorder %v1569, 1
        %vm1589 = vcmp.lt.s32.totalorder %v1569, 2
        %vm1590 = vcmp.lt.s32.totalorder %v1569, 3
        %vm1591 = vcmp.lt.s32.totalorder %v1569, 4
        %v1592 = vsel %vm1588, %v1572, %v1575
        %v1593 = vsel %vm1591, %v1581, 2102212464
        %v1594 = vsel %vm1590, %v1578, %v1593
        %v1595 = vsel %vm1589, %v1592, %v1594
        %v1596 = vsel %vm1588, %v1575, %v1578
        %v1597 = vsel %vm1591, %v1584, 920167782
        %v1598 = vsel %vm1590, %v1581, %v1597
        %v1599 = vsel %vm1589, %v1596, %v1598
        %v1600 = vsel %vm1588, %v1578, %v1581
        %v1601 = vsel %vm1591, %v1587, 1326507024
        %v1602 = vsel %vm1590, %v1584, %v1601
        %v1603 = vsel %vm1589, %v1600, %v1602
        %v1604 = vshll.u32 %v1564, 8
        %v1605 = vmul.u32.u64.compose %v1604, %v1603
        %v1606 = vextract.low.u32 %v1605
        %v1607 = vextract.high.u32 %v1605
        %v1608 = vmul.u32.u64.compose %v1604, %v1599
        %v1609 = vextract.low.u32 %v1608
        %v1610 = vextract.high.u32 %v1608
        %v1611 = vmul.u32 %v1604, %v1595
        %v1612 = vadd.s32 %v1607, %v1609
        %vm1613 = vc.u32 %v1607, %v1609
        %v1614 = vadd.s32 %v1610, 1
        %v1615 = vsel %vm1613, %v1614, %v1610
        %v1616 = vadd.s32 %v1611, %v1615
        %v1617 = vadd.s32 %v1616, 536870912
        %v1618 = vshrl.u32 %v1617, 30
        %v1619 = vshll.u32 %v1618, 30
        %v1620 = vsub.s32 %v1616, %v1619
        %vm1621 = vcmp.lt.s32.totalorder %v1620, 0
        %v1622 = vsub.s32 0, %v1620
        %v1623 = vsel %vm1621, %v1622, %v1620
        %v1624 = vclz %v1623
        %v1625 = vsub.s32 %v1624, 2
        %vm1626 = vcmp.gt.s32.totalorder 0, %v1625
        %v1627 = vsel %vm1626, 0, %v1625
        %v1628 = vsub.s32 32, %v1627
        %v1629 = vshll.u32 %v1620, %v1627
        %v1630 = vshrl.u32 %v1612, %v1628
        %v1631 = vor.u32 %v1629, %v1630
        %v1632 = vsub.s32 4294967266, %v1627
        %v1633 = vadd.s32 %v1632, 127
        %v1634 = vshll.u32 %v1633, 23
        %v1635 = vor.u32 4788187, %v1634
        %v1636 = vand.u32 2147483647, %v1635
        %v1638 = vcvt.s32.f32 %v1631
        %v1639 = vmul.f32 %v1638, %v1636
        %v1640 = vxor.u32 %v1639, 2147483648
        %v1641 = vsel %vm1558, %v1640, %v1639
        %v1642 = vsub.s32 4, %v1618
        %v1643 = vsel %vm1558, %v1642, %v1618
        %v1644 = vsel %vm1557, %v716, %v1641
        %v1645 = vsel %vm1557, 0, %v1643
        %v1646 = vcosq.f32.pop %v1644
        %v1647 = vsinq.f32.pop %v1644
        %vm1648 = vweird.f32 %v716
        %v1649 = vadd.s32 %v1645, 3
        %v1650 = vand.u32 %v1649, 3
        %vm1651 = vcmp.lt.s32.totalorder %v1650, 2
        %vm1652 = vcmp.eq.s32.totalorder %v1650, 0
        %v1653 = vxor.u32 %v1647, 2147483648
        %v1654 = vsel %vm1652, %v1646, %v1653
        %vm1655 = vcmp.eq.s32.totalorder %v1650, 2
        %v1656 = vxor.u32 %v1646, 2147483648
        %v1657 = vsel %vm1655, %v1656, %v1647
        %v1658 = vsel %vm1651, %v1654, %v1657
        %v1659 = vsel %vm1648, nan, %v1658
        %v1660 = vand.u32 2147483647, %v717
        %vm1661 = vcmp.le.f32.partialorder %v1660, 0.7853982
        %vm1662 = vcmp.lt.s32.totalorder %v717, 0
        %v1663 = vand.u32 %v717, 2139095040
        %v1664 = vshrl.u32 %v1663, 23
        %v1665 = vsub.s32 %v1664, 127
        %v1666 = vand.u32 2147483647, %v717
        %v1667 = vand.u32 %v1666, 8388607
        %v1668 = vor.u32 %v1667, 8388608
        %v1669 = vsub.s32 0, %v1668
        %v1670 = vadd.s32 %v1665, 1
        %vm1671 = vcmp.gt.s32.totalorder %v1670, 0
        %v1672 = vsel %vm1671, %v1670, 0
        %v1673 = vshrl.u32 %v1672, 5
        %v1674 = vand.u32 %v1672, 31
        %v1675 = vsub.s32 32, %v1674
        %v1676 = vshrl.u32 683565275, %v1675
        %v1677 = vshll.u32 683565275, %v1674
        %v1678 = vshrl.u32 2475754826, %v1675
        %v1679 = vor.u32 %v1677, %v1678
        %v1680 = vshll.u32 2475754826, %v1674
        %v1681 = vshrl.u32 2131351028, %v1675
        %v1682 = vor.u32 %v1680, %v1681
        %v1683 = vshll.u32 2131351028, %v1674
        %v1684 = vshrl.u32 2102212464, %v1675
        %v1685 = vor.u32 %v1683, %v1684
        %v1686 = vshll.u32 2102212464, %v1674
        %v1687 = vshrl.u32 920167782, %v1675
        %v1688 = vor.u32 %v1686, %v1687
        %v1689 = vshll.u32 920167782, %v1674
        %v1690 = vshrl.u32 1326507024, %v1675
        %v1691 = vor.u32 %v1689, %v1690
        %vm1692 = vcmp.lt.s32.totalorder %v1673, 1
        %vm1693 = vcmp.lt.s32.totalorder %v1673, 2
        %vm1694 = vcmp.lt.s32.totalorder %v1673, 3
        %vm1695 = vcmp.lt.s32.totalorder %v1673, 4
        %v1696 = vsel %vm1692, %v1676, %v1679
        %v1697 = vsel %vm1695, %v1685, 2102212464
        %v1698 = vsel %vm1694, %v1682, %v1697
        %v1699 = vsel %vm1693, %v1696, %v1698
        %v1700 = vsel %vm1692, %v1679, %v1682
        %v1701 = vsel %vm1695, %v1688, 920167782
        %v1702 = vsel %vm1694, %v1685, %v1701
        %v1703 = vsel %vm1693, %v1700, %v1702
        %v1704 = vsel %vm1692, %v1682, %v1685
        %v1705 = vsel %vm1695, %v1691, 1326507024
        %v1706 = vsel %vm1694, %v1688, %v1705
        %v1707 = vsel %vm1693, %v1704, %v1706
        %v1708 = vshll.u32 %v1668, 8
        %v1709 = vmul.u32.u64.compose %v1708, %v1707
        %v1710 = vextract.low.u32 %v1709
        %v1711 = vextract.high.u32 %v1709
        %v1712 = vmul.u32.u64.compose %v1708, %v1703
        %v1713 = vextract.low.u32 %v1712
        %v1714 = vextract.high.u32 %v1712
        %v1715 = vmul.u32 %v1708, %v1699
        %v1716 = vadd.s32 %v1711, %v1713
        %vm1717 = vc.u32 %v1711, %v1713
        %v1718 = vadd.s32 %v1714, 1
        %v1719 = vsel %vm1717, %v1718, %v1714
        %v1720 = vadd.s32 %v1715, %v1719
        %v1721 = vadd.s32 %v1720, 536870912
        %v1722 = vshrl.u32 %v1721, 30
        %v1723 = vshll.u32 %v1722, 30
        %v1724 = vsub.s32 %v1720, %v1723
        %vm1725 = vcmp.lt.s32.totalorder %v1724, 0
        %v1726 = vsub.s32 0, %v1724
        %v1727 = vsel %vm1725, %v1726, %v1724
        %v1728 = vclz %v1727
        %v1729 = vsub.s32 %v1728, 2
        %vm1730 = vcmp.gt.s32.totalorder 0, %v1729
        %v1731 = vsel %vm1730, 0, %v1729
        %v1732 = vsub.s32 32, %v1731
        %v1733 = vshll.u32 %v1724, %v1731
        %v1734 = vshrl.u32 %v1716, %v1732
        %v1735 = vor.u32 %v1733, %v1734
        %v1736 = vsub.s32 4294967266, %v1731
        %v1737 = vadd.s32 %v1736, 127
        %v1738 = vshll.u32 %v1737, 23
        %v1739 = vor.u32 4788187, %v1738
        %v1740 = vand.u32 2147483647, %v1739
        %v1742 = vcvt.s32.f32 %v1735
        %v1743 = vmul.f32 %v1742, %v1740
        %v1744 = vxor.u32 %v1743, 2147483648
        %v1745 = vsel %vm1662, %v1744, %v1743
        %v1746 = vsub.s32 4, %v1722
        %v1747 = vsel %vm1662, %v1746, %v1722
        %v1748 = vsel %vm1661, %v717, %v1745
        %v1749 = vsel %vm1661, 0, %v1747
        %v1750 = vcosq.f32.pop %v1748
        %v1751 = vsinq.f32.pop %v1748
        %vm1752 = vweird.f32 %v717
        %v1753 = vadd.s32 %v1749, 3
        %v1754 = vand.u32 %v1753, 3
        %vm1755 = vcmp.lt.s32.totalorder %v1754, 2
        %vm1756 = vcmp.eq.s32.totalorder %v1754, 0
        %v1757 = vxor.u32 %v1751, 2147483648
        %v1758 = vsel %vm1756, %v1750, %v1757
        %vm1759 = vcmp.eq.s32.totalorder %v1754, 2
        %v1760 = vxor.u32 %v1750, 2147483648
        %v1761 = vsel %vm1759, %v1760, %v1751
        %v1762 = vsel %vm1755, %v1758, %v1761
        %v1763 = vsel %vm1752, nan, %v1762
        %v1764 = vand.u32 2147483647, %v718
        %vm1765 = vcmp.le.f32.partialorder %v1764, 0.7853982
        %vm1766 = vcmp.lt.s32.totalorder %v718, 0
        %v1767 = vand.u32 %v718, 2139095040
        %v1768 = vshrl.u32 %v1767, 23
        %v1769 = vsub.s32 %v1768, 127
        %v1770 = vand.u32 2147483647, %v718
        %v1771 = vand.u32 %v1770, 8388607
        %v1772 = vor.u32 %v1771, 8388608
        %v1773 = vsub.s32 0, %v1772
        %v1774 = vadd.s32 %v1769, 1
        %vm1775 = vcmp.gt.s32.totalorder %v1774, 0
        %v1776 = vsel %vm1775, %v1774, 0
        %v1777 = vshrl.u32 %v1776, 5
        %v1778 = vand.u32 %v1776, 31
        %v1779 = vsub.s32 32, %v1778
        %v1780 = vshrl.u32 683565275, %v1779
        %v1781 = vshll.u32 683565275, %v1778
        %v1782 = vshrl.u32 2475754826, %v1779
        %v1783 = vor.u32 %v1781, %v1782
        %v1784 = vshll.u32 2475754826, %v1778
        %v1785 = vshrl.u32 2131351028, %v1779
        %v1786 = vor.u32 %v1784, %v1785
        %v1787 = vshll.u32 2131351028, %v1778
        %v1788 = vshrl.u32 2102212464, %v1779
        %v1789 = vor.u32 %v1787, %v1788
        %v1790 = vshll.u32 2102212464, %v1778
        %v1791 = vshrl.u32 920167782, %v1779
        %v1792 = vor.u32 %v1790, %v1791
        %v1793 = vshll.u32 920167782, %v1778
        %v1794 = vshrl.u32 1326507024, %v1779
        %v1795 = vor.u32 %v1793, %v1794
        %vm1796 = vcmp.lt.s32.totalorder %v1777, 1
        %vm1797 = vcmp.lt.s32.totalorder %v1777, 2
        %vm1798 = vcmp.lt.s32.totalorder %v1777, 3
        %vm1799 = vcmp.lt.s32.totalorder %v1777, 4
        %v1800 = vsel %vm1796, %v1780, %v1783
        %v1801 = vsel %vm1799, %v1789, 2102212464
        %v1802 = vsel %vm1798, %v1786, %v1801
        %v1803 = vsel %vm1797, %v1800, %v1802
        %v1804 = vsel %vm1796, %v1783, %v1786
        %v1805 = vsel %vm1799, %v1792, 920167782
        %v1806 = vsel %vm1798, %v1789, %v1805
        %v1807 = vsel %vm1797, %v1804, %v1806
        %v1808 = vsel %vm1796, %v1786, %v1789
        %v1809 = vsel %vm1799, %v1795, 1326507024
        %v1810 = vsel %vm1798, %v1792, %v1809
        %v1811 = vsel %vm1797, %v1808, %v1810
        %v1812 = vshll.u32 %v1772, 8
        %v1813 = vmul.u32.u64.compose %v1812, %v1811
        %v1814 = vextract.low.u32 %v1813
        %v1815 = vextract.high.u32 %v1813
        %v1816 = vmul.u32.u64.compose %v1812, %v1807
        %v1817 = vextract.low.u32 %v1816
        %v1818 = vextract.high.u32 %v1816
        %v1819 = vmul.u32 %v1812, %v1803
        %v1820 = vadd.s32 %v1815, %v1817
        %vm1821 = vc.u32 %v1815, %v1817
        %v1822 = vadd.s32 %v1818, 1
        %v1823 = vsel %vm1821, %v1822, %v1818
        %v1824 = vadd.s32 %v1819, %v1823
        %v1825 = vadd.s32 %v1824, 536870912
        %v1826 = vshrl.u32 %v1825, 30
        %v1827 = vshll.u32 %v1826, 30
        %v1828 = vsub.s32 %v1824, %v1827
        %vm1829 = vcmp.lt.s32.totalorder %v1828, 0
        %v1830 = vsub.s32 0, %v1828
        %v1831 = vsel %vm1829, %v1830, %v1828
        %v1832 = vclz %v1831
        %v1833 = vsub.s32 %v1832, 2
        %vm1834 = vcmp.gt.s32.totalorder 0, %v1833
        %v1835 = vsel %vm1834, 0, %v1833
        %v1836 = vsub.s32 32, %v1835
        %v1837 = vshll.u32 %v1828, %v1835
        %v1838 = vshrl.u32 %v1820, %v1836
        %v1839 = vor.u32 %v1837, %v1838
        %v1840 = vsub.s32 4294967266, %v1835
        %v1841 = vadd.s32 %v1840, 127
        %v1842 = vshll.u32 %v1841, 23
        %v1843 = vor.u32 4788187, %v1842
        %v1844 = vand.u32 2147483647, %v1843
        %v1846 = vcvt.s32.f32 %v1839
        %v1847 = vmul.f32 %v1846, %v1844
        %v1848 = vxor.u32 %v1847, 2147483648
        %v1849 = vsel %vm1766, %v1848, %v1847
        %v1850 = vsub.s32 4, %v1826
        %v1851 = vsel %vm1766, %v1850, %v1826
        %v1852 = vsel %vm1765, %v718, %v1849
        %v1853 = vsel %vm1765, 0, %v1851
        %v1854 = vcosq.f32.pop %v1852
        %v1855 = vsinq.f32.pop %v1852
        %vm1856 = vweird.f32 %v718
        %v1857 = vadd.s32 %v1853, 3
        %v1858 = vand.u32 %v1857, 3
        %vm1859 = vcmp.lt.s32.totalorder %v1858, 2
        %vm1860 = vcmp.eq.s32.totalorder %v1858, 0
        %v1861 = vxor.u32 %v1855, 2147483648
        %v1862 = vsel %vm1860, %v1854, %v1861
        %vm1863 = vcmp.eq.s32.totalorder %v1858, 2
        %v1864 = vxor.u32 %v1854, 2147483648
        %v1865 = vsel %vm1863, %v1864, %v1855
        %v1866 = vsel %vm1859, %v1862, %v1865
        %v1867 = vsel %vm1856, nan, %v1866
        %v1868 = vand.u32 2147483647, %v719
        %vm1869 = vcmp.le.f32.partialorder %v1868, 0.7853982
        %vm1870 = vcmp.lt.s32.totalorder %v719, 0
        %v1871 = vand.u32 %v719, 2139095040
        %v1872 = vshrl.u32 %v1871, 23
        %v1873 = vsub.s32 %v1872, 127
        %v1874 = vand.u32 2147483647, %v719
        %v1875 = vand.u32 %v1874, 8388607
        %v1876 = vor.u32 %v1875, 8388608
        %v1877 = vsub.s32 0, %v1876
        %v1878 = vadd.s32 %v1873, 1
        %vm1879 = vcmp.gt.s32.totalorder %v1878, 0
        %v1880 = vsel %vm1879, %v1878, 0
        %v1881 = vshrl.u32 %v1880, 5
        %v1882 = vand.u32 %v1880, 31
        %v1883 = vsub.s32 32, %v1882
        %v1884 = vshrl.u32 683565275, %v1883
        %v1885 = vshll.u32 683565275, %v1882
        %v1886 = vshrl.u32 2475754826, %v1883
        %v1887 = vor.u32 %v1885, %v1886
        %v1888 = vshll.u32 2475754826, %v1882
        %v1889 = vshrl.u32 2131351028, %v1883
        %v1890 = vor.u32 %v1888, %v1889
        %v1891 = vshll.u32 2131351028, %v1882
        %v1892 = vshrl.u32 2102212464, %v1883
        %v1893 = vor.u32 %v1891, %v1892
        %v1894 = vshll.u32 2102212464, %v1882
        %v1895 = vshrl.u32 920167782, %v1883
        %v1896 = vor.u32 %v1894, %v1895
        %v1897 = vshll.u32 920167782, %v1882
        %v1898 = vshrl.u32 1326507024, %v1883
        %v1899 = vor.u32 %v1897, %v1898
        %vm1900 = vcmp.lt.s32.totalorder %v1881, 1
        %vm1901 = vcmp.lt.s32.totalorder %v1881, 2
        %vm1902 = vcmp.lt.s32.totalorder %v1881, 3
        %vm1903 = vcmp.lt.s32.totalorder %v1881, 4
        %v1904 = vsel %vm1900, %v1884, %v1887
        %v1905 = vsel %vm1903, %v1893, 2102212464
        %v1906 = vsel %vm1902, %v1890, %v1905
        %v1907 = vsel %vm1901, %v1904, %v1906
        %v1908 = vsel %vm1900, %v1887, %v1890
        %v1909 = vsel %vm1903, %v1896, 920167782
        %v1910 = vsel %vm1902, %v1893, %v1909
        %v1911 = vsel %vm1901, %v1908, %v1910
        %v1912 = vsel %vm1900, %v1890, %v1893
        %v1913 = vsel %vm1903, %v1899, 1326507024
        %v1914 = vsel %vm1902, %v1896, %v1913
        %v1915 = vsel %vm1901, %v1912, %v1914
        %v1916 = vshll.u32 %v1876, 8
        %v1917 = vmul.u32.u64.compose %v1916, %v1915
        %v1918 = vextract.low.u32 %v1917
        %v1919 = vextract.high.u32 %v1917
        %v1920 = vmul.u32.u64.compose %v1916, %v1911
        %v1921 = vextract.low.u32 %v1920
        %v1922 = vextract.high.u32 %v1920
        %v1923 = vmul.u32 %v1916, %v1907
        %v1924 = vadd.s32 %v1919, %v1921
        %vm1925 = vc.u32 %v1919, %v1921
        %v1926 = vadd.s32 %v1922, 1
        %v1927 = vsel %vm1925, %v1926, %v1922
        %v1928 = vadd.s32 %v1923, %v1927
        %v1929 = vadd.s32 %v1928, 536870912
        %v1930 = vshrl.u32 %v1929, 30
        %v1931 = vshll.u32 %v1930, 30
        %v1932 = vsub.s32 %v1928, %v1931
        %vm1933 = vcmp.lt.s32.totalorder %v1932, 0
        %v1934 = vsub.s32 0, %v1932
        %v1935 = vsel %vm1933, %v1934, %v1932
        %v1936 = vclz %v1935
        %v1937 = vsub.s32 %v1936, 2
        %vm1938 = vcmp.gt.s32.totalorder 0, %v1937
        %v1939 = vsel %vm1938, 0, %v1937
        %v1940 = vsub.s32 32, %v1939
        %v1941 = vshll.u32 %v1932, %v1939
        %v1942 = vshrl.u32 %v1924, %v1940
        %v1943 = vor.u32 %v1941, %v1942
        %v1944 = vsub.s32 4294967266, %v1939
        %v1945 = vadd.s32 %v1944, 127
        %v1946 = vshll.u32 %v1945, 23
        %v1947 = vor.u32 4788187, %v1946
        %v1948 = vand.u32 2147483647, %v1947
        %v1950 = vcvt.s32.f32 %v1943
        %v1951 = vmul.f32 %v1950, %v1948
        %v1952 = vxor.u32 %v1951, 2147483648
        %v1953 = vsel %vm1870, %v1952, %v1951
        %v1954 = vsub.s32 4, %v1930
        %v1955 = vsel %vm1870, %v1954, %v1930
        %v1956 = vsel %vm1869, %v719, %v1953
        %v1957 = vsel %vm1869, 0, %v1955
        %v1958 = vcosq.f32.pop %v1956
        %v1959 = vsinq.f32.pop %v1956
        %vm1960 = vweird.f32 %v719
        %v1961 = vadd.s32 %v1957, 3
        %v1962 = vand.u32 %v1961, 3
        %vm1963 = vcmp.lt.s32.totalorder %v1962, 2
        %vm1964 = vcmp.eq.s32.totalorder %v1962, 0
        %v1965 = vxor.u32 %v1959, 2147483648
        %v1966 = vsel %vm1964, %v1958, %v1965
        %vm1967 = vcmp.eq.s32.totalorder %v1962, 2
        %v1968 = vxor.u32 %v1958, 2147483648
        %v1969 = vsel %vm1967, %v1968, %v1959
        %v1970 = vsel %vm1963, %v1966, %v1969
        %v1971 = vsel %vm1960, nan, %v1970
        %v1972 = vand.u32 2147483647, %v720
        %vm1973 = vcmp.le.f32.partialorder %v1972, 0.7853982
        %vm1974 = vcmp.lt.s32.totalorder %v720, 0
        %v1975 = vand.u32 %v720, 2139095040
        %v1976 = vshrl.u32 %v1975, 23
        %v1977 = vsub.s32 %v1976, 127
        %v1978 = vand.u32 2147483647, %v720
        %v1979 = vand.u32 %v1978, 8388607
        %v1980 = vor.u32 %v1979, 8388608
        %v1981 = vsub.s32 0, %v1980
        %v1982 = vadd.s32 %v1977, 1
        %vm1983 = vcmp.gt.s32.totalorder %v1982, 0
        %v1984 = vsel %vm1983, %v1982, 0
        %v1985 = vshrl.u32 %v1984, 5
        %v1986 = vand.u32 %v1984, 31
        %v1987 = vsub.s32 32, %v1986
        %v1988 = vshrl.u32 683565275, %v1987
        %v1989 = vshll.u32 683565275, %v1986
        %v1990 = vshrl.u32 2475754826, %v1987
        %v1991 = vor.u32 %v1989, %v1990
        %v1992 = vshll.u32 2475754826, %v1986
        %v1993 = vshrl.u32 2131351028, %v1987
        %v1994 = vor.u32 %v1992, %v1993
        %v1995 = vshll.u32 2131351028, %v1986
        %v1996 = vshrl.u32 2102212464, %v1987
        %v1997 = vor.u32 %v1995, %v1996
        %v1998 = vshll.u32 2102212464, %v1986
        %v1999 = vshrl.u32 920167782, %v1987
        %v2000 = vor.u32 %v1998, %v1999
        %v2001 = vshll.u32 920167782, %v1986
        %v2002 = vshrl.u32 1326507024, %v1987
        %v2003 = vor.u32 %v2001, %v2002
        %vm2004 = vcmp.lt.s32.totalorder %v1985, 1
        %vm2005 = vcmp.lt.s32.totalorder %v1985, 2
        %vm2006 = vcmp.lt.s32.totalorder %v1985, 3
        %vm2007 = vcmp.lt.s32.totalorder %v1985, 4
        %v2008 = vsel %vm2004, %v1988, %v1991
        %v2009 = vsel %vm2007, %v1997, 2102212464
        %v2010 = vsel %vm2006, %v1994, %v2009
        %v2011 = vsel %vm2005, %v2008, %v2010
        %v2012 = vsel %vm2004, %v1991, %v1994
        %v2013 = vsel %vm2007, %v2000, 920167782
        %v2014 = vsel %vm2006, %v1997, %v2013
        %v2015 = vsel %vm2005, %v2012, %v2014
        %v2016 = vsel %vm2004, %v1994, %v1997
        %v2017 = vsel %vm2007, %v2003, 1326507024
        %v2018 = vsel %vm2006, %v2000, %v2017
        %v2019 = vsel %vm2005, %v2016, %v2018
        %v2020 = vshll.u32 %v1980, 8
        %v2021 = vmul.u32.u64.compose %v2020, %v2019
        %v2022 = vextract.low.u32 %v2021
        %v2023 = vextract.high.u32 %v2021
        %v2024 = vmul.u32.u64.compose %v2020, %v2015
        %v2025 = vextract.low.u32 %v2024
        %v2026 = vextract.high.u32 %v2024
        %v2027 = vmul.u32 %v2020, %v2011
        %v2028 = vadd.s32 %v2023, %v2025
        %vm2029 = vc.u32 %v2023, %v2025
        %v2030 = vadd.s32 %v2026, 1
        %v2031 = vsel %vm2029, %v2030, %v2026
        %v2032 = vadd.s32 %v2027, %v2031
        %v2033 = vadd.s32 %v2032, 536870912
        %v2034 = vshrl.u32 %v2033, 30
        %v2035 = vshll.u32 %v2034, 30
        %v2036 = vsub.s32 %v2032, %v2035
        %vm2037 = vcmp.lt.s32.totalorder %v2036, 0
        %v2038 = vsub.s32 0, %v2036
        %v2039 = vsel %vm2037, %v2038, %v2036
        %v2040 = vclz %v2039
        %v2041 = vsub.s32 %v2040, 2
        %vm2042 = vcmp.gt.s32.totalorder 0, %v2041
        %v2043 = vsel %vm2042, 0, %v2041
        %v2044 = vsub.s32 32, %v2043
        %v2045 = vshll.u32 %v2036, %v2043
        %v2046 = vshrl.u32 %v2028, %v2044
        %v2047 = vor.u32 %v2045, %v2046
        %v2048 = vsub.s32 4294967266, %v2043
        %v2049 = vadd.s32 %v2048, 127
        %v2050 = vshll.u32 %v2049, 23
        %v2051 = vor.u32 4788187, %v2050
        %v2052 = vand.u32 2147483647, %v2051
        %v2054 = vcvt.s32.f32 %v2047
        %v2055 = vmul.f32 %v2054, %v2052
        %v2056 = vxor.u32 %v2055, 2147483648
        %v2057 = vsel %vm1974, %v2056, %v2055
        %v2058 = vsub.s32 4, %v2034
        %v2059 = vsel %vm1974, %v2058, %v2034
        %v2060 = vsel %vm1973, %v720, %v2057
        %v2061 = vsel %vm1973, 0, %v2059
        %v2062 = vcosq.f32.pop %v2060
        %v2063 = vsinq.f32.pop %v2060
        %vm2064 = vweird.f32 %v720
        %v2065 = vadd.s32 %v2061, 3
        %v2066 = vand.u32 %v2065, 3
        %vm2067 = vcmp.lt.s32.totalorder %v2066, 2
        %vm2068 = vcmp.eq.s32.totalorder %v2066, 0
        %v2069 = vxor.u32 %v2063, 2147483648
        %v2070 = vsel %vm2068, %v2062, %v2069
        %vm2071 = vcmp.eq.s32.totalorder %v2066, 2
        %v2072 = vxor.u32 %v2062, 2147483648
        %v2073 = vsel %vm2071, %v2072, %v2063
        %v2074 = vsel %vm2067, %v2070, %v2073
        %v2075 = vsel %vm2064, nan, %v2074
        %v2076 = vand.u32 2147483647, %v721
        %vm2077 = vcmp.le.f32.partialorder %v2076, 0.7853982
        %vm2078 = vcmp.lt.s32.totalorder %v721, 0
        %v2079 = vand.u32 %v721, 2139095040
        %v2080 = vshrl.u32 %v2079, 23
        %v2081 = vsub.s32 %v2080, 127
        %v2082 = vand.u32 2147483647, %v721
        %v2083 = vand.u32 %v2082, 8388607
        %v2084 = vor.u32 %v2083, 8388608
        %v2085 = vsub.s32 0, %v2084
        %v2086 = vadd.s32 %v2081, 1
        %vm2087 = vcmp.gt.s32.totalorder %v2086, 0
        %v2088 = vsel %vm2087, %v2086, 0
        %v2089 = vshrl.u32 %v2088, 5
        %v2090 = vand.u32 %v2088, 31
        %v2091 = vsub.s32 32, %v2090
        %v2092 = vshrl.u32 683565275, %v2091
        %v2093 = vshll.u32 683565275, %v2090
        %v2094 = vshrl.u32 2475754826, %v2091
        %v2095 = vor.u32 %v2093, %v2094
        %v2096 = vshll.u32 2475754826, %v2090
        %v2097 = vshrl.u32 2131351028, %v2091
        %v2098 = vor.u32 %v2096, %v2097
        %v2099 = vshll.u32 2131351028, %v2090
        %v2100 = vshrl.u32 2102212464, %v2091
        %v2101 = vor.u32 %v2099, %v2100
        %v2102 = vshll.u32 2102212464, %v2090
        %v2103 = vshrl.u32 920167782, %v2091
        %v2104 = vor.u32 %v2102, %v2103
        %v2105 = vshll.u32 920167782, %v2090
        %v2106 = vshrl.u32 1326507024, %v2091
        %v2107 = vor.u32 %v2105, %v2106
        %vm2108 = vcmp.lt.s32.totalorder %v2089, 1
        %vm2109 = vcmp.lt.s32.totalorder %v2089, 2
        %vm2110 = vcmp.lt.s32.totalorder %v2089, 3
        %vm2111 = vcmp.lt.s32.totalorder %v2089, 4
        %v2112 = vsel %vm2108, %v2092, %v2095
        %v2113 = vsel %vm2111, %v2101, 2102212464
        %v2114 = vsel %vm2110, %v2098, %v2113
        %v2115 = vsel %vm2109, %v2112, %v2114
        %v2116 = vsel %vm2108, %v2095, %v2098
        %v2117 = vsel %vm2111, %v2104, 920167782
        %v2118 = vsel %vm2110, %v2101, %v2117
        %v2119 = vsel %vm2109, %v2116, %v2118
        %v2120 = vsel %vm2108, %v2098, %v2101
        %v2121 = vsel %vm2111, %v2107, 1326507024
        %v2122 = vsel %vm2110, %v2104, %v2121
        %v2123 = vsel %vm2109, %v2120, %v2122
        %v2124 = vshll.u32 %v2084, 8
        %v2125 = vmul.u32.u64.compose %v2124, %v2123
        %v2126 = vextract.low.u32 %v2125
        %v2127 = vextract.high.u32 %v2125
        %v2128 = vmul.u32.u64.compose %v2124, %v2119
        %v2129 = vextract.low.u32 %v2128
        %v2130 = vextract.high.u32 %v2128
        %v2131 = vmul.u32 %v2124, %v2115
        %v2132 = vadd.s32 %v2127, %v2129
        %vm2133 = vc.u32 %v2127, %v2129
        %v2134 = vadd.s32 %v2130, 1
        %v2135 = vsel %vm2133, %v2134, %v2130
        %v2136 = vadd.s32 %v2131, %v2135
        %v2137 = vadd.s32 %v2136, 536870912
        %v2138 = vshrl.u32 %v2137, 30
        %v2139 = vshll.u32 %v2138, 30
        %v2140 = vsub.s32 %v2136, %v2139
        %vm2141 = vcmp.lt.s32.totalorder %v2140, 0
        %v2142 = vsub.s32 0, %v2140
        %v2143 = vsel %vm2141, %v2142, %v2140
        %v2144 = vclz %v2143
        %v2145 = vsub.s32 %v2144, 2
        %vm2146 = vcmp.gt.s32.totalorder 0, %v2145
        %v2147 = vsel %vm2146, 0, %v2145
        %v2148 = vsub.s32 32, %v2147
        %v2149 = vshll.u32 %v2140, %v2147
        %v2150 = vshrl.u32 %v2132, %v2148
        %v2151 = vor.u32 %v2149, %v2150
        %v2152 = vsub.s32 4294967266, %v2147
        %v2153 = vadd.s32 %v2152, 127
        %v2154 = vshll.u32 %v2153, 23
        %v2155 = vor.u32 4788187, %v2154
        %v2156 = vand.u32 2147483647, %v2155
        %v2158 = vcvt.s32.f32 %v2151
        %v2159 = vmul.f32 %v2158, %v2156
        %v2160 = vxor.u32 %v2159, 2147483648
        %v2161 = vsel %vm2078, %v2160, %v2159
        %v2162 = vsub.s32 4, %v2138
        %v2163 = vsel %vm2078, %v2162, %v2138
        %v2164 = vsel %vm2077, %v721, %v2161
        %v2165 = vsel %vm2077, 0, %v2163
        %v2166 = vcosq.f32.pop %v2164
        %v2167 = vsinq.f32.pop %v2164
        %vm2168 = vweird.f32 %v721
        %v2169 = vadd.s32 %v2165, 3
        %v2170 = vand.u32 %v2169, 3
        %vm2171 = vcmp.lt.s32.totalorder %v2170, 2
        %vm2172 = vcmp.eq.s32.totalorder %v2170, 0
        %v2173 = vxor.u32 %v2167, 2147483648
        %v2174 = vsel %vm2172, %v2166, %v2173
        %vm2175 = vcmp.eq.s32.totalorder %v2170, 2
        %v2176 = vxor.u32 %v2166, 2147483648
        %v2177 = vsel %vm2175, %v2176, %v2167
        %v2178 = vsel %vm2171, %v2174, %v2177
        %v2179 = vsel %vm2168, nan, %v2178
        %v2180 = vand.u32 2147483647, %v722
        %vm2181 = vcmp.le.f32.partialorder %v2180, 0.7853982
        %vm2182 = vcmp.lt.s32.totalorder %v722, 0
        %v2183 = vand.u32 %v722, 2139095040
        %v2184 = vshrl.u32 %v2183, 23
        %v2185 = vsub.s32 %v2184, 127
        %v2186 = vand.u32 2147483647, %v722
        %v2187 = vand.u32 %v2186, 8388607
        %v2188 = vor.u32 %v2187, 8388608
        %v2189 = vsub.s32 0, %v2188
        %v2190 = vadd.s32 %v2185, 1
        %vm2191 = vcmp.gt.s32.totalorder %v2190, 0
        %v2192 = vsel %vm2191, %v2190, 0
        %v2193 = vshrl.u32 %v2192, 5
        %v2194 = vand.u32 %v2192, 31
        %v2195 = vsub.s32 32, %v2194
        %v2196 = vshrl.u32 683565275, %v2195
        %v2197 = vshll.u32 683565275, %v2194
        %v2198 = vshrl.u32 2475754826, %v2195
        %v2199 = vor.u32 %v2197, %v2198
        %v2200 = vshll.u32 2475754826, %v2194
        %v2201 = vshrl.u32 2131351028, %v2195
        %v2202 = vor.u32 %v2200, %v2201
        %v2203 = vshll.u32 2131351028, %v2194
        %v2204 = vshrl.u32 2102212464, %v2195
        %v2205 = vor.u32 %v2203, %v2204
        %v2206 = vshll.u32 2102212464, %v2194
        %v2207 = vshrl.u32 920167782, %v2195
        %v2208 = vor.u32 %v2206, %v2207
        %v2209 = vshll.u32 920167782, %v2194
        %v2210 = vshrl.u32 1326507024, %v2195
        %v2211 = vor.u32 %v2209, %v2210
        %vm2212 = vcmp.lt.s32.totalorder %v2193, 1
        %vm2213 = vcmp.lt.s32.totalorder %v2193, 2
        %vm2214 = vcmp.lt.s32.totalorder %v2193, 3
        %vm2215 = vcmp.lt.s32.totalorder %v2193, 4
        %v2216 = vsel %vm2212, %v2196, %v2199
        %v2217 = vsel %vm2215, %v2205, 2102212464
        %v2218 = vsel %vm2214, %v2202, %v2217
        %v2219 = vsel %vm2213, %v2216, %v2218
        %v2220 = vsel %vm2212, %v2199, %v2202
        %v2221 = vsel %vm2215, %v2208, 920167782
        %v2222 = vsel %vm2214, %v2205, %v2221
        %v2223 = vsel %vm2213, %v2220, %v2222
        %v2224 = vsel %vm2212, %v2202, %v2205
        %v2225 = vsel %vm2215, %v2211, 1326507024
        %v2226 = vsel %vm2214, %v2208, %v2225
        %v2227 = vsel %vm2213, %v2224, %v2226
        %v2228 = vshll.u32 %v2188, 8
        %v2229 = vmul.u32.u64.compose %v2228, %v2227
        %v2230 = vextract.low.u32 %v2229
        %v2231 = vextract.high.u32 %v2229
        %v2232 = vmul.u32.u64.compose %v2228, %v2223
        %v2233 = vextract.low.u32 %v2232
        %v2234 = vextract.high.u32 %v2232
        %v2235 = vmul.u32 %v2228, %v2219
        %v2236 = vadd.s32 %v2231, %v2233
        %vm2237 = vc.u32 %v2231, %v2233
        %v2238 = vadd.s32 %v2234, 1
        %v2239 = vsel %vm2237, %v2238, %v2234
        %v2240 = vadd.s32 %v2235, %v2239
        %v2241 = vadd.s32 %v2240, 536870912
        %v2242 = vshrl.u32 %v2241, 30
        %v2243 = vshll.u32 %v2242, 30
        %v2244 = vsub.s32 %v2240, %v2243
        %vm2245 = vcmp.lt.s32.totalorder %v2244, 0
        %v2246 = vsub.s32 0, %v2244
        %v2247 = vsel %vm2245, %v2246, %v2244
        %v2248 = vclz %v2247
        %v2249 = vsub.s32 %v2248, 2
        %vm2250 = vcmp.gt.s32.totalorder 0, %v2249
        %v2251 = vsel %vm2250, 0, %v2249
        %v2252 = vsub.s32 32, %v2251
        %v2253 = vshll.u32 %v2244, %v2251
        %v2254 = vshrl.u32 %v2236, %v2252
        %v2255 = vor.u32 %v2253, %v2254
        %v2256 = vsub.s32 4294967266, %v2251
        %v2257 = vadd.s32 %v2256, 127
        %v2258 = vshll.u32 %v2257, 23
        %v2259 = vor.u32 4788187, %v2258
        %v2260 = vand.u32 2147483647, %v2259
        %v2262 = vcvt.s32.f32 %v2255
        %v2263 = vmul.f32 %v2262, %v2260
        %v2264 = vxor.u32 %v2263, 2147483648
        %v2265 = vsel %vm2182, %v2264, %v2263
        %v2266 = vsub.s32 4, %v2242
        %v2267 = vsel %vm2182, %v2266, %v2242
        %v2268 = vsel %vm2181, %v722, %v2265
        %v2269 = vsel %vm2181, 0, %v2267
        %v2270 = vcosq.f32.pop %v2268
        %v2271 = vsinq.f32.pop %v2268
        %vm2272 = vweird.f32 %v722
        %v2273 = vadd.s32 %v2269, 3
        %v2274 = vand.u32 %v2273, 3
        %vm2275 = vcmp.lt.s32.totalorder %v2274, 2
        %vm2276 = vcmp.eq.s32.totalorder %v2274, 0
        %v2277 = vxor.u32 %v2271, 2147483648
        %v2278 = vsel %vm2276, %v2270, %v2277
        %vm2279 = vcmp.eq.s32.totalorder %v2274, 2
        %v2280 = vxor.u32 %v2270, 2147483648
        %v2281 = vsel %vm2279, %v2280, %v2271
        %v2282 = vsel %vm2275, %v2278, %v2281
        %v2283 = vsel %vm2272, nan, %v2282
        %v2284 = vand.u32 2147483647, %v723
        %vm2285 = vcmp.le.f32.partialorder %v2284, 0.7853982
        %vm2286 = vcmp.lt.s32.totalorder %v723, 0
        %v2287 = vand.u32 %v723, 2139095040
        %v2288 = vshrl.u32 %v2287, 23
        %v2289 = vsub.s32 %v2288, 127
        %v2290 = vand.u32 2147483647, %v723
        %v2291 = vand.u32 %v2290, 8388607
        %v2292 = vor.u32 %v2291, 8388608
        %v2293 = vsub.s32 0, %v2292
        %v2294 = vadd.s32 %v2289, 1
        %vm2295 = vcmp.gt.s32.totalorder %v2294, 0
        %v2296 = vsel %vm2295, %v2294, 0
        %v2297 = vshrl.u32 %v2296, 5
        %v2298 = vand.u32 %v2296, 31
        %v2299 = vsub.s32 32, %v2298
        %v2300 = vshrl.u32 683565275, %v2299
        %v2301 = vshll.u32 683565275, %v2298
        %v2302 = vshrl.u32 2475754826, %v2299
        %v2303 = vor.u32 %v2301, %v2302
        %v2304 = vshll.u32 2475754826, %v2298
        %v2305 = vshrl.u32 2131351028, %v2299
        %v2306 = vor.u32 %v2304, %v2305
        %v2307 = vshll.u32 2131351028, %v2298
        %v2308 = vshrl.u32 2102212464, %v2299
        %v2309 = vor.u32 %v2307, %v2308
        %v2310 = vshll.u32 2102212464, %v2298
        %v2311 = vshrl.u32 920167782, %v2299
        %v2312 = vor.u32 %v2310, %v2311
        %v2313 = vshll.u32 920167782, %v2298
        %v2314 = vshrl.u32 1326507024, %v2299
        %v2315 = vor.u32 %v2313, %v2314
        %vm2316 = vcmp.lt.s32.totalorder %v2297, 1
        %vm2317 = vcmp.lt.s32.totalorder %v2297, 2
        %vm2318 = vcmp.lt.s32.totalorder %v2297, 3
        %vm2319 = vcmp.lt.s32.totalorder %v2297, 4
        %v2320 = vsel %vm2316, %v2300, %v2303
        %v2321 = vsel %vm2319, %v2309, 2102212464
        %v2322 = vsel %vm2318, %v2306, %v2321
        %v2323 = vsel %vm2317, %v2320, %v2322
        %v2324 = vsel %vm2316, %v2303, %v2306
        %v2325 = vsel %vm2319, %v2312, 920167782
        %v2326 = vsel %vm2318, %v2309, %v2325
        %v2327 = vsel %vm2317, %v2324, %v2326
        %v2328 = vsel %vm2316, %v2306, %v2309
        %v2329 = vsel %vm2319, %v2315, 1326507024
        %v2330 = vsel %vm2318, %v2312, %v2329
        %v2331 = vsel %vm2317, %v2328, %v2330
        %v2332 = vshll.u32 %v2292, 8
        %v2333 = vmul.u32.u64.compose %v2332, %v2331
        %v2334 = vextract.low.u32 %v2333
        %v2335 = vextract.high.u32 %v2333
        %v2336 = vmul.u32.u64.compose %v2332, %v2327
        %v2337 = vextract.low.u32 %v2336
        %v2338 = vextract.high.u32 %v2336
        %v2339 = vmul.u32 %v2332, %v2323
        %v2340 = vadd.s32 %v2335, %v2337
        %vm2341 = vc.u32 %v2335, %v2337
        %v2342 = vadd.s32 %v2338, 1
        %v2343 = vsel %vm2341, %v2342, %v2338
        %v2344 = vadd.s32 %v2339, %v2343
        %v2345 = vadd.s32 %v2344, 536870912
        %v2346 = vshrl.u32 %v2345, 30
        %v2347 = vshll.u32 %v2346, 30
        %v2348 = vsub.s32 %v2344, %v2347
        %vm2349 = vcmp.lt.s32.totalorder %v2348, 0
        %v2350 = vsub.s32 0, %v2348
        %v2351 = vsel %vm2349, %v2350, %v2348
        %v2352 = vclz %v2351
        %v2353 = vsub.s32 %v2352, 2
        %vm2354 = vcmp.gt.s32.totalorder 0, %v2353
        %v2355 = vsel %vm2354, 0, %v2353
        %v2356 = vsub.s32 32, %v2355
        %v2357 = vshll.u32 %v2348, %v2355
        %v2358 = vshrl.u32 %v2340, %v2356
        %v2359 = vor.u32 %v2357, %v2358
        %v2360 = vsub.s32 4294967266, %v2355
        %v2361 = vadd.s32 %v2360, 127
        %v2362 = vshll.u32 %v2361, 23
        %v2363 = vor.u32 4788187, %v2362
        %v2364 = vand.u32 2147483647, %v2363
        %v2366 = vcvt.s32.f32 %v2359
        %v2367 = vmul.f32 %v2366, %v2364
        %v2368 = vxor.u32 %v2367, 2147483648
        %v2369 = vsel %vm2286, %v2368, %v2367
        %v2370 = vsub.s32 4, %v2346
        %v2371 = vsel %vm2286, %v2370, %v2346
        %v2372 = vsel %vm2285, %v723, %v2369
        %v2373 = vsel %vm2285, 0, %v2371
        %v2374 = vcosq.f32.pop %v2372
        %v2375 = vsinq.f32.pop %v2372
        %vm2376 = vweird.f32 %v723
        %v2377 = vadd.s32 %v2373, 3
        %v2378 = vand.u32 %v2377, 3
        %vm2379 = vcmp.lt.s32.totalorder %v2378, 2
        %vm2380 = vcmp.eq.s32.totalorder %v2378, 0
        %v2381 = vxor.u32 %v2375, 2147483648
        %v2382 = vsel %vm2380, %v2374, %v2381
        %vm2383 = vcmp.eq.s32.totalorder %v2378, 2
        %v2384 = vxor.u32 %v2374, 2147483648
        %v2385 = vsel %vm2383, %v2384, %v2375
        %v2386 = vsel %vm2379, %v2382, %v2385
        %v2387 = vsel %vm2376, nan, %v2386
        %v2388 = vld [vmem:[%s4] sm:$0x3]
        %v2389 = vld [vmem:[%s3] sm:$0xff]
        %v2390 = vld [vmem:[%s3 + $0x8] sm:$0xff]
        %v2391 = vld [vmem:[%s3 + $0x10] sm:$0xff]
        %v2392 = vld [vmem:[%s3 + $0x18] sm:$0xff]
        %v2393 = vld [vmem:[%s3 + $0x20] sm:$0xff]
        %v2394 = vld [vmem:[%s3 + $0x28] sm:$0xff]
        %v2395 = vld [vmem:[%s3 + $0x30] sm:$0xff]
        %v2396 = vld [vmem:[%s3 + $0x38] sm:$0xff]
        %v2397 = vld [vmem:[%s3 + $0x40] sm:$0xff]
        %v2398 = vld [vmem:[%s3 + $0x48] sm:$0xff]
        %v2399 = vld [vmem:[%s3 + $0x50] sm:$0xff]
        %v2400 = vld [vmem:[%s3 + $0x58] sm:$0xff]
        %v2401 = vld [vmem:[%s3 + $0x60] sm:$0xff]
        %v2402 = vld [vmem:[%s3 + $0x68] sm:$0xff]
        %v2403 = vld [vmem:[%s3 + $0x70] sm:$0xff]
        %v2404 = vld [vmem:[%s3 + $0x78] sm:$0xff]
        %v2405 = vlaneseq
        %v2406 = vshrl.u32 %v2405, 7
        %v2407 = vsub.s32 0, %v2406
        %v2408 = vrot.slane %v2388, %v2407
        %2409 = vmatprep.subr.mxu0 0.0
        %2410 = vmatpush1.msra.mxu0 %v2389
        %2411 = vmatprep.subr.mxu0 0.0
        %2412 = vmatpush1.msra.mxu0 %v2390
        %2413 = vmatprep.subr.mxu0 0.0
        %2414 = vmatpush1.msra.mxu0 %v2391
        %2415 = vmatprep.subr.mxu0 0.0
        %2416 = vmatpush1.msra.mxu0 %v2392
        %2417 = vmatprep.subr.mxu0 0.0
        %2418 = vmatpush1.msra.mxu0 %v2393
        %2419 = vmatprep.subr.mxu0 0.0
        %2420 = vmatpush1.msra.mxu0 %v2394
        %2421 = vmatprep.subr.mxu0 0.0
        %2422 = vmatpush1.msra.mxu0 %v2395
        %2423 = vmatprep.subr.mxu0 0.0
        %2424 = vmatpush1.msra.mxu0 %v2396
        %2425 = vmatprep.subr.mxu0 0.0
        %2426 = vmatpush1.msra.mxu0 %v2397
        %2427 = vmatprep.subr.mxu0 0.0
        %2428 = vmatpush1.msra.mxu0 %v2398
        %2429 = vmatprep.subr.mxu0 0.0
        %2430 = vmatpush1.msra.mxu0 %v2399
        %2431 = vmatprep.subr.mxu0 0.0
        %2432 = vmatpush1.msra.mxu0 %v2400
        %2433 = vmatprep.subr.mxu0 0.0
        %2434 = vmatpush1.msra.mxu0 %v2401
        %2435 = vmatprep.subr.mxu0 0.0
        %2436 = vmatpush1.msra.mxu0 %v2402
        %2437 = vmatprep.subr.mxu0 0.0
        %2438 = vmatpush1.msra.mxu0 %v2403
        %2439 = vmatprep.subr.mxu0 0.0
        %2440 = vmatpush1.msra.mxu0 %v2404
        %2441 = vmatprep.subr.mxu0 0.0
        %2442 = vmatpush1.msra.mxu0 0.0
        %2443 = vmatprep.subr.mxu0 0.0
        %2444 = vmatpush1.msra.mxu0 0.0
        %2445 = vmatprep.subr.mxu0 0.0
        %2446 = vmatpush1.msra.mxu0 0.0
        %2447 = vmatprep.subr.mxu0 0.0
        %2448 = vmatpush1.msra.mxu0 0.0
        %2449 = vmatprep.subr.mxu0 0.0
        %2450 = vmatpush1.msra.mxu0 0.0
        %2451 = vmatprep.subr.mxu0 0.0
        %2452 = vmatpush1.msra.mxu0 0.0
        %2453 = vmatprep.subr.mxu0 0.0
        %2454 = vmatpush1.msra.mxu0 0.0
        %2455 = vmatprep.subr.mxu0 0.0
        %2456 = vmatpush1.msra.mxu0 0.0
        %2457 = vmatprep.subr.mxu0 0.0
        %2458 = vmatpush1.msra.mxu0 0.0
        %2459 = vmatprep.subr.mxu0 0.0
        %2460 = vmatpush1.msra.mxu0 0.0
        %2461 = vmatprep.subr.mxu0 0.0
        %2462 = vmatpush1.msra.mxu0 0.0
        %2463 = vmatprep.subr.mxu0 0.0
        %2464 = vmatpush1.msra.mxu0 0.0
        %2465 = vmatprep.subr.mxu0 0.0
        %2466 = vmatpush1.msra.mxu0 0.0
        %2467 = vmatprep.subr.mxu0 0.0
        %2468 = vmatpush1.msra.mxu0 0.0
        %2469 = vmatprep.subr.mxu0 0.0
        %2470 = vmatpush1.msra.mxu0 0.0
        %2471 = vmatprep.subr.mxu0 0.0
        %2472 = vmatpush1.msra.mxu0 0.0
        %2473 = vmatprep.mubr.f32.mxu0 0.0
        %2474 = vmatmul.mubr.f32.gmra.mrb[0].mxu0 %v827
        %v2475 = vpop.f32.mrb[0].mxu0
        %v2476 = vadd.f32 %v2408, %v2475
        %v2477 = vpop.f32.mrb[0].mxu0
        %2478 = vmatprep.mubr.f32.mxu0 0.0
        %2479 = vmatmul.mubr.f32.gmra.mrb[0].mxu0 %v931
        %v2480 = vpop.f32.mrb[0].mxu0
        %v2481 = vadd.f32 %v2408, %v2480
        %v2482 = vpop.f32.mrb[0].mxu0
        %2483 = vmatprep.mubr.f32.mxu0 0.0
        %2484 = vmatmul.mubr.f32.gmra.mrb[0].mxu0 %v1035
        %v2485 = vpop.f32.mrb[0].mxu0
        %v2486 = vadd.f32 %v2408, %v2485
        %v2487 = vpop.f32.mrb[0].mxu0
        %2488 = vmatprep.mubr.f32.mxu0 0.0
        %2489 = vmatmul.mubr.f32.gmra.mrb[0].mxu0 %v1139
        %v2490 = vpop.f32.mrb[0].mxu0
        %v2491 = vadd.f32 %v2408, %v2490
        %v2492 = vpop.f32.mrb[0].mxu0
        %2493 = vmatprep.mubr.f32.mxu0 0.0
        %2494 = vmatmul.mubr.f32.gmra.mrb[0].mxu0 %v1243
        %v2495 = vpop.f32.mrb[0].mxu0
        %v2496 = vadd.f32 %v2408, %v2495
        %v2497 = vpop.f32.mrb[0].mxu0
        %2498 = vmatprep.mubr.f32.mxu0 0.0
        %2499 = vmatmul.mubr.f32.gmra.mrb[0].mxu0 %v1347
        %v2500 = vpop.f32.mrb[0].mxu0
        %v2501 = vadd.f32 %v2408, %v2500
        %v2502 = vpop.f32.mrb[0].mxu0
        %2503 = vmatprep.mubr.f32.mxu0 0.0
        %2504 = vmatmul.mubr.f32.gmra.mrb[0].mxu0 %v1451
        %v2505 = vpop.f32.mrb[0].mxu0
        %v2506 = vadd.f32 %v2408, %v2505
        %v2507 = vpop.f32.mrb[0].mxu0
        %2508 = vmatprep.mubr.f32.mxu0 0.0
        %2509 = vmatmul.mubr.f32.gmra.mrb[0].mxu0 %v1555
        %v2510 = vpop.f32.mrb[0].mxu0
        %v2511 = vadd.f32 %v2408, %v2510
        %v2512 = vpop.f32.mrb[0].mxu0
        %2513 = vmatprep.mubr.f32.mxu0 0.0
        %2514 = vmatmul.mubr.f32.gmra.mrb[0].mxu0 %v1659
        %v2515 = vpop.f32.mrb[0].mxu0
        %v2516 = vadd.f32 %v2408, %v2515
        %v2517 = vpop.f32.mrb[0].mxu0
        %2518 = vmatprep.mubr.f32.mxu0 0.0
        %2519 = vmatmul.mubr.f32.gmra.mrb[0].mxu0 %v1763
        %v2520 = vpop.f32.mrb[0].mxu0
        %v2521 = vadd.f32 %v2408, %v2520
        %v2522 = vpop.f32.mrb[0].mxu0
        %2523 = vmatprep.mubr.f32.mxu0 0.0
        %2524 = vmatmul.mubr.f32.gmra.mrb[0].mxu0 %v1867
        %v2525 = vpop.f32.mrb[0].mxu0
        %v2526 = vadd.f32 %v2408, %v2525
        %v2527 = vpop.f32.mrb[0].mxu0
        %2528 = vmatprep.mubr.f32.mxu0 0.0
        %2529 = vmatmul.mubr.f32.gmra.mrb[0].mxu0 %v1971
        %v2530 = vpop.f32.mrb[0].mxu0
        %v2531 = vadd.f32 %v2408, %v2530
        %v2532 = vpop.f32.mrb[0].mxu0
        %2533 = vmatprep.mubr.f32.mxu0 0.0
        %2534 = vmatmul.mubr.f32.gmra.mrb[0].mxu0 %v2075
        %v2535 = vpop.f32.mrb[0].mxu0
        %v2536 = vadd.f32 %v2408, %v2535
        %v2537 = vpop.f32.mrb[0].mxu0
        %2538 = vmatprep.mubr.f32.mxu0 0.0
        %2539 = vmatmul.mubr.f32.gmra.mrb[0].mxu0 %v2179
        %v2540 = vpop.f32.mrb[0].mxu0
        %v2541 = vadd.f32 %v2408, %v2540
        %v2542 = vpop.f32.mrb[0].mxu0
        %2543 = vmatprep.mubr.f32.mxu0 0.0
        %2544 = vmatmul.mubr.f32.gmra.mrb[0].mxu0 %v2283
        %v2545 = vpop.f32.mrb[0].mxu0
        %v2546 = vadd.f32 %v2408, %v2545
        %v2547 = vpop.f32.mrb[0].mxu0
        %2548 = vmatprep.mubr.f32.mxu0 0.0
        %2549 = vmatmul.mubr.f32.gmra.mrb[0].mxu0 %v2387
        %v2550 = vpop.f32.mrb[0].mxu0
        %v2551 = vadd.f32 %v2408, %v2550
        %v2552 = vpop.f32.mrb[0].mxu0
        %2553 = vdwg.mxu0
        %v2554 = vlaneseq
        %v2555 = vshrl.u32 %v2554, 7
        %v2556 = vsub.s32 1, %v2555
        %v2557 = vrot.slane %v359, %v2556
        %v2558 = vmul.f32 %v2557, %v2476
        %v2559 = vmul.f32 %v2557, %v2481
        %v2560 = vmul.f32 %v2557, %v2486
        %v2561 = vmul.f32 %v2557, %v2491
        %v2562 = vmul.f32 %v2557, %v2496
        %v2563 = vmul.f32 %v2557, %v2501
        %v2564 = vmul.f32 %v2557, %v2506
        %v2565 = vmul.f32 %v2557, %v2511
        %v2566 = vmul.f32 %v2557, %v2516
        %v2567 = vmul.f32 %v2557, %v2521
        %v2568 = vmul.f32 %v2557, %v2526
        %v2569 = vmul.f32 %v2557, %v2531
        %v2570 = vmul.f32 %v2557, %v2536
        %v2571 = vmul.f32 %v2557, %v2541
        %v2572 = vmul.f32 %v2557, %v2546
        %v2573 = vmul.f32 %v2557, %v2551
        %v2574 = vlaneseq
        %v2575 = vshrl.u32 %v2574, 7
        %v2576 = vsub.s32 1, %v2575
        %v2577 = vrot.slane %v360, %v2576
        %v2578 = vadd.f32 %v2558, %v2577
        %v2579 = vadd.f32 %v2559, %v2577
        %v2580 = vadd.f32 %v2560, %v2577
        %v2581 = vadd.f32 %v2561, %v2577
        %v2582 = vadd.f32 %v2562, %v2577
        %v2583 = vadd.f32 %v2563, %v2577
        %v2584 = vadd.f32 %v2564, %v2577
        %v2585 = vadd.f32 %v2565, %v2577
        %v2586 = vadd.f32 %v2566, %v2577
        %v2587 = vadd.f32 %v2567, %v2577
        %v2588 = vadd.f32 %v2568, %v2577
        %v2589 = vadd.f32 %v2569, %v2577
        %v2590 = vadd.f32 %v2570, %v2577
        %v2591 = vadd.f32 %v2571, %v2577
        %v2592 = vadd.f32 %v2572, %v2577
        %v2593 = vadd.f32 %v2573, %v2577
        %v2594 = vand.u32 2147483647, %v2578
        %vm2595 = vcmp.le.f32.partialorder %v2594, 0.7853982
        %vm2596 = vcmp.lt.s32.totalorder %v2578, 0
        %v2597 = vand.u32 %v2578, 2139095040
        %v2598 = vshrl.u32 %v2597, 23
        %v2599 = vsub.s32 %v2598, 127
        %v2600 = vand.u32 2147483647, %v2578
        %v2601 = vand.u32 %v2600, 8388607
        %v2602 = vor.u32 %v2601, 8388608
        %v2603 = vsub.s32 0, %v2602
        %v2604 = vadd.s32 %v2599, 1
        %vm2605 = vcmp.gt.s32.totalorder %v2604, 0
        %v2606 = vsel %vm2605, %v2604, 0
        %v2607 = vshrl.u32 %v2606, 5
        %v2608 = vand.u32 %v2606, 31
        %v2609 = vsub.s32 32, %v2608
        %v2610 = vshrl.u32 683565275, %v2609
        %v2611 = vshll.u32 683565275, %v2608
        %v2612 = vshrl.u32 2475754826, %v2609
        %v2613 = vor.u32 %v2611, %v2612
        %v2614 = vshll.u32 2475754826, %v2608
        %v2615 = vshrl.u32 2131351028, %v2609
        %v2616 = vor.u32 %v2614, %v2615
        %v2617 = vshll.u32 2131351028, %v2608
        %v2618 = vshrl.u32 2102212464, %v2609
        %v2619 = vor.u32 %v2617, %v2618
        %v2620 = vshll.u32 2102212464, %v2608
        %v2621 = vshrl.u32 920167782, %v2609
        %v2622 = vor.u32 %v2620, %v2621
        %v2623 = vshll.u32 920167782, %v2608
        %v2624 = vshrl.u32 1326507024, %v2609
        %v2625 = vor.u32 %v2623, %v2624
        %vm2626 = vcmp.lt.s32.totalorder %v2607, 1
        %vm2627 = vcmp.lt.s32.totalorder %v2607, 2
        %vm2628 = vcmp.lt.s32.totalorder %v2607, 3
        %vm2629 = vcmp.lt.s32.totalorder %v2607, 4
        %v2630 = vsel %vm2626, %v2610, %v2613
        %v2631 = vsel %vm2629, %v2619, 2102212464
        %v2632 = vsel %vm2628, %v2616, %v2631
        %v2633 = vsel %vm2627, %v2630, %v2632
        %v2634 = vsel %vm2626, %v2613, %v2616
        %v2635 = vsel %vm2629, %v2622, 920167782
        %v2636 = vsel %vm2628, %v2619, %v2635
        %v2637 = vsel %vm2627, %v2634, %v2636
        %v2638 = vsel %vm2626, %v2616, %v2619
        %v2639 = vsel %vm2629, %v2625, 1326507024
        %v2640 = vsel %vm2628, %v2622, %v2639
        %v2641 = vsel %vm2627, %v2638, %v2640
        %v2642 = vshll.u32 %v2602, 8
        %v2643 = vmul.u32.u64.compose %v2642, %v2641
        %v2644 = vextract.low.u32 %v2643
        %v2645 = vextract.high.u32 %v2643
        %v2646 = vmul.u32.u64.compose %v2642, %v2637
        %v2647 = vextract.low.u32 %v2646
        %v2648 = vextract.high.u32 %v2646
        %v2649 = vmul.u32 %v2642, %v2633
        %v2650 = vadd.s32 %v2645, %v2647
        %vm2651 = vc.u32 %v2645, %v2647
        %v2652 = vadd.s32 %v2648, 1
        %v2653 = vsel %vm2651, %v2652, %v2648
        %v2654 = vadd.s32 %v2649, %v2653
        %v2655 = vadd.s32 %v2654, 536870912
        %v2656 = vshrl.u32 %v2655, 30
        %v2657 = vshll.u32 %v2656, 30
        %v2658 = vsub.s32 %v2654, %v2657
        %vm2659 = vcmp.lt.s32.totalorder %v2658, 0
        %v2660 = vsub.s32 0, %v2658
        %v2661 = vsel %vm2659, %v2660, %v2658
        %v2662 = vclz %v2661
        %v2663 = vsub.s32 %v2662, 2
        %vm2664 = vcmp.gt.s32.totalorder 0, %v2663
        %v2665 = vsel %vm2664, 0, %v2663
        %v2666 = vsub.s32 32, %v2665
        %v2667 = vshll.u32 %v2658, %v2665
        %v2668 = vshrl.u32 %v2650, %v2666
        %v2669 = vor.u32 %v2667, %v2668
        %v2670 = vsub.s32 4294967266, %v2665
        %v2671 = vadd.s32 %v2670, 127
        %v2672 = vshll.u32 %v2671, 23
        %v2673 = vor.u32 4788187, %v2672
        %v2674 = vand.u32 2147483647, %v2673
        %v2676 = vcvt.s32.f32 %v2669
        %v2677 = vmul.f32 %v2676, %v2674
        %v2678 = vxor.u32 %v2677, 2147483648
        %v2679 = vsel %vm2596, %v2678, %v2677
        %v2680 = vsub.s32 4, %v2656
        %v2681 = vsel %vm2596, %v2680, %v2656
        %v2682 = vsel %vm2595, %v2578, %v2679
        %v2683 = vsel %vm2595, 0, %v2681
        %v2684 = vcosq.f32.pop %v2682
        %v2685 = vsinq.f32.pop %v2682
        %vm2686 = vweird.f32 %v2578
        %v2687 = vadd.s32 %v2683, 3
        %v2688 = vand.u32 %v2687, 3
        %vm2689 = vcmp.lt.s32.totalorder %v2688, 2
        %vm2690 = vcmp.eq.s32.totalorder %v2688, 0
        %v2691 = vxor.u32 %v2685, 2147483648
        %v2692 = vsel %vm2690, %v2684, %v2691
        %vm2693 = vcmp.eq.s32.totalorder %v2688, 2
        %v2694 = vxor.u32 %v2684, 2147483648
        %v2695 = vsel %vm2693, %v2694, %v2685
        %v2696 = vsel %vm2689, %v2692, %v2695
        %v2697 = vsel %vm2686, nan, %v2696
        %v2698 = vand.u32 2147483647, %v2579
        %vm2699 = vcmp.le.f32.partialorder %v2698, 0.7853982
        %vm2700 = vcmp.lt.s32.totalorder %v2579, 0
        %v2701 = vand.u32 %v2579, 2139095040
        %v2702 = vshrl.u32 %v2701, 23
        %v2703 = vsub.s32 %v2702, 127
        %v2704 = vand.u32 2147483647, %v2579
        %v2705 = vand.u32 %v2704, 8388607
        %v2706 = vor.u32 %v2705, 8388608
        %v2707 = vsub.s32 0, %v2706
        %v2708 = vadd.s32 %v2703, 1
        %vm2709 = vcmp.gt.s32.totalorder %v2708, 0
        %v2710 = vsel %vm2709, %v2708, 0
        %v2711 = vshrl.u32 %v2710, 5
        %v2712 = vand.u32 %v2710, 31
        %v2713 = vsub.s32 32, %v2712
        %v2714 = vshrl.u32 683565275, %v2713
        %v2715 = vshll.u32 683565275, %v2712
        %v2716 = vshrl.u32 2475754826, %v2713
        %v2717 = vor.u32 %v2715, %v2716
        %v2718 = vshll.u32 2475754826, %v2712
        %v2719 = vshrl.u32 2131351028, %v2713
        %v2720 = vor.u32 %v2718, %v2719
        %v2721 = vshll.u32 2131351028, %v2712
        %v2722 = vshrl.u32 2102212464, %v2713
        %v2723 = vor.u32 %v2721, %v2722
        %v2724 = vshll.u32 2102212464, %v2712
        %v2725 = vshrl.u32 920167782, %v2713
        %v2726 = vor.u32 %v2724, %v2725
        %v2727 = vshll.u32 920167782, %v2712
        %v2728 = vshrl.u32 1326507024, %v2713
        %v2729 = vor.u32 %v2727, %v2728
        %vm2730 = vcmp.lt.s32.totalorder %v2711, 1
        %vm2731 = vcmp.lt.s32.totalorder %v2711, 2
        %vm2732 = vcmp.lt.s32.totalorder %v2711, 3
        %vm2733 = vcmp.lt.s32.totalorder %v2711, 4
        %v2734 = vsel %vm2730, %v2714, %v2717
        %v2735 = vsel %vm2733, %v2723, 2102212464
        %v2736 = vsel %vm2732, %v2720, %v2735
        %v2737 = vsel %vm2731, %v2734, %v2736
        %v2738 = vsel %vm2730, %v2717, %v2720
        %v2739 = vsel %vm2733, %v2726, 920167782
        %v2740 = vsel %vm2732, %v2723, %v2739
        %v2741 = vsel %vm2731, %v2738, %v2740
        %v2742 = vsel %vm2730, %v2720, %v2723
        %v2743 = vsel %vm2733, %v2729, 1326507024
        %v2744 = vsel %vm2732, %v2726, %v2743
        %v2745 = vsel %vm2731, %v2742, %v2744
        %v2746 = vshll.u32 %v2706, 8
        %v2747 = vmul.u32.u64.compose %v2746, %v2745
        %v2748 = vextract.low.u32 %v2747
        %v2749 = vextract.high.u32 %v2747
        %v2750 = vmul.u32.u64.compose %v2746, %v2741
        %v2751 = vextract.low.u32 %v2750
        %v2752 = vextract.high.u32 %v2750
        %v2753 = vmul.u32 %v2746, %v2737
        %v2754 = vadd.s32 %v2749, %v2751
        %vm2755 = vc.u32 %v2749, %v2751
        %v2756 = vadd.s32 %v2752, 1
        %v2757 = vsel %vm2755, %v2756, %v2752
        %v2758 = vadd.s32 %v2753, %v2757
        %v2759 = vadd.s32 %v2758, 536870912
        %v2760 = vshrl.u32 %v2759, 30
        %v2761 = vshll.u32 %v2760, 30
        %v2762 = vsub.s32 %v2758, %v2761
        %vm2763 = vcmp.lt.s32.totalorder %v2762, 0
        %v2764 = vsub.s32 0, %v2762
        %v2765 = vsel %vm2763, %v2764, %v2762
        %v2766 = vclz %v2765
        %v2767 = vsub.s32 %v2766, 2
        %vm2768 = vcmp.gt.s32.totalorder 0, %v2767
        %v2769 = vsel %vm2768, 0, %v2767
        %v2770 = vsub.s32 32, %v2769
        %v2771 = vshll.u32 %v2762, %v2769
        %v2772 = vshrl.u32 %v2754, %v2770
        %v2773 = vor.u32 %v2771, %v2772
        %v2774 = vsub.s32 4294967266, %v2769
        %v2775 = vadd.s32 %v2774, 127
        %v2776 = vshll.u32 %v2775, 23
        %v2777 = vor.u32 4788187, %v2776
        %v2778 = vand.u32 2147483647, %v2777
        %v2780 = vcvt.s32.f32 %v2773
        %v2781 = vmul.f32 %v2780, %v2778
        %v2782 = vxor.u32 %v2781, 2147483648
        %v2783 = vsel %vm2700, %v2782, %v2781
        %v2784 = vsub.s32 4, %v2760
        %v2785 = vsel %vm2700, %v2784, %v2760
        %v2786 = vsel %vm2699, %v2579, %v2783
        %v2787 = vsel %vm2699, 0, %v2785
        %v2788 = vcosq.f32.pop %v2786
        %v2789 = vsinq.f32.pop %v2786
        %vm2790 = vweird.f32 %v2579
        %v2791 = vadd.s32 %v2787, 3
        %v2792 = vand.u32 %v2791, 3
        %vm2793 = vcmp.lt.s32.totalorder %v2792, 2
        %vm2794 = vcmp.eq.s32.totalorder %v2792, 0
        %v2795 = vxor.u32 %v2789, 2147483648
        %v2796 = vsel %vm2794, %v2788, %v2795
        %vm2797 = vcmp.eq.s32.totalorder %v2792, 2
        %v2798 = vxor.u32 %v2788, 2147483648
        %v2799 = vsel %vm2797, %v2798, %v2789
        %v2800 = vsel %vm2793, %v2796, %v2799
        %v2801 = vsel %vm2790, nan, %v2800
        %v2802 = vand.u32 2147483647, %v2580
        %vm2803 = vcmp.le.f32.partialorder %v2802, 0.7853982
        %vm2804 = vcmp.lt.s32.totalorder %v2580, 0
        %v2805 = vand.u32 %v2580, 2139095040
        %v2806 = vshrl.u32 %v2805, 23
        %v2807 = vsub.s32 %v2806, 127
        %v2808 = vand.u32 2147483647, %v2580
        %v2809 = vand.u32 %v2808, 8388607
        %v2810 = vor.u32 %v2809, 8388608
        %v2811 = vsub.s32 0, %v2810
        %v2812 = vadd.s32 %v2807, 1
        %vm2813 = vcmp.gt.s32.totalorder %v2812, 0
        %v2814 = vsel %vm2813, %v2812, 0
        %v2815 = vshrl.u32 %v2814, 5
        %v2816 = vand.u32 %v2814, 31
        %v2817 = vsub.s32 32, %v2816
        %v2818 = vshrl.u32 683565275, %v2817
        %v2819 = vshll.u32 683565275, %v2816
        %v2820 = vshrl.u32 2475754826, %v2817
        %v2821 = vor.u32 %v2819, %v2820
        %v2822 = vshll.u32 2475754826, %v2816
        %v2823 = vshrl.u32 2131351028, %v2817
        %v2824 = vor.u32 %v2822, %v2823
        %v2825 = vshll.u32 2131351028, %v2816
        %v2826 = vshrl.u32 2102212464, %v2817
        %v2827 = vor.u32 %v2825, %v2826
        %v2828 = vshll.u32 2102212464, %v2816
        %v2829 = vshrl.u32 920167782, %v2817
        %v2830 = vor.u32 %v2828, %v2829
        %v2831 = vshll.u32 920167782, %v2816
        %v2832 = vshrl.u32 1326507024, %v2817
        %v2833 = vor.u32 %v2831, %v2832
        %vm2834 = vcmp.lt.s32.totalorder %v2815, 1
        %vm2835 = vcmp.lt.s32.totalorder %v2815, 2
        %vm2836 = vcmp.lt.s32.totalorder %v2815, 3
        %vm2837 = vcmp.lt.s32.totalorder %v2815, 4
        %v2838 = vsel %vm2834, %v2818, %v2821
        %v2839 = vsel %vm2837, %v2827, 2102212464
        %v2840 = vsel %vm2836, %v2824, %v2839
        %v2841 = vsel %vm2835, %v2838, %v2840
        %v2842 = vsel %vm2834, %v2821, %v2824
        %v2843 = vsel %vm2837, %v2830, 920167782
        %v2844 = vsel %vm2836, %v2827, %v2843
        %v2845 = vsel %vm2835, %v2842, %v2844
        %v2846 = vsel %vm2834, %v2824, %v2827
        %v2847 = vsel %vm2837, %v2833, 1326507024
        %v2848 = vsel %vm2836, %v2830, %v2847
        %v2849 = vsel %vm2835, %v2846, %v2848
        %v2850 = vshll.u32 %v2810, 8
        %v2851 = vmul.u32.u64.compose %v2850, %v2849
        %v2852 = vextract.low.u32 %v2851
        %v2853 = vextract.high.u32 %v2851
        %v2854 = vmul.u32.u64.compose %v2850, %v2845
        %v2855 = vextract.low.u32 %v2854
        %v2856 = vextract.high.u32 %v2854
        %v2857 = vmul.u32 %v2850, %v2841
        %v2858 = vadd.s32 %v2853, %v2855
        %vm2859 = vc.u32 %v2853, %v2855
        %v2860 = vadd.s32 %v2856, 1
        %v2861 = vsel %vm2859, %v2860, %v2856
        %v2862 = vadd.s32 %v2857, %v2861
        %v2863 = vadd.s32 %v2862, 536870912
        %v2864 = vshrl.u32 %v2863, 30
        %v2865 = vshll.u32 %v2864, 30
        %v2866 = vsub.s32 %v2862, %v2865
        %vm2867 = vcmp.lt.s32.totalorder %v2866, 0
        %v2868 = vsub.s32 0, %v2866
        %v2869 = vsel %vm2867, %v2868, %v2866
        %v2870 = vclz %v2869
        %v2871 = vsub.s32 %v2870, 2
        %vm2872 = vcmp.gt.s32.totalorder 0, %v2871
        %v2873 = vsel %vm2872, 0, %v2871
        %v2874 = vsub.s32 32, %v2873
        %v2875 = vshll.u32 %v2866, %v2873
        %v2876 = vshrl.u32 %v2858, %v2874
        %v2877 = vor.u32 %v2875, %v2876
        %v2878 = vsub.s32 4294967266, %v2873
        %v2879 = vadd.s32 %v2878, 127
        %v2880 = vshll.u32 %v2879, 23
        %v2881 = vor.u32 4788187, %v2880
        %v2882 = vand.u32 2147483647, %v2881
        %v2884 = vcvt.s32.f32 %v2877
        %v2885 = vmul.f32 %v2884, %v2882
        %v2886 = vxor.u32 %v2885, 2147483648
        %v2887 = vsel %vm2804, %v2886, %v2885
        %v2888 = vsub.s32 4, %v2864
        %v2889 = vsel %vm2804, %v2888, %v2864
        %v2890 = vsel %vm2803, %v2580, %v2887
        %v2891 = vsel %vm2803, 0, %v2889
        %v2892 = vcosq.f32.pop %v2890
        %v2893 = vsinq.f32.pop %v2890
        %vm2894 = vweird.f32 %v2580
        %v2895 = vadd.s32 %v2891, 3
        %v2896 = vand.u32 %v2895, 3
        %vm2897 = vcmp.lt.s32.totalorder %v2896, 2
        %vm2898 = vcmp.eq.s32.totalorder %v2896, 0
        %v2899 = vxor.u32 %v2893, 2147483648
        %v2900 = vsel %vm2898, %v2892, %v2899
        %vm2901 = vcmp.eq.s32.totalorder %v2896, 2
        %v2902 = vxor.u32 %v2892, 2147483648
        %v2903 = vsel %vm2901, %v2902, %v2893
        %v2904 = vsel %vm2897, %v2900, %v2903
        %v2905 = vsel %vm2894, nan, %v2904
        %v2906 = vand.u32 2147483647, %v2581
        %vm2907 = vcmp.le.f32.partialorder %v2906, 0.7853982
        %vm2908 = vcmp.lt.s32.totalorder %v2581, 0
        %v2909 = vand.u32 %v2581, 2139095040
        %v2910 = vshrl.u32 %v2909, 23
        %v2911 = vsub.s32 %v2910, 127
        %v2912 = vand.u32 2147483647, %v2581
        %v2913 = vand.u32 %v2912, 8388607
        %v2914 = vor.u32 %v2913, 8388608
        %v2915 = vsub.s32 0, %v2914
        %v2916 = vadd.s32 %v2911, 1
        %vm2917 = vcmp.gt.s32.totalorder %v2916, 0
        %v2918 = vsel %vm2917, %v2916, 0
        %v2919 = vshrl.u32 %v2918, 5
        %v2920 = vand.u32 %v2918, 31
        %v2921 = vsub.s32 32, %v2920
        %v2922 = vshrl.u32 683565275, %v2921
        %v2923 = vshll.u32 683565275, %v2920
        %v2924 = vshrl.u32 2475754826, %v2921
        %v2925 = vor.u32 %v2923, %v2924
        %v2926 = vshll.u32 2475754826, %v2920
        %v2927 = vshrl.u32 2131351028, %v2921
        %v2928 = vor.u32 %v2926, %v2927
        %v2929 = vshll.u32 2131351028, %v2920
        %v2930 = vshrl.u32 2102212464, %v2921
        %v2931 = vor.u32 %v2929, %v2930
        %v2932 = vshll.u32 2102212464, %v2920
        %v2933 = vshrl.u32 920167782, %v2921
        %v2934 = vor.u32 %v2932, %v2933
        %v2935 = vshll.u32 920167782, %v2920
        %v2936 = vshrl.u32 1326507024, %v2921
        %v2937 = vor.u32 %v2935, %v2936
        %vm2938 = vcmp.lt.s32.totalorder %v2919, 1
        %vm2939 = vcmp.lt.s32.totalorder %v2919, 2
        %vm2940 = vcmp.lt.s32.totalorder %v2919, 3
        %vm2941 = vcmp.lt.s32.totalorder %v2919, 4
        %v2942 = vsel %vm2938, %v2922, %v2925
        %v2943 = vsel %vm2941, %v2931, 2102212464
        %v2944 = vsel %vm2940, %v2928, %v2943
        %v2945 = vsel %vm2939, %v2942, %v2944
        %v2946 = vsel %vm2938, %v2925, %v2928
        %v2947 = vsel %vm2941, %v2934, 920167782
        %v2948 = vsel %vm2940, %v2931, %v2947
        %v2949 = vsel %vm2939, %v2946, %v2948
        %v2950 = vsel %vm2938, %v2928, %v2931
        %v2951 = vsel %vm2941, %v2937, 1326507024
        %v2952 = vsel %vm2940, %v2934, %v2951
        %v2953 = vsel %vm2939, %v2950, %v2952
        %v2954 = vshll.u32 %v2914, 8
        %v2955 = vmul.u32.u64.compose %v2954, %v2953
        %v2956 = vextract.low.u32 %v2955
        %v2957 = vextract.high.u32 %v2955
        %v2958 = vmul.u32.u64.compose %v2954, %v2949
        %v2959 = vextract.low.u32 %v2958
        %v2960 = vextract.high.u32 %v2958
        %v2961 = vmul.u32 %v2954, %v2945
        %v2962 = vadd.s32 %v2957, %v2959
        %vm2963 = vc.u32 %v2957, %v2959
        %v2964 = vadd.s32 %v2960, 1
        %v2965 = vsel %vm2963, %v2964, %v2960
        %v2966 = vadd.s32 %v2961, %v2965
        %v2967 = vadd.s32 %v2966, 536870912
        %v2968 = vshrl.u32 %v2967, 30
        %v2969 = vshll.u32 %v2968, 30
        %v2970 = vsub.s32 %v2966, %v2969
        %vm2971 = vcmp.lt.s32.totalorder %v2970, 0
        %v2972 = vsub.s32 0, %v2970
        %v2973 = vsel %vm2971, %v2972, %v2970
        %v2974 = vclz %v2973
        %v2975 = vsub.s32 %v2974, 2
        %vm2976 = vcmp.gt.s32.totalorder 0, %v2975
        %v2977 = vsel %vm2976, 0, %v2975
        %v2978 = vsub.s32 32, %v2977
        %v2979 = vshll.u32 %v2970, %v2977
        %v2980 = vshrl.u32 %v2962, %v2978
        %v2981 = vor.u32 %v2979, %v2980
        %v2982 = vsub.s32 4294967266, %v2977
        %v2983 = vadd.s32 %v2982, 127
        %v2984 = vshll.u32 %v2983, 23
        %v2985 = vor.u32 4788187, %v2984
        %v2986 = vand.u32 2147483647, %v2985
        %v2988 = vcvt.s32.f32 %v2981
        %v2989 = vmul.f32 %v2988, %v2986
        %v2990 = vxor.u32 %v2989, 2147483648
        %v2991 = vsel %vm2908, %v2990, %v2989
        %v2992 = vsub.s32 4, %v2968
        %v2993 = vsel %vm2908, %v2992, %v2968
        %v2994 = vsel %vm2907, %v2581, %v2991
        %v2995 = vsel %vm2907, 0, %v2993
        %v2996 = vcosq.f32.pop %v2994
        %v2997 = vsinq.f32.pop %v2994
        %vm2998 = vweird.f32 %v2581
        %v2999 = vadd.s32 %v2995, 3
        %v3000 = vand.u32 %v2999, 3
        %vm3001 = vcmp.lt.s32.totalorder %v3000, 2
        %vm3002 = vcmp.eq.s32.totalorder %v3000, 0
        %v3003 = vxor.u32 %v2997, 2147483648
        %v3004 = vsel %vm3002, %v2996, %v3003
        %vm3005 = vcmp.eq.s32.totalorder %v3000, 2
        %v3006 = vxor.u32 %v2996, 2147483648
        %v3007 = vsel %vm3005, %v3006, %v2997
        %v3008 = vsel %vm3001, %v3004, %v3007
        %v3009 = vsel %vm2998, nan, %v3008
        %v3010 = vand.u32 2147483647, %v2582
        %vm3011 = vcmp.le.f32.partialorder %v3010, 0.7853982
        %vm3012 = vcmp.lt.s32.totalorder %v2582, 0
        %v3013 = vand.u32 %v2582, 2139095040
        %v3014 = vshrl.u32 %v3013, 23
        %v3015 = vsub.s32 %v3014, 127
        %v3016 = vand.u32 2147483647, %v2582
        %v3017 = vand.u32 %v3016, 8388607
        %v3018 = vor.u32 %v3017, 8388608
        %v3019 = vsub.s32 0, %v3018
        %v3020 = vadd.s32 %v3015, 1
        %vm3021 = vcmp.gt.s32.totalorder %v3020, 0
        %v3022 = vsel %vm3021, %v3020, 0
        %v3023 = vshrl.u32 %v3022, 5
        %v3024 = vand.u32 %v3022, 31
        %v3025 = vsub.s32 32, %v3024
        %v3026 = vshrl.u32 683565275, %v3025
        %v3027 = vshll.u32 683565275, %v3024
        %v3028 = vshrl.u32 2475754826, %v3025
        %v3029 = vor.u32 %v3027, %v3028
        %v3030 = vshll.u32 2475754826, %v3024
        %v3031 = vshrl.u32 2131351028, %v3025
        %v3032 = vor.u32 %v3030, %v3031
        %v3033 = vshll.u32 2131351028, %v3024
        %v3034 = vshrl.u32 2102212464, %v3025
        %v3035 = vor.u32 %v3033, %v3034
        %v3036 = vshll.u32 2102212464, %v3024
        %v3037 = vshrl.u32 920167782, %v3025
        %v3038 = vor.u32 %v3036, %v3037
        %v3039 = vshll.u32 920167782, %v3024
        %v3040 = vshrl.u32 1326507024, %v3025
        %v3041 = vor.u32 %v3039, %v3040
        %vm3042 = vcmp.lt.s32.totalorder %v3023, 1
        %vm3043 = vcmp.lt.s32.totalorder %v3023, 2
        %vm3044 = vcmp.lt.s32.totalorder %v3023, 3
        %vm3045 = vcmp.lt.s32.totalorder %v3023, 4
        %v3046 = vsel %vm3042, %v3026, %v3029
        %v3047 = vsel %vm3045, %v3035, 2102212464
        %v3048 = vsel %vm3044, %v3032, %v3047
        %v3049 = vsel %vm3043, %v3046, %v3048
        %v3050 = vsel %vm3042, %v3029, %v3032
        %v3051 = vsel %vm3045, %v3038, 920167782
        %v3052 = vsel %vm3044, %v3035, %v3051
        %v3053 = vsel %vm3043, %v3050, %v3052
        %v3054 = vsel %vm3042, %v3032, %v3035
        %v3055 = vsel %vm3045, %v3041, 1326507024
        %v3056 = vsel %vm3044, %v3038, %v3055
        %v3057 = vsel %vm3043, %v3054, %v3056
        %v3058 = vshll.u32 %v3018, 8
        %v3059 = vmul.u32.u64.compose %v3058, %v3057
        %v3060 = vextract.low.u32 %v3059
        %v3061 = vextract.high.u32 %v3059
        %v3062 = vmul.u32.u64.compose %v3058, %v3053
        %v3063 = vextract.low.u32 %v3062
        %v3064 = vextract.high.u32 %v3062
        %v3065 = vmul.u32 %v3058, %v3049
        %v3066 = vadd.s32 %v3061, %v3063
        %vm3067 = vc.u32 %v3061, %v3063
        %v3068 = vadd.s32 %v3064, 1
        %v3069 = vsel %vm3067, %v3068, %v3064
        %v3070 = vadd.s32 %v3065, %v3069
        %v3071 = vadd.s32 %v3070, 536870912
        %v3072 = vshrl.u32 %v3071, 30
        %v3073 = vshll.u32 %v3072, 30
        %v3074 = vsub.s32 %v3070, %v3073
        %vm3075 = vcmp.lt.s32.totalorder %v3074, 0
        %v3076 = vsub.s32 0, %v3074
        %v3077 = vsel %vm3075, %v3076, %v3074
        %v3078 = vclz %v3077
        %v3079 = vsub.s32 %v3078, 2
        %vm3080 = vcmp.gt.s32.totalorder 0, %v3079
        %v3081 = vsel %vm3080, 0, %v3079
        %v3082 = vsub.s32 32, %v3081
        %v3083 = vshll.u32 %v3074, %v3081
        %v3084 = vshrl.u32 %v3066, %v3082
        %v3085 = vor.u32 %v3083, %v3084
        %v3086 = vsub.s32 4294967266, %v3081
        %v3087 = vadd.s32 %v3086, 127
        %v3088 = vshll.u32 %v3087, 23
        %v3089 = vor.u32 4788187, %v3088
        %v3090 = vand.u32 2147483647, %v3089
        %v3092 = vcvt.s32.f32 %v3085
        %v3093 = vmul.f32 %v3092, %v3090
        %v3094 = vxor.u32 %v3093, 2147483648
        %v3095 = vsel %vm3012, %v3094, %v3093
        %v3096 = vsub.s32 4, %v3072
        %v3097 = vsel %vm3012, %v3096, %v3072
        %v3098 = vsel %vm3011, %v2582, %v3095
        %v3099 = vsel %vm3011, 0, %v3097
        %v3100 = vcosq.f32.pop %v3098
        %v3101 = vsinq.f32.pop %v3098
        %vm3102 = vweird.f32 %v2582
        %v3103 = vadd.s32 %v3099, 3
        %v3104 = vand.u32 %v3103, 3
        %vm3105 = vcmp.lt.s32.totalorder %v3104, 2
        %vm3106 = vcmp.eq.s32.totalorder %v3104, 0
        %v3107 = vxor.u32 %v3101, 2147483648
        %v3108 = vsel %vm3106, %v3100, %v3107
        %vm3109 = vcmp.eq.s32.totalorder %v3104, 2
        %v3110 = vxor.u32 %v3100, 2147483648
        %v3111 = vsel %vm3109, %v3110, %v3101
        %v3112 = vsel %vm3105, %v3108, %v3111
        %v3113 = vsel %vm3102, nan, %v3112
        %v3114 = vand.u32 2147483647, %v2583
        %vm3115 = vcmp.le.f32.partialorder %v3114, 0.7853982
        %vm3116 = vcmp.lt.s32.totalorder %v2583, 0
        %v3117 = vand.u32 %v2583, 2139095040
        %v3118 = vshrl.u32 %v3117, 23
        %v3119 = vsub.s32 %v3118, 127
        %v3120 = vand.u32 2147483647, %v2583
        %v3121 = vand.u32 %v3120, 8388607
        %v3122 = vor.u32 %v3121, 8388608
        %v3123 = vsub.s32 0, %v3122
        %v3124 = vadd.s32 %v3119, 1
        %vm3125 = vcmp.gt.s32.totalorder %v3124, 0
        %v3126 = vsel %vm3125, %v3124, 0
        %v3127 = vshrl.u32 %v3126, 5
        %v3128 = vand.u32 %v3126, 31
        %v3129 = vsub.s32 32, %v3128
        %v3130 = vshrl.u32 683565275, %v3129
        %v3131 = vshll.u32 683565275, %v3128
        %v3132 = vshrl.u32 2475754826, %v3129
        %v3133 = vor.u32 %v3131, %v3132
        %v3134 = vshll.u32 2475754826, %v3128
        %v3135 = vshrl.u32 2131351028, %v3129
        %v3136 = vor.u32 %v3134, %v3135
        %v3137 = vshll.u32 2131351028, %v3128
        %v3138 = vshrl.u32 2102212464, %v3129
        %v3139 = vor.u32 %v3137, %v3138
        %v3140 = vshll.u32 2102212464, %v3128
        %v3141 = vshrl.u32 920167782, %v3129
        %v3142 = vor.u32 %v3140, %v3141
        %v3143 = vshll.u32 920167782, %v3128
        %v3144 = vshrl.u32 1326507024, %v3129
        %v3145 = vor.u32 %v3143, %v3144
        %vm3146 = vcmp.lt.s32.totalorder %v3127, 1
        %vm3147 = vcmp.lt.s32.totalorder %v3127, 2
        %vm3148 = vcmp.lt.s32.totalorder %v3127, 3
        %vm3149 = vcmp.lt.s32.totalorder %v3127, 4
        %v3150 = vsel %vm3146, %v3130, %v3133
        %v3151 = vsel %vm3149, %v3139, 2102212464
        %v3152 = vsel %vm3148, %v3136, %v3151
        %v3153 = vsel %vm3147, %v3150, %v3152
        %v3154 = vsel %vm3146, %v3133, %v3136
        %v3155 = vsel %vm3149, %v3142, 920167782
        %v3156 = vsel %vm3148, %v3139, %v3155
        %v3157 = vsel %vm3147, %v3154, %v3156
        %v3158 = vsel %vm3146, %v3136, %v3139
        %v3159 = vsel %vm3149, %v3145, 1326507024
        %v3160 = vsel %vm3148, %v3142, %v3159
        %v3161 = vsel %vm3147, %v3158, %v3160
        %v3162 = vshll.u32 %v3122, 8
        %v3163 = vmul.u32.u64.compose %v3162, %v3161
        %v3164 = vextract.low.u32 %v3163
        %v3165 = vextract.high.u32 %v3163
        %v3166 = vmul.u32.u64.compose %v3162, %v3157
        %v3167 = vextract.low.u32 %v3166
        %v3168 = vextract.high.u32 %v3166
        %v3169 = vmul.u32 %v3162, %v3153
        %v3170 = vadd.s32 %v3165, %v3167
        %vm3171 = vc.u32 %v3165, %v3167
        %v3172 = vadd.s32 %v3168, 1
        %v3173 = vsel %vm3171, %v3172, %v3168
        %v3174 = vadd.s32 %v3169, %v3173
        %v3175 = vadd.s32 %v3174, 536870912
        %v3176 = vshrl.u32 %v3175, 30
        %v3177 = vshll.u32 %v3176, 30
        %v3178 = vsub.s32 %v3174, %v3177
        %vm3179 = vcmp.lt.s32.totalorder %v3178, 0
        %v3180 = vsub.s32 0, %v3178
        %v3181 = vsel %vm3179, %v3180, %v3178
        %v3182 = vclz %v3181
        %v3183 = vsub.s32 %v3182, 2
        %vm3184 = vcmp.gt.s32.totalorder 0, %v3183
        %v3185 = vsel %vm3184, 0, %v3183
        %v3186 = vsub.s32 32, %v3185
        %v3187 = vshll.u32 %v3178, %v3185
        %v3188 = vshrl.u32 %v3170, %v3186
        %v3189 = vor.u32 %v3187, %v3188
        %v3190 = vsub.s32 4294967266, %v3185
        %v3191 = vadd.s32 %v3190, 127
        %v3192 = vshll.u32 %v3191, 23
        %v3193 = vor.u32 4788187, %v3192
        %v3194 = vand.u32 2147483647, %v3193
        %v3196 = vcvt.s32.f32 %v3189
        %v3197 = vmul.f32 %v3196, %v3194
        %v3198 = vxor.u32 %v3197, 2147483648
        %v3199 = vsel %vm3116, %v3198, %v3197
        %v3200 = vsub.s32 4, %v3176
        %v3201 = vsel %vm3116, %v3200, %v3176
        %v3202 = vsel %vm3115, %v2583, %v3199
        %v3203 = vsel %vm3115, 0, %v3201
        %v3204 = vcosq.f32.pop %v3202
        %v3205 = vsinq.f32.pop %v3202
        %vm3206 = vweird.f32 %v2583
        %v3207 = vadd.s32 %v3203, 3
        %v3208 = vand.u32 %v3207, 3
        %vm3209 = vcmp.lt.s32.totalorder %v3208, 2
        %vm3210 = vcmp.eq.s32.totalorder %v3208, 0
        %v3211 = vxor.u32 %v3205, 2147483648
        %v3212 = vsel %vm3210, %v3204, %v3211
        %vm3213 = vcmp.eq.s32.totalorder %v3208, 2
        %v3214 = vxor.u32 %v3204, 2147483648
        %v3215 = vsel %vm3213, %v3214, %v3205
        %v3216 = vsel %vm3209, %v3212, %v3215
        %v3217 = vsel %vm3206, nan, %v3216
        %v3218 = vand.u32 2147483647, %v2584
        %vm3219 = vcmp.le.f32.partialorder %v3218, 0.7853982
        %vm3220 = vcmp.lt.s32.totalorder %v2584, 0
        %v3221 = vand.u32 %v2584, 2139095040
        %v3222 = vshrl.u32 %v3221, 23
        %v3223 = vsub.s32 %v3222, 127
        %v3224 = vand.u32 2147483647, %v2584
        %v3225 = vand.u32 %v3224, 8388607
        %v3226 = vor.u32 %v3225, 8388608
        %v3227 = vsub.s32 0, %v3226
        %v3228 = vadd.s32 %v3223, 1
        %vm3229 = vcmp.gt.s32.totalorder %v3228, 0
        %v3230 = vsel %vm3229, %v3228, 0
        %v3231 = vshrl.u32 %v3230, 5
        %v3232 = vand.u32 %v3230, 31
        %v3233 = vsub.s32 32, %v3232
        %v3234 = vshrl.u32 683565275, %v3233
        %v3235 = vshll.u32 683565275, %v3232
        %v3236 = vshrl.u32 2475754826, %v3233
        %v3237 = vor.u32 %v3235, %v3236
        %v3238 = vshll.u32 2475754826, %v3232
        %v3239 = vshrl.u32 2131351028, %v3233
        %v3240 = vor.u32 %v3238, %v3239
        %v3241 = vshll.u32 2131351028, %v3232
        %v3242 = vshrl.u32 2102212464, %v3233
        %v3243 = vor.u32 %v3241, %v3242
        %v3244 = vshll.u32 2102212464, %v3232
        %v3245 = vshrl.u32 920167782, %v3233
        %v3246 = vor.u32 %v3244, %v3245
        %v3247 = vshll.u32 920167782, %v3232
        %v3248 = vshrl.u32 1326507024, %v3233
        %v3249 = vor.u32 %v3247, %v3248
        %vm3250 = vcmp.lt.s32.totalorder %v3231, 1
        %vm3251 = vcmp.lt.s32.totalorder %v3231, 2
        %vm3252 = vcmp.lt.s32.totalorder %v3231, 3
        %vm3253 = vcmp.lt.s32.totalorder %v3231, 4
        %v3254 = vsel %vm3250, %v3234, %v3237
        %v3255 = vsel %vm3253, %v3243, 2102212464
        %v3256 = vsel %vm3252, %v3240, %v3255
        %v3257 = vsel %vm3251, %v3254, %v3256
        %v3258 = vsel %vm3250, %v3237, %v3240
        %v3259 = vsel %vm3253, %v3246, 920167782
        %v3260 = vsel %vm3252, %v3243, %v3259
        %v3261 = vsel %vm3251, %v3258, %v3260
        %v3262 = vsel %vm3250, %v3240, %v3243
        %v3263 = vsel %vm3253, %v3249, 1326507024
        %v3264 = vsel %vm3252, %v3246, %v3263
        %v3265 = vsel %vm3251, %v3262, %v3264
        %v3266 = vshll.u32 %v3226, 8
        %v3267 = vmul.u32.u64.compose %v3266, %v3265
        %v3268 = vextract.low.u32 %v3267
        %v3269 = vextract.high.u32 %v3267
        %v3270 = vmul.u32.u64.compose %v3266, %v3261
        %v3271 = vextract.low.u32 %v3270
        %v3272 = vextract.high.u32 %v3270
        %v3273 = vmul.u32 %v3266, %v3257
        %v3274 = vadd.s32 %v3269, %v3271
        %vm3275 = vc.u32 %v3269, %v3271
        %v3276 = vadd.s32 %v3272, 1
        %v3277 = vsel %vm3275, %v3276, %v3272
        %v3278 = vadd.s32 %v3273, %v3277
        %v3279 = vadd.s32 %v3278, 536870912
        %v3280 = vshrl.u32 %v3279, 30
        %v3281 = vshll.u32 %v3280, 30
        %v3282 = vsub.s32 %v3278, %v3281
        %vm3283 = vcmp.lt.s32.totalorder %v3282, 0
        %v3284 = vsub.s32 0, %v3282
        %v3285 = vsel %vm3283, %v3284, %v3282
        %v3286 = vclz %v3285
        %v3287 = vsub.s32 %v3286, 2
        %vm3288 = vcmp.gt.s32.totalorder 0, %v3287
        %v3289 = vsel %vm3288, 0, %v3287
        %v3290 = vsub.s32 32, %v3289
        %v3291 = vshll.u32 %v3282, %v3289
        %v3292 = vshrl.u32 %v3274, %v3290
        %v3293 = vor.u32 %v3291, %v3292
        %v3294 = vsub.s32 4294967266, %v3289
        %v3295 = vadd.s32 %v3294, 127
        %v3296 = vshll.u32 %v3295, 23
        %v3297 = vor.u32 4788187, %v3296
        %v3298 = vand.u32 2147483647, %v3297
        %v3300 = vcvt.s32.f32 %v3293
        %v3301 = vmul.f32 %v3300, %v3298
        %v3302 = vxor.u32 %v3301, 2147483648
        %v3303 = vsel %vm3220, %v3302, %v3301
        %v3304 = vsub.s32 4, %v3280
        %v3305 = vsel %vm3220, %v3304, %v3280
        %v3306 = vsel %vm3219, %v2584, %v3303
        %v3307 = vsel %vm3219, 0, %v3305
        %v3308 = vcosq.f32.pop %v3306
        %v3309 = vsinq.f32.pop %v3306
        %vm3310 = vweird.f32 %v2584
        %v3311 = vadd.s32 %v3307, 3
        %v3312 = vand.u32 %v3311, 3
        %vm3313 = vcmp.lt.s32.totalorder %v3312, 2
        %vm3314 = vcmp.eq.s32.totalorder %v3312, 0
        %v3315 = vxor.u32 %v3309, 2147483648
        %v3316 = vsel %vm3314, %v3308, %v3315
        %vm3317 = vcmp.eq.s32.totalorder %v3312, 2
        %v3318 = vxor.u32 %v3308, 2147483648
        %v3319 = vsel %vm3317, %v3318, %v3309
        %v3320 = vsel %vm3313, %v3316, %v3319
        %v3321 = vsel %vm3310, nan, %v3320
        %v3322 = vand.u32 2147483647, %v2585
        %vm3323 = vcmp.le.f32.partialorder %v3322, 0.7853982
        %vm3324 = vcmp.lt.s32.totalorder %v2585, 0
        %v3325 = vand.u32 %v2585, 2139095040
        %v3326 = vshrl.u32 %v3325, 23
        %v3327 = vsub.s32 %v3326, 127
        %v3328 = vand.u32 2147483647, %v2585
        %v3329 = vand.u32 %v3328, 8388607
        %v3330 = vor.u32 %v3329, 8388608
        %v3331 = vsub.s32 0, %v3330
        %v3332 = vadd.s32 %v3327, 1
        %vm3333 = vcmp.gt.s32.totalorder %v3332, 0
        %v3334 = vsel %vm3333, %v3332, 0
        %v3335 = vshrl.u32 %v3334, 5
        %v3336 = vand.u32 %v3334, 31
        %v3337 = vsub.s32 32, %v3336
        %v3338 = vshrl.u32 683565275, %v3337
        %v3339 = vshll.u32 683565275, %v3336
        %v3340 = vshrl.u32 2475754826, %v3337
        %v3341 = vor.u32 %v3339, %v3340
        %v3342 = vshll.u32 2475754826, %v3336
        %v3343 = vshrl.u32 2131351028, %v3337
        %v3344 = vor.u32 %v3342, %v3343
        %v3345 = vshll.u32 2131351028, %v3336
        %v3346 = vshrl.u32 2102212464, %v3337
        %v3347 = vor.u32 %v3345, %v3346
        %v3348 = vshll.u32 2102212464, %v3336
        %v3349 = vshrl.u32 920167782, %v3337
        %v3350 = vor.u32 %v3348, %v3349
        %v3351 = vshll.u32 920167782, %v3336
        %v3352 = vshrl.u32 1326507024, %v3337
        %v3353 = vor.u32 %v3351, %v3352
        %vm3354 = vcmp.lt.s32.totalorder %v3335, 1
        %vm3355 = vcmp.lt.s32.totalorder %v3335, 2
        %vm3356 = vcmp.lt.s32.totalorder %v3335, 3
        %vm3357 = vcmp.lt.s32.totalorder %v3335, 4
        %v3358 = vsel %vm3354, %v3338, %v3341
        %v3359 = vsel %vm3357, %v3347, 2102212464
        %v3360 = vsel %vm3356, %v3344, %v3359
        %v3361 = vsel %vm3355, %v3358, %v3360
        %v3362 = vsel %vm3354, %v3341, %v3344
        %v3363 = vsel %vm3357, %v3350, 920167782
        %v3364 = vsel %vm3356, %v3347, %v3363
        %v3365 = vsel %vm3355, %v3362, %v3364
        %v3366 = vsel %vm3354, %v3344, %v3347
        %v3367 = vsel %vm3357, %v3353, 1326507024
        %v3368 = vsel %vm3356, %v3350, %v3367
        %v3369 = vsel %vm3355, %v3366, %v3368
        %v3370 = vshll.u32 %v3330, 8
        %v3371 = vmul.u32.u64.compose %v3370, %v3369
        %v3372 = vextract.low.u32 %v3371
        %v3373 = vextract.high.u32 %v3371
        %v3374 = vmul.u32.u64.compose %v3370, %v3365
        %v3375 = vextract.low.u32 %v3374
        %v3376 = vextract.high.u32 %v3374
        %v3377 = vmul.u32 %v3370, %v3361
        %v3378 = vadd.s32 %v3373, %v3375
        %vm3379 = vc.u32 %v3373, %v3375
        %v3380 = vadd.s32 %v3376, 1
        %v3381 = vsel %vm3379, %v3380, %v3376
        %v3382 = vadd.s32 %v3377, %v3381
        %v3383 = vadd.s32 %v3382, 536870912
        %v3384 = vshrl.u32 %v3383, 30
        %v3385 = vshll.u32 %v3384, 30
        %v3386 = vsub.s32 %v3382, %v3385
        %vm3387 = vcmp.lt.s32.totalorder %v3386, 0
        %v3388 = vsub.s32 0, %v3386
        %v3389 = vsel %vm3387, %v3388, %v3386
        %v3390 = vclz %v3389
        %v3391 = vsub.s32 %v3390, 2
        %vm3392 = vcmp.gt.s32.totalorder 0, %v3391
        %v3393 = vsel %vm3392, 0, %v3391
        %v3394 = vsub.s32 32, %v3393
        %v3395 = vshll.u32 %v3386, %v3393
        %v3396 = vshrl.u32 %v3378, %v3394
        %v3397 = vor.u32 %v3395, %v3396
        %v3398 = vsub.s32 4294967266, %v3393
        %v3399 = vadd.s32 %v3398, 127
        %v3400 = vshll.u32 %v3399, 23
        %v3401 = vor.u32 4788187, %v3400
        %v3402 = vand.u32 2147483647, %v3401
        %v3404 = vcvt.s32.f32 %v3397
        %v3405 = vmul.f32 %v3404, %v3402
        %v3406 = vxor.u32 %v3405, 2147483648
        %v3407 = vsel %vm3324, %v3406, %v3405
        %v3408 = vsub.s32 4, %v3384
        %v3409 = vsel %vm3324, %v3408, %v3384
        %v3410 = vsel %vm3323, %v2585, %v3407
        %v3411 = vsel %vm3323, 0, %v3409
        %v3412 = vcosq.f32.pop %v3410
        %v3413 = vsinq.f32.pop %v3410
        %vm3414 = vweird.f32 %v2585
        %v3415 = vadd.s32 %v3411, 3
        %v3416 = vand.u32 %v3415, 3
        %vm3417 = vcmp.lt.s32.totalorder %v3416, 2
        %vm3418 = vcmp.eq.s32.totalorder %v3416, 0
        %v3419 = vxor.u32 %v3413, 2147483648
        %v3420 = vsel %vm3418, %v3412, %v3419
        %vm3421 = vcmp.eq.s32.totalorder %v3416, 2
        %v3422 = vxor.u32 %v3412, 2147483648
        %v3423 = vsel %vm3421, %v3422, %v3413
        %v3424 = vsel %vm3417, %v3420, %v3423
        %v3425 = vsel %vm3414, nan, %v3424
        %v3426 = vand.u32 2147483647, %v2586
        %vm3427 = vcmp.le.f32.partialorder %v3426, 0.7853982
        %vm3428 = vcmp.lt.s32.totalorder %v2586, 0
        %v3429 = vand.u32 %v2586, 2139095040
        %v3430 = vshrl.u32 %v3429, 23
        %v3431 = vsub.s32 %v3430, 127
        %v3432 = vand.u32 2147483647, %v2586
        %v3433 = vand.u32 %v3432, 8388607
        %v3434 = vor.u32 %v3433, 8388608
        %v3435 = vsub.s32 0, %v3434
        %v3436 = vadd.s32 %v3431, 1
        %vm3437 = vcmp.gt.s32.totalorder %v3436, 0
        %v3438 = vsel %vm3437, %v3436, 0
        %v3439 = vshrl.u32 %v3438, 5
        %v3440 = vand.u32 %v3438, 31
        %v3441 = vsub.s32 32, %v3440
        %v3442 = vshrl.u32 683565275, %v3441
        %v3443 = vshll.u32 683565275, %v3440
        %v3444 = vshrl.u32 2475754826, %v3441
        %v3445 = vor.u32 %v3443, %v3444
        %v3446 = vshll.u32 2475754826, %v3440
        %v3447 = vshrl.u32 2131351028, %v3441
        %v3448 = vor.u32 %v3446, %v3447
        %v3449 = vshll.u32 2131351028, %v3440
        %v3450 = vshrl.u32 2102212464, %v3441
        %v3451 = vor.u32 %v3449, %v3450
        %v3452 = vshll.u32 2102212464, %v3440
        %v3453 = vshrl.u32 920167782, %v3441
        %v3454 = vor.u32 %v3452, %v3453
        %v3455 = vshll.u32 920167782, %v3440
        %v3456 = vshrl.u32 1326507024, %v3441
        %v3457 = vor.u32 %v3455, %v3456
        %vm3458 = vcmp.lt.s32.totalorder %v3439, 1
        %vm3459 = vcmp.lt.s32.totalorder %v3439, 2
        %vm3460 = vcmp.lt.s32.totalorder %v3439, 3
        %vm3461 = vcmp.lt.s32.totalorder %v3439, 4
        %v3462 = vsel %vm3458, %v3442, %v3445
        %v3463 = vsel %vm3461, %v3451, 2102212464
        %v3464 = vsel %vm3460, %v3448, %v3463
        %v3465 = vsel %vm3459, %v3462, %v3464
        %v3466 = vsel %vm3458, %v3445, %v3448
        %v3467 = vsel %vm3461, %v3454, 920167782
        %v3468 = vsel %vm3460, %v3451, %v3467
        %v3469 = vsel %vm3459, %v3466, %v3468
        %v3470 = vsel %vm3458, %v3448, %v3451
        %v3471 = vsel %vm3461, %v3457, 1326507024
        %v3472 = vsel %vm3460, %v3454, %v3471
        %v3473 = vsel %vm3459, %v3470, %v3472
        %v3474 = vshll.u32 %v3434, 8
        %v3475 = vmul.u32.u64.compose %v3474, %v3473
        %v3476 = vextract.low.u32 %v3475
        %v3477 = vextract.high.u32 %v3475
        %v3478 = vmul.u32.u64.compose %v3474, %v3469
        %v3479 = vextract.low.u32 %v3478
        %v3480 = vextract.high.u32 %v3478
        %v3481 = vmul.u32 %v3474, %v3465
        %v3482 = vadd.s32 %v3477, %v3479
        %vm3483 = vc.u32 %v3477, %v3479
        %v3484 = vadd.s32 %v3480, 1
        %v3485 = vsel %vm3483, %v3484, %v3480
        %v3486 = vadd.s32 %v3481, %v3485
        %v3487 = vadd.s32 %v3486, 536870912
        %v3488 = vshrl.u32 %v3487, 30
        %v3489 = vshll.u32 %v3488, 30
        %v3490 = vsub.s32 %v3486, %v3489
        %vm3491 = vcmp.lt.s32.totalorder %v3490, 0
        %v3492 = vsub.s32 0, %v3490
        %v3493 = vsel %vm3491, %v3492, %v3490
        %v3494 = vclz %v3493
        %v3495 = vsub.s32 %v3494, 2
        %vm3496 = vcmp.gt.s32.totalorder 0, %v3495
        %v3497 = vsel %vm3496, 0, %v3495
        %v3498 = vsub.s32 32, %v3497
        %v3499 = vshll.u32 %v3490, %v3497
        %v3500 = vshrl.u32 %v3482, %v3498
        %v3501 = vor.u32 %v3499, %v3500
        %v3502 = vsub.s32 4294967266, %v3497
        %v3503 = vadd.s32 %v3502, 127
        %v3504 = vshll.u32 %v3503, 23
        %v3505 = vor.u32 4788187, %v3504
        %v3506 = vand.u32 2147483647, %v3505
        %v3508 = vcvt.s32.f32 %v3501
        %v3509 = vmul.f32 %v3508, %v3506
        %v3510 = vxor.u32 %v3509, 2147483648
        %v3511 = vsel %vm3428, %v3510, %v3509
        %v3512 = vsub.s32 4, %v3488
        %v3513 = vsel %vm3428, %v3512, %v3488
        %v3514 = vsel %vm3427, %v2586, %v3511
        %v3515 = vsel %vm3427, 0, %v3513
        %v3516 = vcosq.f32.pop %v3514
        %v3517 = vsinq.f32.pop %v3514
        %vm3518 = vweird.f32 %v2586
        %v3519 = vadd.s32 %v3515, 3
        %v3520 = vand.u32 %v3519, 3
        %vm3521 = vcmp.lt.s32.totalorder %v3520, 2
        %vm3522 = vcmp.eq.s32.totalorder %v3520, 0
        %v3523 = vxor.u32 %v3517, 2147483648
        %v3524 = vsel %vm3522, %v3516, %v3523
        %vm3525 = vcmp.eq.s32.totalorder %v3520, 2
        %v3526 = vxor.u32 %v3516, 2147483648
        %v3527 = vsel %vm3525, %v3526, %v3517
        %v3528 = vsel %vm3521, %v3524, %v3527
        %v3529 = vsel %vm3518, nan, %v3528
        %v3530 = vand.u32 2147483647, %v2587
        %vm3531 = vcmp.le.f32.partialorder %v3530, 0.7853982
        %vm3532 = vcmp.lt.s32.totalorder %v2587, 0
        %v3533 = vand.u32 %v2587, 2139095040
        %v3534 = vshrl.u32 %v3533, 23
        %v3535 = vsub.s32 %v3534, 127
        %v3536 = vand.u32 2147483647, %v2587
        %v3537 = vand.u32 %v3536, 8388607
        %v3538 = vor.u32 %v3537, 8388608
        %v3539 = vsub.s32 0, %v3538
        %v3540 = vadd.s32 %v3535, 1
        %vm3541 = vcmp.gt.s32.totalorder %v3540, 0
        %v3542 = vsel %vm3541, %v3540, 0
        %v3543 = vshrl.u32 %v3542, 5
        %v3544 = vand.u32 %v3542, 31
        %v3545 = vsub.s32 32, %v3544
        %v3546 = vshrl.u32 683565275, %v3545
        %v3547 = vshll.u32 683565275, %v3544
        %v3548 = vshrl.u32 2475754826, %v3545
        %v3549 = vor.u32 %v3547, %v3548
        %v3550 = vshll.u32 2475754826, %v3544
        %v3551 = vshrl.u32 2131351028, %v3545
        %v3552 = vor.u32 %v3550, %v3551
        %v3553 = vshll.u32 2131351028, %v3544
        %v3554 = vshrl.u32 2102212464, %v3545
        %v3555 = vor.u32 %v3553, %v3554
        %v3556 = vshll.u32 2102212464, %v3544
        %v3557 = vshrl.u32 920167782, %v3545
        %v3558 = vor.u32 %v3556, %v3557
        %v3559 = vshll.u32 920167782, %v3544
        %v3560 = vshrl.u32 1326507024, %v3545
        %v3561 = vor.u32 %v3559, %v3560
        %vm3562 = vcmp.lt.s32.totalorder %v3543, 1
        %vm3563 = vcmp.lt.s32.totalorder %v3543, 2
        %vm3564 = vcmp.lt.s32.totalorder %v3543, 3
        %vm3565 = vcmp.lt.s32.totalorder %v3543, 4
        %v3566 = vsel %vm3562, %v3546, %v3549
        %v3567 = vsel %vm3565, %v3555, 2102212464
        %v3568 = vsel %vm3564, %v3552, %v3567
        %v3569 = vsel %vm3563, %v3566, %v3568
        %v3570 = vsel %vm3562, %v3549, %v3552
        %v3571 = vsel %vm3565, %v3558, 920167782
        %v3572 = vsel %vm3564, %v3555, %v3571
        %v3573 = vsel %vm3563, %v3570, %v3572
        %v3574 = vsel %vm3562, %v3552, %v3555
        %v3575 = vsel %vm3565, %v3561, 1326507024
        %v3576 = vsel %vm3564, %v3558, %v3575
        %v3577 = vsel %vm3563, %v3574, %v3576
        %v3578 = vshll.u32 %v3538, 8
        %v3579 = vmul.u32.u64.compose %v3578, %v3577
        %v3580 = vextract.low.u32 %v3579
        %v3581 = vextract.high.u32 %v3579
        %v3582 = vmul.u32.u64.compose %v3578, %v3573
        %v3583 = vextract.low.u32 %v3582
        %v3584 = vextract.high.u32 %v3582
        %v3585 = vmul.u32 %v3578, %v3569
        %v3586 = vadd.s32 %v3581, %v3583
        %vm3587 = vc.u32 %v3581, %v3583
        %v3588 = vadd.s32 %v3584, 1
        %v3589 = vsel %vm3587, %v3588, %v3584
        %v3590 = vadd.s32 %v3585, %v3589
        %v3591 = vadd.s32 %v3590, 536870912
        %v3592 = vshrl.u32 %v3591, 30
        %v3593 = vshll.u32 %v3592, 30
        %v3594 = vsub.s32 %v3590, %v3593
        %vm3595 = vcmp.lt.s32.totalorder %v3594, 0
        %v3596 = vsub.s32 0, %v3594
        %v3597 = vsel %vm3595, %v3596, %v3594
        %v3598 = vclz %v3597
        %v3599 = vsub.s32 %v3598, 2
        %vm3600 = vcmp.gt.s32.totalorder 0, %v3599
        %v3601 = vsel %vm3600, 0, %v3599
        %v3602 = vsub.s32 32, %v3601
        %v3603 = vshll.u32 %v3594, %v3601
        %v3604 = vshrl.u32 %v3586, %v3602
        %v3605 = vor.u32 %v3603, %v3604
        %v3606 = vsub.s32 4294967266, %v3601
        %v3607 = vadd.s32 %v3606, 127
        %v3608 = vshll.u32 %v3607, 23
        %v3609 = vor.u32 4788187, %v3608
        %v3610 = vand.u32 2147483647, %v3609
        %v3612 = vcvt.s32.f32 %v3605
        %v3613 = vmul.f32 %v3612, %v3610
        %v3614 = vxor.u32 %v3613, 2147483648
        %v3615 = vsel %vm3532, %v3614, %v3613
        %v3616 = vsub.s32 4, %v3592
        %v3617 = vsel %vm3532, %v3616, %v3592
        %v3618 = vsel %vm3531, %v2587, %v3615
        %v3619 = vsel %vm3531, 0, %v3617
        %v3620 = vcosq.f32.pop %v3618
        %v3621 = vsinq.f32.pop %v3618
        %vm3622 = vweird.f32 %v2587
        %v3623 = vadd.s32 %v3619, 3
        %v3624 = vand.u32 %v3623, 3
        %vm3625 = vcmp.lt.s32.totalorder %v3624, 2
        %vm3626 = vcmp.eq.s32.totalorder %v3624, 0
        %v3627 = vxor.u32 %v3621, 2147483648
        %v3628 = vsel %vm3626, %v3620, %v3627
        %vm3629 = vcmp.eq.s32.totalorder %v3624, 2
        %v3630 = vxor.u32 %v3620, 2147483648
        %v3631 = vsel %vm3629, %v3630, %v3621
        %v3632 = vsel %vm3625, %v3628, %v3631
        %v3633 = vsel %vm3622, nan, %v3632
        %v3634 = vand.u32 2147483647, %v2588
        %vm3635 = vcmp.le.f32.partialorder %v3634, 0.7853982
        %vm3636 = vcmp.lt.s32.totalorder %v2588, 0
        %v3637 = vand.u32 %v2588, 2139095040
        %v3638 = vshrl.u32 %v3637, 23
        %v3639 = vsub.s32 %v3638, 127
        %v3640 = vand.u32 2147483647, %v2588
        %v3641 = vand.u32 %v3640, 8388607
        %v3642 = vor.u32 %v3641, 8388608
        %v3643 = vsub.s32 0, %v3642
        %v3644 = vadd.s32 %v3639, 1
        %vm3645 = vcmp.gt.s32.totalorder %v3644, 0
        %v3646 = vsel %vm3645, %v3644, 0
        %v3647 = vshrl.u32 %v3646, 5
        %v3648 = vand.u32 %v3646, 31
        %v3649 = vsub.s32 32, %v3648
        %v3650 = vshrl.u32 683565275, %v3649
        %v3651 = vshll.u32 683565275, %v3648
        %v3652 = vshrl.u32 2475754826, %v3649
        %v3653 = vor.u32 %v3651, %v3652
        %v3654 = vshll.u32 2475754826, %v3648
        %v3655 = vshrl.u32 2131351028, %v3649
        %v3656 = vor.u32 %v3654, %v3655
        %v3657 = vshll.u32 2131351028, %v3648
        %v3658 = vshrl.u32 2102212464, %v3649
        %v3659 = vor.u32 %v3657, %v3658
        %v3660 = vshll.u32 2102212464, %v3648
        %v3661 = vshrl.u32 920167782, %v3649
        %v3662 = vor.u32 %v3660, %v3661
        %v3663 = vshll.u32 920167782, %v3648
        %v3664 = vshrl.u32 1326507024, %v3649
        %v3665 = vor.u32 %v3663, %v3664
        %vm3666 = vcmp.lt.s32.totalorder %v3647, 1
        %vm3667 = vcmp.lt.s32.totalorder %v3647, 2
        %vm3668 = vcmp.lt.s32.totalorder %v3647, 3
        %vm3669 = vcmp.lt.s32.totalorder %v3647, 4
        %v3670 = vsel %vm3666, %v3650, %v3653
        %v3671 = vsel %vm3669, %v3659, 2102212464
        %v3672 = vsel %vm3668, %v3656, %v3671
        %v3673 = vsel %vm3667, %v3670, %v3672
        %v3674 = vsel %vm3666, %v3653, %v3656
        %v3675 = vsel %vm3669, %v3662, 920167782
        %v3676 = vsel %vm3668, %v3659, %v3675
        %v3677 = vsel %vm3667, %v3674, %v3676
        %v3678 = vsel %vm3666, %v3656, %v3659
        %v3679 = vsel %vm3669, %v3665, 1326507024
        %v3680 = vsel %vm3668, %v3662, %v3679
        %v3681 = vsel %vm3667, %v3678, %v3680
        %v3682 = vshll.u32 %v3642, 8
        %v3683 = vmul.u32.u64.compose %v3682, %v3681
        %v3684 = vextract.low.u32 %v3683
        %v3685 = vextract.high.u32 %v3683
        %v3686 = vmul.u32.u64.compose %v3682, %v3677
        %v3687 = vextract.low.u32 %v3686
        %v3688 = vextract.high.u32 %v3686
        %v3689 = vmul.u32 %v3682, %v3673
        %v3690 = vadd.s32 %v3685, %v3687
        %vm3691 = vc.u32 %v3685, %v3687
        %v3692 = vadd.s32 %v3688, 1
        %v3693 = vsel %vm3691, %v3692, %v3688
        %v3694 = vadd.s32 %v3689, %v3693
        %v3695 = vadd.s32 %v3694, 536870912
        %v3696 = vshrl.u32 %v3695, 30
        %v3697 = vshll.u32 %v3696, 30
        %v3698 = vsub.s32 %v3694, %v3697
        %vm3699 = vcmp.lt.s32.totalorder %v3698, 0
        %v3700 = vsub.s32 0, %v3698
        %v3701 = vsel %vm3699, %v3700, %v3698
        %v3702 = vclz %v3701
        %v3703 = vsub.s32 %v3702, 2
        %vm3704 = vcmp.gt.s32.totalorder 0, %v3703
        %v3705 = vsel %vm3704, 0, %v3703
        %v3706 = vsub.s32 32, %v3705
        %v3707 = vshll.u32 %v3698, %v3705
        %v3708 = vshrl.u32 %v3690, %v3706
        %v3709 = vor.u32 %v3707, %v3708
        %v3710 = vsub.s32 4294967266, %v3705
        %v3711 = vadd.s32 %v3710, 127
        %v3712 = vshll.u32 %v3711, 23
        %v3713 = vor.u32 4788187, %v3712
        %v3714 = vand.u32 2147483647, %v3713
        %v3716 = vcvt.s32.f32 %v3709
        %v3717 = vmul.f32 %v3716, %v3714
        %v3718 = vxor.u32 %v3717, 2147483648
        %v3719 = vsel %vm3636, %v3718, %v3717
        %v3720 = vsub.s32 4, %v3696
        %v3721 = vsel %vm3636, %v3720, %v3696
        %v3722 = vsel %vm3635, %v2588, %v3719
        %v3723 = vsel %vm3635, 0, %v3721
        %v3724 = vcosq.f32.pop %v3722
        %v3725 = vsinq.f32.pop %v3722
        %vm3726 = vweird.f32 %v2588
        %v3727 = vadd.s32 %v3723, 3
        %v3728 = vand.u32 %v3727, 3
        %vm3729 = vcmp.lt.s32.totalorder %v3728, 2
        %vm3730 = vcmp.eq.s32.totalorder %v3728, 0
        %v3731 = vxor.u32 %v3725, 2147483648
        %v3732 = vsel %vm3730, %v3724, %v3731
        %vm3733 = vcmp.eq.s32.totalorder %v3728, 2
        %v3734 = vxor.u32 %v3724, 2147483648
        %v3735 = vsel %vm3733, %v3734, %v3725
        %v3736 = vsel %vm3729, %v3732, %v3735
        %v3737 = vsel %vm3726, nan, %v3736
        %v3738 = vand.u32 2147483647, %v2589
        %vm3739 = vcmp.le.f32.partialorder %v3738, 0.7853982
        %vm3740 = vcmp.lt.s32.totalorder %v2589, 0
        %v3741 = vand.u32 %v2589, 2139095040
        %v3742 = vshrl.u32 %v3741, 23
        %v3743 = vsub.s32 %v3742, 127
        %v3744 = vand.u32 2147483647, %v2589
        %v3745 = vand.u32 %v3744, 8388607
        %v3746 = vor.u32 %v3745, 8388608
        %v3747 = vsub.s32 0, %v3746
        %v3748 = vadd.s32 %v3743, 1
        %vm3749 = vcmp.gt.s32.totalorder %v3748, 0
        %v3750 = vsel %vm3749, %v3748, 0
        %v3751 = vshrl.u32 %v3750, 5
        %v3752 = vand.u32 %v3750, 31
        %v3753 = vsub.s32 32, %v3752
        %v3754 = vshrl.u32 683565275, %v3753
        %v3755 = vshll.u32 683565275, %v3752
        %v3756 = vshrl.u32 2475754826, %v3753
        %v3757 = vor.u32 %v3755, %v3756
        %v3758 = vshll.u32 2475754826, %v3752
        %v3759 = vshrl.u32 2131351028, %v3753
        %v3760 = vor.u32 %v3758, %v3759
        %v3761 = vshll.u32 2131351028, %v3752
        %v3762 = vshrl.u32 2102212464, %v3753
        %v3763 = vor.u32 %v3761, %v3762
        %v3764 = vshll.u32 2102212464, %v3752
        %v3765 = vshrl.u32 920167782, %v3753
        %v3766 = vor.u32 %v3764, %v3765
        %v3767 = vshll.u32 920167782, %v3752
        %v3768 = vshrl.u32 1326507024, %v3753
        %v3769 = vor.u32 %v3767, %v3768
        %vm3770 = vcmp.lt.s32.totalorder %v3751, 1
        %vm3771 = vcmp.lt.s32.totalorder %v3751, 2
        %vm3772 = vcmp.lt.s32.totalorder %v3751, 3
        %vm3773 = vcmp.lt.s32.totalorder %v3751, 4
        %v3774 = vsel %vm3770, %v3754, %v3757
        %v3775 = vsel %vm3773, %v3763, 2102212464
        %v3776 = vsel %vm3772, %v3760, %v3775
        %v3777 = vsel %vm3771, %v3774, %v3776
        %v3778 = vsel %vm3770, %v3757, %v3760
        %v3779 = vsel %vm3773, %v3766, 920167782
        %v3780 = vsel %vm3772, %v3763, %v3779
        %v3781 = vsel %vm3771, %v3778, %v3780
        %v3782 = vsel %vm3770, %v3760, %v3763
        %v3783 = vsel %vm3773, %v3769, 1326507024
        %v3784 = vsel %vm3772, %v3766, %v3783
        %v3785 = vsel %vm3771, %v3782, %v3784
        %v3786 = vshll.u32 %v3746, 8
        %v3787 = vmul.u32.u64.compose %v3786, %v3785
        %v3788 = vextract.low.u32 %v3787
        %v3789 = vextract.high.u32 %v3787
        %v3790 = vmul.u32.u64.compose %v3786, %v3781
        %v3791 = vextract.low.u32 %v3790
        %v3792 = vextract.high.u32 %v3790
        %v3793 = vmul.u32 %v3786, %v3777
        %v3794 = vadd.s32 %v3789, %v3791
        %vm3795 = vc.u32 %v3789, %v3791
        %v3796 = vadd.s32 %v3792, 1
        %v3797 = vsel %vm3795, %v3796, %v3792
        %v3798 = vadd.s32 %v3793, %v3797
        %v3799 = vadd.s32 %v3798, 536870912
        %v3800 = vshrl.u32 %v3799, 30
        %v3801 = vshll.u32 %v3800, 30
        %v3802 = vsub.s32 %v3798, %v3801
        %vm3803 = vcmp.lt.s32.totalorder %v3802, 0
        %v3804 = vsub.s32 0, %v3802
        %v3805 = vsel %vm3803, %v3804, %v3802
        %v3806 = vclz %v3805
        %v3807 = vsub.s32 %v3806, 2
        %vm3808 = vcmp.gt.s32.totalorder 0, %v3807
        %v3809 = vsel %vm3808, 0, %v3807
        %v3810 = vsub.s32 32, %v3809
        %v3811 = vshll.u32 %v3802, %v3809
        %v3812 = vshrl.u32 %v3794, %v3810
        %v3813 = vor.u32 %v3811, %v3812
        %v3814 = vsub.s32 4294967266, %v3809
        %v3815 = vadd.s32 %v3814, 127
        %v3816 = vshll.u32 %v3815, 23
        %v3817 = vor.u32 4788187, %v3816
        %v3818 = vand.u32 2147483647, %v3817
        %v3820 = vcvt.s32.f32 %v3813
        %v3821 = vmul.f32 %v3820, %v3818
        %v3822 = vxor.u32 %v3821, 2147483648
        %v3823 = vsel %vm3740, %v3822, %v3821
        %v3824 = vsub.s32 4, %v3800
        %v3825 = vsel %vm3740, %v3824, %v3800
        %v3826 = vsel %vm3739, %v2589, %v3823
        %v3827 = vsel %vm3739, 0, %v3825
        %v3828 = vcosq.f32.pop %v3826
        %v3829 = vsinq.f32.pop %v3826
        %vm3830 = vweird.f32 %v2589
        %v3831 = vadd.s32 %v3827, 3
        %v3832 = vand.u32 %v3831, 3
        %vm3833 = vcmp.lt.s32.totalorder %v3832, 2
        %vm3834 = vcmp.eq.s32.totalorder %v3832, 0
        %v3835 = vxor.u32 %v3829, 2147483648
        %v3836 = vsel %vm3834, %v3828, %v3835
        %vm3837 = vcmp.eq.s32.totalorder %v3832, 2
        %v3838 = vxor.u32 %v3828, 2147483648
        %v3839 = vsel %vm3837, %v3838, %v3829
        %v3840 = vsel %vm3833, %v3836, %v3839
        %v3841 = vsel %vm3830, nan, %v3840
        %v3842 = vand.u32 2147483647, %v2590
        %vm3843 = vcmp.le.f32.partialorder %v3842, 0.7853982
        %vm3844 = vcmp.lt.s32.totalorder %v2590, 0
        %v3845 = vand.u32 %v2590, 2139095040
        %v3846 = vshrl.u32 %v3845, 23
        %v3847 = vsub.s32 %v3846, 127
        %v3848 = vand.u32 2147483647, %v2590
        %v3849 = vand.u32 %v3848, 8388607
        %v3850 = vor.u32 %v3849, 8388608
        %v3851 = vsub.s32 0, %v3850
        %v3852 = vadd.s32 %v3847, 1
        %vm3853 = vcmp.gt.s32.totalorder %v3852, 0
        %v3854 = vsel %vm3853, %v3852, 0
        %v3855 = vshrl.u32 %v3854, 5
        %v3856 = vand.u32 %v3854, 31
        %v3857 = vsub.s32 32, %v3856
        %v3858 = vshrl.u32 683565275, %v3857
        %v3859 = vshll.u32 683565275, %v3856
        %v3860 = vshrl.u32 2475754826, %v3857
        %v3861 = vor.u32 %v3859, %v3860
        %v3862 = vshll.u32 2475754826, %v3856
        %v3863 = vshrl.u32 2131351028, %v3857
        %v3864 = vor.u32 %v3862, %v3863
        %v3865 = vshll.u32 2131351028, %v3856
        %v3866 = vshrl.u32 2102212464, %v3857
        %v3867 = vor.u32 %v3865, %v3866
        %v3868 = vshll.u32 2102212464, %v3856
        %v3869 = vshrl.u32 920167782, %v3857
        %v3870 = vor.u32 %v3868, %v3869
        %v3871 = vshll.u32 920167782, %v3856
        %v3872 = vshrl.u32 1326507024, %v3857
        %v3873 = vor.u32 %v3871, %v3872
        %vm3874 = vcmp.lt.s32.totalorder %v3855, 1
        %vm3875 = vcmp.lt.s32.totalorder %v3855, 2
        %vm3876 = vcmp.lt.s32.totalorder %v3855, 3
        %vm3877 = vcmp.lt.s32.totalorder %v3855, 4
        %v3878 = vsel %vm3874, %v3858, %v3861
        %v3879 = vsel %vm3877, %v3867, 2102212464
        %v3880 = vsel %vm3876, %v3864, %v3879
        %v3881 = vsel %vm3875, %v3878, %v3880
        %v3882 = vsel %vm3874, %v3861, %v3864
        %v3883 = vsel %vm3877, %v3870, 920167782
        %v3884 = vsel %vm3876, %v3867, %v3883
        %v3885 = vsel %vm3875, %v3882, %v3884
        %v3886 = vsel %vm3874, %v3864, %v3867
        %v3887 = vsel %vm3877, %v3873, 1326507024
        %v3888 = vsel %vm3876, %v3870, %v3887
        %v3889 = vsel %vm3875, %v3886, %v3888
        %v3890 = vshll.u32 %v3850, 8
        %v3891 = vmul.u32.u64.compose %v3890, %v3889
        %v3892 = vextract.low.u32 %v3891
        %v3893 = vextract.high.u32 %v3891
        %v3894 = vmul.u32.u64.compose %v3890, %v3885
        %v3895 = vextract.low.u32 %v3894
        %v3896 = vextract.high.u32 %v3894
        %v3897 = vmul.u32 %v3890, %v3881
        %v3898 = vadd.s32 %v3893, %v3895
        %vm3899 = vc.u32 %v3893, %v3895
        %v3900 = vadd.s32 %v3896, 1
        %v3901 = vsel %vm3899, %v3900, %v3896
        %v3902 = vadd.s32 %v3897, %v3901
        %v3903 = vadd.s32 %v3902, 536870912
        %v3904 = vshrl.u32 %v3903, 30
        %v3905 = vshll.u32 %v3904, 30
        %v3906 = vsub.s32 %v3902, %v3905
        %vm3907 = vcmp.lt.s32.totalorder %v3906, 0
        %v3908 = vsub.s32 0, %v3906
        %v3909 = vsel %vm3907, %v3908, %v3906
        %v3910 = vclz %v3909
        %v3911 = vsub.s32 %v3910, 2
        %vm3912 = vcmp.gt.s32.totalorder 0, %v3911
        %v3913 = vsel %vm3912, 0, %v3911
        %v3914 = vsub.s32 32, %v3913
        %v3915 = vshll.u32 %v3906, %v3913
        %v3916 = vshrl.u32 %v3898, %v3914
        %v3917 = vor.u32 %v3915, %v3916
        %v3918 = vsub.s32 4294967266, %v3913
        %v3919 = vadd.s32 %v3918, 127
        %v3920 = vshll.u32 %v3919, 23
        %v3921 = vor.u32 4788187, %v3920
        %v3922 = vand.u32 2147483647, %v3921
        %v3924 = vcvt.s32.f32 %v3917
        %v3925 = vmul.f32 %v3924, %v3922
        %v3926 = vxor.u32 %v3925, 2147483648
        %v3927 = vsel %vm3844, %v3926, %v3925
        %v3928 = vsub.s32 4, %v3904
        %v3929 = vsel %vm3844, %v3928, %v3904
        %v3930 = vsel %vm3843, %v2590, %v3927
        %v3931 = vsel %vm3843, 0, %v3929
        %v3932 = vcosq.f32.pop %v3930
        %v3933 = vsinq.f32.pop %v3930
        %vm3934 = vweird.f32 %v2590
        %v3935 = vadd.s32 %v3931, 3
        %v3936 = vand.u32 %v3935, 3
        %vm3937 = vcmp.lt.s32.totalorder %v3936, 2
        %vm3938 = vcmp.eq.s32.totalorder %v3936, 0
        %v3939 = vxor.u32 %v3933, 2147483648
        %v3940 = vsel %vm3938, %v3932, %v3939
        %vm3941 = vcmp.eq.s32.totalorder %v3936, 2
        %v3942 = vxor.u32 %v3932, 2147483648
        %v3943 = vsel %vm3941, %v3942, %v3933
        %v3944 = vsel %vm3937, %v3940, %v3943
        %v3945 = vsel %vm3934, nan, %v3944
        %v3946 = vand.u32 2147483647, %v2591
        %vm3947 = vcmp.le.f32.partialorder %v3946, 0.7853982
        %vm3948 = vcmp.lt.s32.totalorder %v2591, 0
        %v3949 = vand.u32 %v2591, 2139095040
        %v3950 = vshrl.u32 %v3949, 23
        %v3951 = vsub.s32 %v3950, 127
        %v3952 = vand.u32 2147483647, %v2591
        %v3953 = vand.u32 %v3952, 8388607
        %v3954 = vor.u32 %v3953, 8388608
        %v3955 = vsub.s32 0, %v3954
        %v3956 = vadd.s32 %v3951, 1
        %vm3957 = vcmp.gt.s32.totalorder %v3956, 0
        %v3958 = vsel %vm3957, %v3956, 0
        %v3959 = vshrl.u32 %v3958, 5
        %v3960 = vand.u32 %v3958, 31
        %v3961 = vsub.s32 32, %v3960
        %v3962 = vshrl.u32 683565275, %v3961
        %v3963 = vshll.u32 683565275, %v3960
        %v3964 = vshrl.u32 2475754826, %v3961
        %v3965 = vor.u32 %v3963, %v3964
        %v3966 = vshll.u32 2475754826, %v3960
        %v3967 = vshrl.u32 2131351028, %v3961
        %v3968 = vor.u32 %v3966, %v3967
        %v3969 = vshll.u32 2131351028, %v3960
        %v3970 = vshrl.u32 2102212464, %v3961
        %v3971 = vor.u32 %v3969, %v3970
        %v3972 = vshll.u32 2102212464, %v3960
        %v3973 = vshrl.u32 920167782, %v3961
        %v3974 = vor.u32 %v3972, %v3973
        %v3975 = vshll.u32 920167782, %v3960
        %v3976 = vshrl.u32 1326507024, %v3961
        %v3977 = vor.u32 %v3975, %v3976
        %vm3978 = vcmp.lt.s32.totalorder %v3959, 1
        %vm3979 = vcmp.lt.s32.totalorder %v3959, 2
        %vm3980 = vcmp.lt.s32.totalorder %v3959, 3
        %vm3981 = vcmp.lt.s32.totalorder %v3959, 4
        %v3982 = vsel %vm3978, %v3962, %v3965
        %v3983 = vsel %vm3981, %v3971, 2102212464
        %v3984 = vsel %vm3980, %v3968, %v3983
        %v3985 = vsel %vm3979, %v3982, %v3984
        %v3986 = vsel %vm3978, %v3965, %v3968
        %v3987 = vsel %vm3981, %v3974, 920167782
        %v3988 = vsel %vm3980, %v3971, %v3987
        %v3989 = vsel %vm3979, %v3986, %v3988
        %v3990 = vsel %vm3978, %v3968, %v3971
        %v3991 = vsel %vm3981, %v3977, 1326507024
        %v3992 = vsel %vm3980, %v3974, %v3991
        %v3993 = vsel %vm3979, %v3990, %v3992
        %v3994 = vshll.u32 %v3954, 8
        %v3995 = vmul.u32.u64.compose %v3994, %v3993
        %v3996 = vextract.low.u32 %v3995
        %v3997 = vextract.high.u32 %v3995
        %v3998 = vmul.u32.u64.compose %v3994, %v3989
        %v3999 = vextract.low.u32 %v3998
        %v4000 = vextract.high.u32 %v3998
        %v4001 = vmul.u32 %v3994, %v3985
        %v4002 = vadd.s32 %v3997, %v3999
        %vm4003 = vc.u32 %v3997, %v3999
        %v4004 = vadd.s32 %v4000, 1
        %v4005 = vsel %vm4003, %v4004, %v4000
        %v4006 = vadd.s32 %v4001, %v4005
        %v4007 = vadd.s32 %v4006, 536870912
        %v4008 = vshrl.u32 %v4007, 30
        %v4009 = vshll.u32 %v4008, 30
        %v4010 = vsub.s32 %v4006, %v4009
        %vm4011 = vcmp.lt.s32.totalorder %v4010, 0
        %v4012 = vsub.s32 0, %v4010
        %v4013 = vsel %vm4011, %v4012, %v4010
        %v4014 = vclz %v4013
        %v4015 = vsub.s32 %v4014, 2
        %vm4016 = vcmp.gt.s32.totalorder 0, %v4015
        %v4017 = vsel %vm4016, 0, %v4015
        %v4018 = vsub.s32 32, %v4017
        %v4019 = vshll.u32 %v4010, %v4017
        %v4020 = vshrl.u32 %v4002, %v4018
        %v4021 = vor.u32 %v4019, %v4020
        %v4022 = vsub.s32 4294967266, %v4017
        %v4023 = vadd.s32 %v4022, 127
        %v4024 = vshll.u32 %v4023, 23
        %v4025 = vor.u32 4788187, %v4024
        %v4026 = vand.u32 2147483647, %v4025
        %v4028 = vcvt.s32.f32 %v4021
        %v4029 = vmul.f32 %v4028, %v4026
        %v4030 = vxor.u32 %v4029, 2147483648
        %v4031 = vsel %vm3948, %v4030, %v4029
        %v4032 = vsub.s32 4, %v4008
        %v4033 = vsel %vm3948, %v4032, %v4008
        %v4034 = vsel %vm3947, %v2591, %v4031
        %v4035 = vsel %vm3947, 0, %v4033
        %v4036 = vcosq.f32.pop %v4034
        %v4037 = vsinq.f32.pop %v4034
        %vm4038 = vweird.f32 %v2591
        %v4039 = vadd.s32 %v4035, 3
        %v4040 = vand.u32 %v4039, 3
        %vm4041 = vcmp.lt.s32.totalorder %v4040, 2
        %vm4042 = vcmp.eq.s32.totalorder %v4040, 0
        %v4043 = vxor.u32 %v4037, 2147483648
        %v4044 = vsel %vm4042, %v4036, %v4043
        %vm4045 = vcmp.eq.s32.totalorder %v4040, 2
        %v4046 = vxor.u32 %v4036, 2147483648
        %v4047 = vsel %vm4045, %v4046, %v4037
        %v4048 = vsel %vm4041, %v4044, %v4047
        %v4049 = vsel %vm4038, nan, %v4048
        %v4050 = vand.u32 2147483647, %v2592
        %vm4051 = vcmp.le.f32.partialorder %v4050, 0.7853982
        %vm4052 = vcmp.lt.s32.totalorder %v2592, 0
        %v4053 = vand.u32 %v2592, 2139095040
        %v4054 = vshrl.u32 %v4053, 23
        %v4055 = vsub.s32 %v4054, 127
        %v4056 = vand.u32 2147483647, %v2592
        %v4057 = vand.u32 %v4056, 8388607
        %v4058 = vor.u32 %v4057, 8388608
        %v4059 = vsub.s32 0, %v4058
        %v4060 = vadd.s32 %v4055, 1
        %vm4061 = vcmp.gt.s32.totalorder %v4060, 0
        %v4062 = vsel %vm4061, %v4060, 0
        %v4063 = vshrl.u32 %v4062, 5
        %v4064 = vand.u32 %v4062, 31
        %v4065 = vsub.s32 32, %v4064
        %v4066 = vshrl.u32 683565275, %v4065
        %v4067 = vshll.u32 683565275, %v4064
        %v4068 = vshrl.u32 2475754826, %v4065
        %v4069 = vor.u32 %v4067, %v4068
        %v4070 = vshll.u32 2475754826, %v4064
        %v4071 = vshrl.u32 2131351028, %v4065
        %v4072 = vor.u32 %v4070, %v4071
        %v4073 = vshll.u32 2131351028, %v4064
        %v4074 = vshrl.u32 2102212464, %v4065
        %v4075 = vor.u32 %v4073, %v4074
        %v4076 = vshll.u32 2102212464, %v4064
        %v4077 = vshrl.u32 920167782, %v4065
        %v4078 = vor.u32 %v4076, %v4077
        %v4079 = vshll.u32 920167782, %v4064
        %v4080 = vshrl.u32 1326507024, %v4065
        %v4081 = vor.u32 %v4079, %v4080
        %vm4082 = vcmp.lt.s32.totalorder %v4063, 1
        %vm4083 = vcmp.lt.s32.totalorder %v4063, 2
        %vm4084 = vcmp.lt.s32.totalorder %v4063, 3
        %vm4085 = vcmp.lt.s32.totalorder %v4063, 4
        %v4086 = vsel %vm4082, %v4066, %v4069
        %v4087 = vsel %vm4085, %v4075, 2102212464
        %v4088 = vsel %vm4084, %v4072, %v4087
        %v4089 = vsel %vm4083, %v4086, %v4088
        %v4090 = vsel %vm4082, %v4069, %v4072
        %v4091 = vsel %vm4085, %v4078, 920167782
        %v4092 = vsel %vm4084, %v4075, %v4091
        %v4093 = vsel %vm4083, %v4090, %v4092
        %v4094 = vsel %vm4082, %v4072, %v4075
        %v4095 = vsel %vm4085, %v4081, 1326507024
        %v4096 = vsel %vm4084, %v4078, %v4095
        %v4097 = vsel %vm4083, %v4094, %v4096
        %v4098 = vshll.u32 %v4058, 8
        %v4099 = vmul.u32.u64.compose %v4098, %v4097
        %v4100 = vextract.low.u32 %v4099
        %v4101 = vextract.high.u32 %v4099
        %v4102 = vmul.u32.u64.compose %v4098, %v4093
        %v4103 = vextract.low.u32 %v4102
        %v4104 = vextract.high.u32 %v4102
        %v4105 = vmul.u32 %v4098, %v4089
        %v4106 = vadd.s32 %v4101, %v4103
        %vm4107 = vc.u32 %v4101, %v4103
        %v4108 = vadd.s32 %v4104, 1
        %v4109 = vsel %vm4107, %v4108, %v4104
        %v4110 = vadd.s32 %v4105, %v4109
        %v4111 = vadd.s32 %v4110, 536870912
        %v4112 = vshrl.u32 %v4111, 30
        %v4113 = vshll.u32 %v4112, 30
        %v4114 = vsub.s32 %v4110, %v4113
        %vm4115 = vcmp.lt.s32.totalorder %v4114, 0
        %v4116 = vsub.s32 0, %v4114
        %v4117 = vsel %vm4115, %v4116, %v4114
        %v4118 = vclz %v4117
        %v4119 = vsub.s32 %v4118, 2
        %vm4120 = vcmp.gt.s32.totalorder 0, %v4119
        %v4121 = vsel %vm4120, 0, %v4119
        %v4122 = vsub.s32 32, %v4121
        %v4123 = vshll.u32 %v4114, %v4121
        %v4124 = vshrl.u32 %v4106, %v4122
        %v4125 = vor.u32 %v4123, %v4124
        %v4126 = vsub.s32 4294967266, %v4121
        %v4127 = vadd.s32 %v4126, 127
        %v4128 = vshll.u32 %v4127, 23
        %v4129 = vor.u32 4788187, %v4128
        %v4130 = vand.u32 2147483647, %v4129
        %v4132 = vcvt.s32.f32 %v4125
        %v4133 = vmul.f32 %v4132, %v4130
        %v4134 = vxor.u32 %v4133, 2147483648
        %v4135 = vsel %vm4052, %v4134, %v4133
        %v4136 = vsub.s32 4, %v4112
        %v4137 = vsel %vm4052, %v4136, %v4112
        %v4138 = vsel %vm4051, %v2592, %v4135
        %v4139 = vsel %vm4051, 0, %v4137
        %v4140 = vcosq.f32.pop %v4138
        %v4141 = vsinq.f32.pop %v4138
        %vm4142 = vweird.f32 %v2592
        %v4143 = vadd.s32 %v4139, 3
        %v4144 = vand.u32 %v4143, 3
        %vm4145 = vcmp.lt.s32.totalorder %v4144, 2
        %vm4146 = vcmp.eq.s32.totalorder %v4144, 0
        %v4147 = vxor.u32 %v4141, 2147483648
        %v4148 = vsel %vm4146, %v4140, %v4147
        %vm4149 = vcmp.eq.s32.totalorder %v4144, 2
        %v4150 = vxor.u32 %v4140, 2147483648
        %v4151 = vsel %vm4149, %v4150, %v4141
        %v4152 = vsel %vm4145, %v4148, %v4151
        %v4153 = vsel %vm4142, nan, %v4152
        %v4154 = vand.u32 2147483647, %v2593
        %vm4155 = vcmp.le.f32.partialorder %v4154, 0.7853982
        %vm4156 = vcmp.lt.s32.totalorder %v2593, 0
        %v4157 = vand.u32 %v2593, 2139095040
        %v4158 = vshrl.u32 %v4157, 23
        %v4159 = vsub.s32 %v4158, 127
        %v4160 = vand.u32 2147483647, %v2593
        %v4161 = vand.u32 %v4160, 8388607
        %v4162 = vor.u32 %v4161, 8388608
        %v4163 = vsub.s32 0, %v4162
        %v4164 = vadd.s32 %v4159, 1
        %vm4165 = vcmp.gt.s32.totalorder %v4164, 0
        %v4166 = vsel %vm4165, %v4164, 0
        %v4167 = vshrl.u32 %v4166, 5
        %v4168 = vand.u32 %v4166, 31
        %v4169 = vsub.s32 32, %v4168
        %v4170 = vshrl.u32 683565275, %v4169
        %v4171 = vshll.u32 683565275, %v4168
        %v4172 = vshrl.u32 2475754826, %v4169
        %v4173 = vor.u32 %v4171, %v4172
        %v4174 = vshll.u32 2475754826, %v4168
        %v4175 = vshrl.u32 2131351028, %v4169
        %v4176 = vor.u32 %v4174, %v4175
        %v4177 = vshll.u32 2131351028, %v4168
        %v4178 = vshrl.u32 2102212464, %v4169
        %v4179 = vor.u32 %v4177, %v4178
        %v4180 = vshll.u32 2102212464, %v4168
        %v4181 = vshrl.u32 920167782, %v4169
        %v4182 = vor.u32 %v4180, %v4181
        %v4183 = vshll.u32 920167782, %v4168
        %v4184 = vshrl.u32 1326507024, %v4169
        %v4185 = vor.u32 %v4183, %v4184
        %vm4186 = vcmp.lt.s32.totalorder %v4167, 1
        %vm4187 = vcmp.lt.s32.totalorder %v4167, 2
        %vm4188 = vcmp.lt.s32.totalorder %v4167, 3
        %vm4189 = vcmp.lt.s32.totalorder %v4167, 4
        %v4190 = vsel %vm4186, %v4170, %v4173
        %v4191 = vsel %vm4189, %v4179, 2102212464
        %v4192 = vsel %vm4188, %v4176, %v4191
        %v4193 = vsel %vm4187, %v4190, %v4192
        %v4194 = vsel %vm4186, %v4173, %v4176
        %v4195 = vsel %vm4189, %v4182, 920167782
        %v4196 = vsel %vm4188, %v4179, %v4195
        %v4197 = vsel %vm4187, %v4194, %v4196
        %v4198 = vsel %vm4186, %v4176, %v4179
        %v4199 = vsel %vm4189, %v4185, 1326507024
        %v4200 = vsel %vm4188, %v4182, %v4199
        %v4201 = vsel %vm4187, %v4198, %v4200
        %v4202 = vshll.u32 %v4162, 8
        %v4203 = vmul.u32.u64.compose %v4202, %v4201
        %v4204 = vextract.low.u32 %v4203
        %v4205 = vextract.high.u32 %v4203
        %v4206 = vmul.u32.u64.compose %v4202, %v4197
        %v4207 = vextract.low.u32 %v4206
        %v4208 = vextract.high.u32 %v4206
        %v4209 = vmul.u32 %v4202, %v4193
        %v4210 = vadd.s32 %v4205, %v4207
        %vm4211 = vc.u32 %v4205, %v4207
        %v4212 = vadd.s32 %v4208, 1
        %v4213 = vsel %vm4211, %v4212, %v4208
        %v4214 = vadd.s32 %v4209, %v4213
        %v4215 = vadd.s32 %v4214, 536870912
        %v4216 = vshrl.u32 %v4215, 30
        %v4217 = vshll.u32 %v4216, 30
        %v4218 = vsub.s32 %v4214, %v4217
        %vm4219 = vcmp.lt.s32.totalorder %v4218, 0
        %v4220 = vsub.s32 0, %v4218
        %v4221 = vsel %vm4219, %v4220, %v4218
        %v4222 = vclz %v4221
        %v4223 = vsub.s32 %v4222, 2
        %vm4224 = vcmp.gt.s32.totalorder 0, %v4223
        %v4225 = vsel %vm4224, 0, %v4223
        %v4226 = vsub.s32 32, %v4225
        %v4227 = vshll.u32 %v4218, %v4225
        %v4228 = vshrl.u32 %v4210, %v4226
        %v4229 = vor.u32 %v4227, %v4228
        %v4230 = vsub.s32 4294967266, %v4225
        %v4231 = vadd.s32 %v4230, 127
        %v4232 = vshll.u32 %v4231, 23
        %v4233 = vor.u32 4788187, %v4232
        %v4234 = vand.u32 2147483647, %v4233
        %v4236 = vcvt.s32.f32 %v4229
        %v4237 = vmul.f32 %v4236, %v4234
        %v4238 = vxor.u32 %v4237, 2147483648
        %v4239 = vsel %vm4156, %v4238, %v4237
        %v4240 = vsub.s32 4, %v4216
        %v4241 = vsel %vm4156, %v4240, %v4216
        %v4242 = vsel %vm4155, %v2593, %v4239
        %v4243 = vsel %vm4155, 0, %v4241
        %v4244 = vcosq.f32.pop %v4242
        %v4245 = vsinq.f32.pop %v4242
        %vm4246 = vweird.f32 %v2593
        %v4247 = vadd.s32 %v4243, 3
        %v4248 = vand.u32 %v4247, 3
        %vm4249 = vcmp.lt.s32.totalorder %v4248, 2
        %vm4250 = vcmp.eq.s32.totalorder %v4248, 0
        %v4251 = vxor.u32 %v4245, 2147483648
        %v4252 = vsel %vm4250, %v4244, %v4251
        %vm4253 = vcmp.eq.s32.totalorder %v4248, 2
        %v4254 = vxor.u32 %v4244, 2147483648
        %v4255 = vsel %vm4253, %v4254, %v4245
        %v4256 = vsel %vm4249, %v4252, %v4255
        %v4257 = vsel %vm4246, nan, %v4256
        %s4258 = scalar_lea.vmem %s3, 128
        %v4259 = vld [vmem:[%s4258] sm:$0xff]
        %v4260 = vld [vmem:[%s4258 + $0x8] sm:$0xff]
        %v4261 = vld [vmem:[%s4258 + $0x10] sm:$0xff]
        %v4262 = vld [vmem:[%s4258 + $0x18] sm:$0xff]
        %v4263 = vld [vmem:[%s4258 + $0x20] sm:$0xff]
        %v4264 = vld [vmem:[%s4258 + $0x28] sm:$0xff]
        %v4265 = vld [vmem:[%s4258 + $0x30] sm:$0xff]
        %v4266 = vld [vmem:[%s4258 + $0x38] sm:$0xff]
        %v4267 = vld [vmem:[%s4258 + $0x40] sm:$0xff]
        %v4268 = vld [vmem:[%s4258 + $0x48] sm:$0xff]
        %v4269 = vld [vmem:[%s4258 + $0x50] sm:$0xff]
        %v4270 = vld [vmem:[%s4258 + $0x58] sm:$0xff]
        %v4271 = vld [vmem:[%s4258 + $0x60] sm:$0xff]
        %v4272 = vld [vmem:[%s4258 + $0x68] sm:$0xff]
        %v4273 = vld [vmem:[%s4258 + $0x70] sm:$0xff]
        %v4274 = vld [vmem:[%s4258 + $0x78] sm:$0xff]
        %v4275 = vlaneseq
        %v4276 = vshrl.u32 %v4275, 7
        %v4277 = vsub.s32 1, %v4276
        %v4278 = vrot.slane %v2388, %v4277
        %4279 = vmatprep.subr.mxu0 0.0
        %4280 = vmatpush1.msra.mxu0 %v4259
        %4281 = vmatprep.subr.mxu0 0.0
        %4282 = vmatpush1.msra.mxu0 %v4260
        %4283 = vmatprep.subr.mxu0 0.0
        %4284 = vmatpush1.msra.mxu0 %v4261
        %4285 = vmatprep.subr.mxu0 0.0
        %4286 = vmatpush1.msra.mxu0 %v4262
        %4287 = vmatprep.subr.mxu0 0.0
        %4288 = vmatpush1.msra.mxu0 %v4263
        %4289 = vmatprep.subr.mxu0 0.0
        %4290 = vmatpush1.msra.mxu0 %v4264
        %4291 = vmatprep.subr.mxu0 0.0
        %4292 = vmatpush1.msra.mxu0 %v4265
        %4293 = vmatprep.subr.mxu0 0.0
        %4294 = vmatpush1.msra.mxu0 %v4266
        %4295 = vmatprep.subr.mxu0 0.0
        %4296 = vmatpush1.msra.mxu0 %v4267
        %4297 = vmatprep.subr.mxu0 0.0
        %4298 = vmatpush1.msra.mxu0 %v4268
        %4299 = vmatprep.subr.mxu0 0.0
        %4300 = vmatpush1.msra.mxu0 %v4269
        %4301 = vmatprep.subr.mxu0 0.0
        %4302 = vmatpush1.msra.mxu0 %v4270
        %4303 = vmatprep.subr.mxu0 0.0
        %4304 = vmatpush1.msra.mxu0 %v4271
        %4305 = vmatprep.subr.mxu0 0.0
        %4306 = vmatpush1.msra.mxu0 %v4272
        %4307 = vmatprep.subr.mxu0 0.0
        %4308 = vmatpush1.msra.mxu0 %v4273
        %4309 = vmatprep.subr.mxu0 0.0
        %4310 = vmatpush1.msra.mxu0 %v4274
        %4311 = vmatprep.subr.mxu0 0.0
        %4312 = vmatpush1.msra.mxu0 0.0
        %4313 = vmatprep.subr.mxu0 0.0
        %4314 = vmatpush1.msra.mxu0 0.0
        %4315 = vmatprep.subr.mxu0 0.0
        %4316 = vmatpush1.msra.mxu0 0.0
        %4317 = vmatprep.subr.mxu0 0.0
        %4318 = vmatpush1.msra.mxu0 0.0
        %4319 = vmatprep.subr.mxu0 0.0
        %4320 = vmatpush1.msra.mxu0 0.0
        %4321 = vmatprep.subr.mxu0 0.0
        %4322 = vmatpush1.msra.mxu0 0.0
        %4323 = vmatprep.subr.mxu0 0.0
        %4324 = vmatpush1.msra.mxu0 0.0
        %4325 = vmatprep.subr.mxu0 0.0
        %4326 = vmatpush1.msra.mxu0 0.0
        %4327 = vmatprep.subr.mxu0 0.0
        %4328 = vmatpush1.msra.mxu0 0.0
        %4329 = vmatprep.subr.mxu0 0.0
        %4330 = vmatpush1.msra.mxu0 0.0
        %4331 = vmatprep.subr.mxu0 0.0
        %4332 = vmatpush1.msra.mxu0 0.0
        %4333 = vmatprep.subr.mxu0 0.0
        %4334 = vmatpush1.msra.mxu0 0.0
        %4335 = vmatprep.subr.mxu0 0.0
        %4336 = vmatpush1.msra.mxu0 0.0
        %4337 = vmatprep.subr.mxu0 0.0
        %4338 = vmatpush1.msra.mxu0 0.0
        %4339 = vmatprep.subr.mxu0 0.0
        %4340 = vmatpush1.msra.mxu0 0.0
        %4341 = vmatprep.subr.mxu0 0.0
        %4342 = vmatpush1.msra.mxu0 0.0
        %4343 = vmatprep.mubr.f32.mxu0 0.0
        %4344 = vmatmul.mubr.f32.gmra.mrb[0].mxu0 %v2697
        %v4345 = vpop.f32.mrb[0].mxu0
        %v4346 = vadd.f32 %v4278, %v4345
        %v4347 = vpop.f32.mrb[0].mxu0
        %4348 = vmatprep.mubr.f32.mxu0 0.0
        %4349 = vmatmul.mubr.f32.gmra.mrb[0].mxu0 %v2801
        %v4350 = vpop.f32.mrb[0].mxu0
        %v4351 = vadd.f32 %v4278, %v4350
        %v4352 = vpop.f32.mrb[0].mxu0
        %4353 = vmatprep.mubr.f32.mxu0 0.0
        %4354 = vmatmul.mubr.f32.gmra.mrb[0].mxu0 %v2905
        %v4355 = vpop.f32.mrb[0].mxu0
        %v4356 = vadd.f32 %v4278, %v4355
        %v4357 = vpop.f32.mrb[0].mxu0
        %4358 = vmatprep.mubr.f32.mxu0 0.0
        %4359 = vmatmul.mubr.f32.gmra.mrb[0].mxu0 %v3009
        %v4360 = vpop.f32.mrb[0].mxu0
        %v4361 = vadd.f32 %v4278, %v4360
        %v4362 = vpop.f32.mrb[0].mxu0
        %4363 = vmatprep.mubr.f32.mxu0 0.0
        %4364 = vmatmul.mubr.f32.gmra.mrb[0].mxu0 %v3113
        %v4365 = vpop.f32.mrb[0].mxu0
        %v4366 = vadd.f32 %v4278, %v4365
        %v4367 = vpop.f32.mrb[0].mxu0
        %4368 = vmatprep.mubr.f32.mxu0 0.0
        %4369 = vmatmul.mubr.f32.gmra.mrb[0].mxu0 %v3217
        %v4370 = vpop.f32.mrb[0].mxu0
        %v4371 = vadd.f32 %v4278, %v4370
        %v4372 = vpop.f32.mrb[0].mxu0
        %4373 = vmatprep.mubr.f32.mxu0 0.0
        %4374 = vmatmul.mubr.f32.gmra.mrb[0].mxu0 %v3321
        %v4375 = vpop.f32.mrb[0].mxu0
        %v4376 = vadd.f32 %v4278, %v4375
        %v4377 = vpop.f32.mrb[0].mxu0
        %4378 = vmatprep.mubr.f32.mxu0 0.0
        %4379 = vmatmul.mubr.f32.gmra.mrb[0].mxu0 %v3425
        %v4380 = vpop.f32.mrb[0].mxu0
        %v4381 = vadd.f32 %v4278, %v4380
        %v4382 = vpop.f32.mrb[0].mxu0
        %4383 = vmatprep.mubr.f32.mxu0 0.0
        %4384 = vmatmul.mubr.f32.gmra.mrb[0].mxu0 %v3529
        %v4385 = vpop.f32.mrb[0].mxu0
        %v4386 = vadd.f32 %v4278, %v4385
        %v4387 = vpop.f32.mrb[0].mxu0
        %4388 = vmatprep.mubr.f32.mxu0 0.0
        %4389 = vmatmul.mubr.f32.gmra.mrb[0].mxu0 %v3633
        %v4390 = vpop.f32.mrb[0].mxu0
        %v4391 = vadd.f32 %v4278, %v4390
        %v4392 = vpop.f32.mrb[0].mxu0
        %4393 = vmatprep.mubr.f32.mxu0 0.0
        %4394 = vmatmul.mubr.f32.gmra.mrb[0].mxu0 %v3737
        %v4395 = vpop.f32.mrb[0].mxu0
        %v4396 = vadd.f32 %v4278, %v4395
        %v4397 = vpop.f32.mrb[0].mxu0
        %4398 = vmatprep.mubr.f32.mxu0 0.0
        %4399 = vmatmul.mubr.f32.gmra.mrb[0].mxu0 %v3841
        %v4400 = vpop.f32.mrb[0].mxu0
        %v4401 = vadd.f32 %v4278, %v4400
        %v4402 = vpop.f32.mrb[0].mxu0
        %4403 = vmatprep.mubr.f32.mxu0 0.0
        %4404 = vmatmul.mubr.f32.gmra.mrb[0].mxu0 %v3945
        %v4405 = vpop.f32.mrb[0].mxu0
        %v4406 = vadd.f32 %v4278, %v4405
        %v4407 = vpop.f32.mrb[0].mxu0
        %4408 = vmatprep.mubr.f32.mxu0 0.0
        %4409 = vmatmul.mubr.f32.gmra.mrb[0].mxu0 %v4049
        %v4410 = vpop.f32.mrb[0].mxu0
        %v4411 = vadd.f32 %v4278, %v4410
        %v4412 = vpop.f32.mrb[0].mxu0
        %4413 = vmatprep.mubr.f32.mxu0 0.0
        %4414 = vmatmul.mubr.f32.gmra.mrb[0].mxu0 %v4153
        %v4415 = vpop.f32.mrb[0].mxu0
        %v4416 = vadd.f32 %v4278, %v4415
        %v4417 = vpop.f32.mrb[0].mxu0
        %4418 = vmatprep.mubr.f32.mxu0 0.0
        %4419 = vmatmul.mubr.f32.gmra.mrb[0].mxu0 %v4257
        %v4420 = vpop.f32.mrb[0].mxu0
        %v4421 = vadd.f32 %v4278, %v4420
        %v4422 = vpop.f32.mrb[0].mxu0
        %4423 = vdwg.mxu0
        %v4424 = vlaneseq
        %v4425 = vshrl.u32 %v4424, 7
        %v4426 = vsub.s32 2, %v4425
        %v4427 = vrot.slane %v359, %v4426
        %v4428 = vmul.f32 %v4427, %v4346
        %v4429 = vmul.f32 %v4427, %v4351
        %v4430 = vmul.f32 %v4427, %v4356
        %v4431 = vmul.f32 %v4427, %v4361
        %v4432 = vmul.f32 %v4427, %v4366
        %v4433 = vmul.f32 %v4427, %v4371
        %v4434 = vmul.f32 %v4427, %v4376
        %v4435 = vmul.f32 %v4427, %v4381
        %v4436 = vmul.f32 %v4427, %v4386
        %v4437 = vmul.f32 %v4427, %v4391
        %v4438 = vmul.f32 %v4427, %v4396
        %v4439 = vmul.f32 %v4427, %v4401
        %v4440 = vmul.f32 %v4427, %v4406
        %v4441 = vmul.f32 %v4427, %v4411
        %v4442 = vmul.f32 %v4427, %v4416
        %v4443 = vmul.f32 %v4427, %v4421
        %v4444 = vlaneseq
        %v4445 = vshrl.u32 %v4444, 7
        %v4446 = vsub.s32 2, %v4445
        %v4447 = vrot.slane %v360, %v4446
        %v4448 = vadd.f32 %v4428, %v4447
        %v4449 = vadd.f32 %v4429, %v4447
        %v4450 = vadd.f32 %v4430, %v4447
        %v4451 = vadd.f32 %v4431, %v4447
        %v4452 = vadd.f32 %v4432, %v4447
        %v4453 = vadd.f32 %v4433, %v4447
        %v4454 = vadd.f32 %v4434, %v4447
        %v4455 = vadd.f32 %v4435, %v4447
        %v4456 = vadd.f32 %v4436, %v4447
        %v4457 = vadd.f32 %v4437, %v4447
        %v4458 = vadd.f32 %v4438, %v4447
        %v4459 = vadd.f32 %v4439, %v4447
        %v4460 = vadd.f32 %v4440, %v4447
        %v4461 = vadd.f32 %v4441, %v4447
        %v4462 = vadd.f32 %v4442, %v4447
        %v4463 = vadd.f32 %v4443, %v4447
        %v4464 = vand.u32 2147483647, %v4448
        %vm4465 = vcmp.le.f32.partialorder %v4464, 0.7853982
        %vm4466 = vcmp.lt.s32.totalorder %v4448, 0
        %v4467 = vand.u32 %v4448, 2139095040
        %v4468 = vshrl.u32 %v4467, 23
        %v4469 = vsub.s32 %v4468, 127
        %v4470 = vand.u32 2147483647, %v4448
        %v4471 = vand.u32 %v4470, 8388607
        %v4472 = vor.u32 %v4471, 8388608
        %v4473 = vsub.s32 0, %v4472
        %v4474 = vadd.s32 %v4469, 1
        %vm4475 = vcmp.gt.s32.totalorder %v4474, 0
        %v4476 = vsel %vm4475, %v4474, 0
        %v4477 = vshrl.u32 %v4476, 5
        %v4478 = vand.u32 %v4476, 31
        %v4479 = vsub.s32 32, %v4478
        %v4480 = vshrl.u32 683565275, %v4479
        %v4481 = vshll.u32 683565275, %v4478
        %v4482 = vshrl.u32 2475754826, %v4479
        %v4483 = vor.u32 %v4481, %v4482
        %v4484 = vshll.u32 2475754826, %v4478
        %v4485 = vshrl.u32 2131351028, %v4479
        %v4486 = vor.u32 %v4484, %v4485
        %v4487 = vshll.u32 2131351028, %v4478
        %v4488 = vshrl.u32 2102212464, %v4479
        %v4489 = vor.u32 %v4487, %v4488
        %v4490 = vshll.u32 2102212464, %v4478
        %v4491 = vshrl.u32 920167782, %v4479
        %v4492 = vor.u32 %v4490, %v4491
        %v4493 = vshll.u32 920167782, %v4478
        %v4494 = vshrl.u32 1326507024, %v4479
        %v4495 = vor.u32 %v4493, %v4494
        %vm4496 = vcmp.lt.s32.totalorder %v4477, 1
        %vm4497 = vcmp.lt.s32.totalorder %v4477, 2
        %vm4498 = vcmp.lt.s32.totalorder %v4477, 3
        %vm4499 = vcmp.lt.s32.totalorder %v4477, 4
        %v4500 = vsel %vm4496, %v4480, %v4483
        %v4501 = vsel %vm4499, %v4489, 2102212464
        %v4502 = vsel %vm4498, %v4486, %v4501
        %v4503 = vsel %vm4497, %v4500, %v4502
        %v4504 = vsel %vm4496, %v4483, %v4486
        %v4505 = vsel %vm4499, %v4492, 920167782
        %v4506 = vsel %vm4498, %v4489, %v4505
        %v4507 = vsel %vm4497, %v4504, %v4506
        %v4508 = vsel %vm4496, %v4486, %v4489
        %v4509 = vsel %vm4499, %v4495, 1326507024
        %v4510 = vsel %vm4498, %v4492, %v4509
        %v4511 = vsel %vm4497, %v4508, %v4510
        %v4512 = vshll.u32 %v4472, 8
        %v4513 = vmul.u32.u64.compose %v4512, %v4511
        %v4514 = vextract.low.u32 %v4513
        %v4515 = vextract.high.u32 %v4513
        %v4516 = vmul.u32.u64.compose %v4512, %v4507
        %v4517 = vextract.low.u32 %v4516
        %v4518 = vextract.high.u32 %v4516
        %v4519 = vmul.u32 %v4512, %v4503
        %v4520 = vadd.s32 %v4515, %v4517
        %vm4521 = vc.u32 %v4515, %v4517
        %v4522 = vadd.s32 %v4518, 1
        %v4523 = vsel %vm4521, %v4522, %v4518
        %v4524 = vadd.s32 %v4519, %v4523
        %v4525 = vadd.s32 %v4524, 536870912
        %v4526 = vshrl.u32 %v4525, 30
        %v4527 = vshll.u32 %v4526, 30
        %v4528 = vsub.s32 %v4524, %v4527
        %vm4529 = vcmp.lt.s32.totalorder %v4528, 0
        %v4530 = vsub.s32 0, %v4528
        %v4531 = vsel %vm4529, %v4530, %v4528
        %v4532 = vclz %v4531
        %v4533 = vsub.s32 %v4532, 2
        %vm4534 = vcmp.gt.s32.totalorder 0, %v4533
        %v4535 = vsel %vm4534, 0, %v4533
        %v4536 = vsub.s32 32, %v4535
        %v4537 = vshll.u32 %v4528, %v4535
        %v4538 = vshrl.u32 %v4520, %v4536
        %v4539 = vor.u32 %v4537, %v4538
        %v4540 = vsub.s32 4294967266, %v4535
        %v4541 = vadd.s32 %v4540, 127
        %v4542 = vshll.u32 %v4541, 23
        %v4543 = vor.u32 4788187, %v4542
        %v4544 = vand.u32 2147483647, %v4543
        %v4546 = vcvt.s32.f32 %v4539
        %v4547 = vmul.f32 %v4546, %v4544
        %v4548 = vxor.u32 %v4547, 2147483648
        %v4549 = vsel %vm4466, %v4548, %v4547
        %v4550 = vsub.s32 4, %v4526
        %v4551 = vsel %vm4466, %v4550, %v4526
        %v4552 = vsel %vm4465, %v4448, %v4549
        %v4553 = vsel %vm4465, 0, %v4551
        %v4554 = vcosq.f32.pop %v4552
        %v4555 = vsinq.f32.pop %v4552
        %vm4556 = vweird.f32 %v4448
        %v4557 = vadd.s32 %v4553, 3
        %v4558 = vand.u32 %v4557, 3
        %vm4559 = vcmp.lt.s32.totalorder %v4558, 2
        %vm4560 = vcmp.eq.s32.totalorder %v4558, 0
        %v4561 = vxor.u32 %v4555, 2147483648
        %v4562 = vsel %vm4560, %v4554, %v4561
        %vm4563 = vcmp.eq.s32.totalorder %v4558, 2
        %v4564 = vxor.u32 %v4554, 2147483648
        %v4565 = vsel %vm4563, %v4564, %v4555
        %v4566 = vsel %vm4559, %v4562, %v4565
        %v4567 = vsel %vm4556, nan, %v4566
        %v4568 = vand.u32 2147483647, %v4449
        %vm4569 = vcmp.le.f32.partialorder %v4568, 0.7853982
        %vm4570 = vcmp.lt.s32.totalorder %v4449, 0
        %v4571 = vand.u32 %v4449, 2139095040
        %v4572 = vshrl.u32 %v4571, 23
        %v4573 = vsub.s32 %v4572, 127
        %v4574 = vand.u32 2147483647, %v4449
        %v4575 = vand.u32 %v4574, 8388607
        %v4576 = vor.u32 %v4575, 8388608
        %v4577 = vsub.s32 0, %v4576
        %v4578 = vadd.s32 %v4573, 1
        %vm4579 = vcmp.gt.s32.totalorder %v4578, 0
        %v4580 = vsel %vm4579, %v4578, 0
        %v4581 = vshrl.u32 %v4580, 5
        %v4582 = vand.u32 %v4580, 31
        %v4583 = vsub.s32 32, %v4582
        %v4584 = vshrl.u32 683565275, %v4583
        %v4585 = vshll.u32 683565275, %v4582
        %v4586 = vshrl.u32 2475754826, %v4583
        %v4587 = vor.u32 %v4585, %v4586
        %v4588 = vshll.u32 2475754826, %v4582
        %v4589 = vshrl.u32 2131351028, %v4583
        %v4590 = vor.u32 %v4588, %v4589
        %v4591 = vshll.u32 2131351028, %v4582
        %v4592 = vshrl.u32 2102212464, %v4583
        %v4593 = vor.u32 %v4591, %v4592
        %v4594 = vshll.u32 2102212464, %v4582
        %v4595 = vshrl.u32 920167782, %v4583
        %v4596 = vor.u32 %v4594, %v4595
        %v4597 = vshll.u32 920167782, %v4582
        %v4598 = vshrl.u32 1326507024, %v4583
        %v4599 = vor.u32 %v4597, %v4598
        %vm4600 = vcmp.lt.s32.totalorder %v4581, 1
        %vm4601 = vcmp.lt.s32.totalorder %v4581, 2
        %vm4602 = vcmp.lt.s32.totalorder %v4581, 3
        %vm4603 = vcmp.lt.s32.totalorder %v4581, 4
        %v4604 = vsel %vm4600, %v4584, %v4587
        %v4605 = vsel %vm4603, %v4593, 2102212464
        %v4606 = vsel %vm4602, %v4590, %v4605
        %v4607 = vsel %vm4601, %v4604, %v4606
        %v4608 = vsel %vm4600, %v4587, %v4590
        %v4609 = vsel %vm4603, %v4596, 920167782
        %v4610 = vsel %vm4602, %v4593, %v4609
        %v4611 = vsel %vm4601, %v4608, %v4610
        %v4612 = vsel %vm4600, %v4590, %v4593
        %v4613 = vsel %vm4603, %v4599, 1326507024
        %v4614 = vsel %vm4602, %v4596, %v4613
        %v4615 = vsel %vm4601, %v4612, %v4614
        %v4616 = vshll.u32 %v4576, 8
        %v4617 = vmul.u32.u64.compose %v4616, %v4615
        %v4618 = vextract.low.u32 %v4617
        %v4619 = vextract.high.u32 %v4617
        %v4620 = vmul.u32.u64.compose %v4616, %v4611
        %v4621 = vextract.low.u32 %v4620
        %v4622 = vextract.high.u32 %v4620
        %v4623 = vmul.u32 %v4616, %v4607
        %v4624 = vadd.s32 %v4619, %v4621
        %vm4625 = vc.u32 %v4619, %v4621
        %v4626 = vadd.s32 %v4622, 1
        %v4627 = vsel %vm4625, %v4626, %v4622
        %v4628 = vadd.s32 %v4623, %v4627
        %v4629 = vadd.s32 %v4628, 536870912
        %v4630 = vshrl.u32 %v4629, 30
        %v4631 = vshll.u32 %v4630, 30
        %v4632 = vsub.s32 %v4628, %v4631
        %vm4633 = vcmp.lt.s32.totalorder %v4632, 0
        %v4634 = vsub.s32 0, %v4632
        %v4635 = vsel %vm4633, %v4634, %v4632
        %v4636 = vclz %v4635
        %v4637 = vsub.s32 %v4636, 2
        %vm4638 = vcmp.gt.s32.totalorder 0, %v4637
        %v4639 = vsel %vm4638, 0, %v4637
        %v4640 = vsub.s32 32, %v4639
        %v4641 = vshll.u32 %v4632, %v4639
        %v4642 = vshrl.u32 %v4624, %v4640
        %v4643 = vor.u32 %v4641, %v4642
        %v4644 = vsub.s32 4294967266, %v4639
        %v4645 = vadd.s32 %v4644, 127
        %v4646 = vshll.u32 %v4645, 23
        %v4647 = vor.u32 4788187, %v4646
        %v4648 = vand.u32 2147483647, %v4647
        %v4650 = vcvt.s32.f32 %v4643
        %v4651 = vmul.f32 %v4650, %v4648
        %v4652 = vxor.u32 %v4651, 2147483648
        %v4653 = vsel %vm4570, %v4652, %v4651
        %v4654 = vsub.s32 4, %v4630
        %v4655 = vsel %vm4570, %v4654, %v4630
        %v4656 = vsel %vm4569, %v4449, %v4653
        %v4657 = vsel %vm4569, 0, %v4655
        %v4658 = vcosq.f32.pop %v4656
        %v4659 = vsinq.f32.pop %v4656
        %vm4660 = vweird.f32 %v4449
        %v4661 = vadd.s32 %v4657, 3
        %v4662 = vand.u32 %v4661, 3
        %vm4663 = vcmp.lt.s32.totalorder %v4662, 2
        %vm4664 = vcmp.eq.s32.totalorder %v4662, 0
        %v4665 = vxor.u32 %v4659, 2147483648
        %v4666 = vsel %vm4664, %v4658, %v4665
        %vm4667 = vcmp.eq.s32.totalorder %v4662, 2
        %v4668 = vxor.u32 %v4658, 2147483648
        %v4669 = vsel %vm4667, %v4668, %v4659
        %v4670 = vsel %vm4663, %v4666, %v4669
        %v4671 = vsel %vm4660, nan, %v4670
        %v4672 = vand.u32 2147483647, %v4450
        %vm4673 = vcmp.le.f32.partialorder %v4672, 0.7853982
        %vm4674 = vcmp.lt.s32.totalorder %v4450, 0
        %v4675 = vand.u32 %v4450, 2139095040
        %v4676 = vshrl.u32 %v4675, 23
        %v4677 = vsub.s32 %v4676, 127
        %v4678 = vand.u32 2147483647, %v4450
        %v4679 = vand.u32 %v4678, 8388607
        %v4680 = vor.u32 %v4679, 8388608
        %v4681 = vsub.s32 0, %v4680
        %v4682 = vadd.s32 %v4677, 1
        %vm4683 = vcmp.gt.s32.totalorder %v4682, 0
        %v4684 = vsel %vm4683, %v4682, 0
        %v4685 = vshrl.u32 %v4684, 5
        %v4686 = vand.u32 %v4684, 31
        %v4687 = vsub.s32 32, %v4686
        %v4688 = vshrl.u32 683565275, %v4687
        %v4689 = vshll.u32 683565275, %v4686
        %v4690 = vshrl.u32 2475754826, %v4687
        %v4691 = vor.u32 %v4689, %v4690
        %v4692 = vshll.u32 2475754826, %v4686
        %v4693 = vshrl.u32 2131351028, %v4687
        %v4694 = vor.u32 %v4692, %v4693
        %v4695 = vshll.u32 2131351028, %v4686
        %v4696 = vshrl.u32 2102212464, %v4687
        %v4697 = vor.u32 %v4695, %v4696
        %v4698 = vshll.u32 2102212464, %v4686
        %v4699 = vshrl.u32 920167782, %v4687
        %v4700 = vor.u32 %v4698, %v4699
        %v4701 = vshll.u32 920167782, %v4686
        %v4702 = vshrl.u32 1326507024, %v4687
        %v4703 = vor.u32 %v4701, %v4702
        %vm4704 = vcmp.lt.s32.totalorder %v4685, 1
        %vm4705 = vcmp.lt.s32.totalorder %v4685, 2
        %vm4706 = vcmp.lt.s32.totalorder %v4685, 3
        %vm4707 = vcmp.lt.s32.totalorder %v4685, 4
        %v4708 = vsel %vm4704, %v4688, %v4691
        %v4709 = vsel %vm4707, %v4697, 2102212464
        %v4710 = vsel %vm4706, %v4694, %v4709
        %v4711 = vsel %vm4705, %v4708, %v4710
        %v4712 = vsel %vm4704, %v4691, %v4694
        %v4713 = vsel %vm4707, %v4700, 920167782
        %v4714 = vsel %vm4706, %v4697, %v4713
        %v4715 = vsel %vm4705, %v4712, %v4714
        %v4716 = vsel %vm4704, %v4694, %v4697
        %v4717 = vsel %vm4707, %v4703, 1326507024
        %v4718 = vsel %vm4706, %v4700, %v4717
        %v4719 = vsel %vm4705, %v4716, %v4718
        %v4720 = vshll.u32 %v4680, 8
        %v4721 = vmul.u32.u64.compose %v4720, %v4719
        %v4722 = vextract.low.u32 %v4721
        %v4723 = vextract.high.u32 %v4721
        %v4724 = vmul.u32.u64.compose %v4720, %v4715
        %v4725 = vextract.low.u32 %v4724
        %v4726 = vextract.high.u32 %v4724
        %v4727 = vmul.u32 %v4720, %v4711
        %v4728 = vadd.s32 %v4723, %v4725
        %vm4729 = vc.u32 %v4723, %v4725
        %v4730 = vadd.s32 %v4726, 1
        %v4731 = vsel %vm4729, %v4730, %v4726
        %v4732 = vadd.s32 %v4727, %v4731
        %v4733 = vadd.s32 %v4732, 536870912
        %v4734 = vshrl.u32 %v4733, 30
        %v4735 = vshll.u32 %v4734, 30
        %v4736 = vsub.s32 %v4732, %v4735
        %vm4737 = vcmp.lt.s32.totalorder %v4736, 0
        %v4738 = vsub.s32 0, %v4736
        %v4739 = vsel %vm4737, %v4738, %v4736
        %v4740 = vclz %v4739
        %v4741 = vsub.s32 %v4740, 2
        %vm4742 = vcmp.gt.s32.totalorder 0, %v4741
        %v4743 = vsel %vm4742, 0, %v4741
        %v4744 = vsub.s32 32, %v4743
        %v4745 = vshll.u32 %v4736, %v4743
        %v4746 = vshrl.u32 %v4728, %v4744
        %v4747 = vor.u32 %v4745, %v4746
        %v4748 = vsub.s32 4294967266, %v4743
        %v4749 = vadd.s32 %v4748, 127
        %v4750 = vshll.u32 %v4749, 23
        %v4751 = vor.u32 4788187, %v4750
        %v4752 = vand.u32 2147483647, %v4751
        %v4754 = vcvt.s32.f32 %v4747
        %v4755 = vmul.f32 %v4754, %v4752
        %v4756 = vxor.u32 %v4755, 2147483648
        %v4757 = vsel %vm4674, %v4756, %v4755
        %v4758 = vsub.s32 4, %v4734
        %v4759 = vsel %vm4674, %v4758, %v4734
        %v4760 = vsel %vm4673, %v4450, %v4757
        %v4761 = vsel %vm4673, 0, %v4759
        %v4762 = vcosq.f32.pop %v4760
        %v4763 = vsinq.f32.pop %v4760
        %vm4764 = vweird.f32 %v4450
        %v4765 = vadd.s32 %v4761, 3
        %v4766 = vand.u32 %v4765, 3
        %vm4767 = vcmp.lt.s32.totalorder %v4766, 2
        %vm4768 = vcmp.eq.s32.totalorder %v4766, 0
        %v4769 = vxor.u32 %v4763, 2147483648
        %v4770 = vsel %vm4768, %v4762, %v4769
        %vm4771 = vcmp.eq.s32.totalorder %v4766, 2
        %v4772 = vxor.u32 %v4762, 2147483648
        %v4773 = vsel %vm4771, %v4772, %v4763
        %v4774 = vsel %vm4767, %v4770, %v4773
        %v4775 = vsel %vm4764, nan, %v4774
        %v4776 = vand.u32 2147483647, %v4451
        %vm4777 = vcmp.le.f32.partialorder %v4776, 0.7853982
        %vm4778 = vcmp.lt.s32.totalorder %v4451, 0
        %v4779 = vand.u32 %v4451, 2139095040
        %v4780 = vshrl.u32 %v4779, 23
        %v4781 = vsub.s32 %v4780, 127
        %v4782 = vand.u32 2147483647, %v4451
        %v4783 = vand.u32 %v4782, 8388607
        %v4784 = vor.u32 %v4783, 8388608
        %v4785 = vsub.s32 0, %v4784
        %v4786 = vadd.s32 %v4781, 1
        %vm4787 = vcmp.gt.s32.totalorder %v4786, 0
        %v4788 = vsel %vm4787, %v4786, 0
        %v4789 = vshrl.u32 %v4788, 5
        %v4790 = vand.u32 %v4788, 31
        %v4791 = vsub.s32 32, %v4790
        %v4792 = vshrl.u32 683565275, %v4791
        %v4793 = vshll.u32 683565275, %v4790
        %v4794 = vshrl.u32 2475754826, %v4791
        %v4795 = vor.u32 %v4793, %v4794
        %v4796 = vshll.u32 2475754826, %v4790
        %v4797 = vshrl.u32 2131351028, %v4791
        %v4798 = vor.u32 %v4796, %v4797
        %v4799 = vshll.u32 2131351028, %v4790
        %v4800 = vshrl.u32 2102212464, %v4791
        %v4801 = vor.u32 %v4799, %v4800
        %v4802 = vshll.u32 2102212464, %v4790
        %v4803 = vshrl.u32 920167782, %v4791
        %v4804 = vor.u32 %v4802, %v4803
        %v4805 = vshll.u32 920167782, %v4790
        %v4806 = vshrl.u32 1326507024, %v4791
        %v4807 = vor.u32 %v4805, %v4806
        %vm4808 = vcmp.lt.s32.totalorder %v4789, 1
        %vm4809 = vcmp.lt.s32.totalorder %v4789, 2
        %vm4810 = vcmp.lt.s32.totalorder %v4789, 3
        %vm4811 = vcmp.lt.s32.totalorder %v4789, 4
        %v4812 = vsel %vm4808, %v4792, %v4795
        %v4813 = vsel %vm4811, %v4801, 2102212464
        %v4814 = vsel %vm4810, %v4798, %v4813
        %v4815 = vsel %vm4809, %v4812, %v4814
        %v4816 = vsel %vm4808, %v4795, %v4798
        %v4817 = vsel %vm4811, %v4804, 920167782
        %v4818 = vsel %vm4810, %v4801, %v4817
        %v4819 = vsel %vm4809, %v4816, %v4818
        %v4820 = vsel %vm4808, %v4798, %v4801
        %v4821 = vsel %vm4811, %v4807, 1326507024
        %v4822 = vsel %vm4810, %v4804, %v4821
        %v4823 = vsel %vm4809, %v4820, %v4822
        %v4824 = vshll.u32 %v4784, 8
        %v4825 = vmul.u32.u64.compose %v4824, %v4823
        %v4826 = vextract.low.u32 %v4825
        %v4827 = vextract.high.u32 %v4825
        %v4828 = vmul.u32.u64.compose %v4824, %v4819
        %v4829 = vextract.low.u32 %v4828
        %v4830 = vextract.high.u32 %v4828
        %v4831 = vmul.u32 %v4824, %v4815
        %v4832 = vadd.s32 %v4827, %v4829
        %vm4833 = vc.u32 %v4827, %v4829
        %v4834 = vadd.s32 %v4830, 1
        %v4835 = vsel %vm4833, %v4834, %v4830
        %v4836 = vadd.s32 %v4831, %v4835
        %v4837 = vadd.s32 %v4836, 536870912
        %v4838 = vshrl.u32 %v4837, 30
        %v4839 = vshll.u32 %v4838, 30
        %v4840 = vsub.s32 %v4836, %v4839
        %vm4841 = vcmp.lt.s32.totalorder %v4840, 0
        %v4842 = vsub.s32 0, %v4840
        %v4843 = vsel %vm4841, %v4842, %v4840
        %v4844 = vclz %v4843
        %v4845 = vsub.s32 %v4844, 2
        %vm4846 = vcmp.gt.s32.totalorder 0, %v4845
        %v4847 = vsel %vm4846, 0, %v4845
        %v4848 = vsub.s32 32, %v4847
        %v4849 = vshll.u32 %v4840, %v4847
        %v4850 = vshrl.u32 %v4832, %v4848
        %v4851 = vor.u32 %v4849, %v4850
        %v4852 = vsub.s32 4294967266, %v4847
        %v4853 = vadd.s32 %v4852, 127
        %v4854 = vshll.u32 %v4853, 23
        %v4855 = vor.u32 4788187, %v4854
        %v4856 = vand.u32 2147483647, %v4855
        %v4858 = vcvt.s32.f32 %v4851
        %v4859 = vmul.f32 %v4858, %v4856
        %v4860 = vxor.u32 %v4859, 2147483648
        %v4861 = vsel %vm4778, %v4860, %v4859
        %v4862 = vsub.s32 4, %v4838
        %v4863 = vsel %vm4778, %v4862, %v4838
        %v4864 = vsel %vm4777, %v4451, %v4861
        %v4865 = vsel %vm4777, 0, %v4863
        %v4866 = vcosq.f32.pop %v4864
        %v4867 = vsinq.f32.pop %v4864
        %vm4868 = vweird.f32 %v4451
        %v4869 = vadd.s32 %v4865, 3
        %v4870 = vand.u32 %v4869, 3
        %vm4871 = vcmp.lt.s32.totalorder %v4870, 2
        %vm4872 = vcmp.eq.s32.totalorder %v4870, 0
        %v4873 = vxor.u32 %v4867, 2147483648
        %v4874 = vsel %vm4872, %v4866, %v4873
        %vm4875 = vcmp.eq.s32.totalorder %v4870, 2
        %v4876 = vxor.u32 %v4866, 2147483648
        %v4877 = vsel %vm4875, %v4876, %v4867
        %v4878 = vsel %vm4871, %v4874, %v4877
        %v4879 = vsel %vm4868, nan, %v4878
        %v4880 = vand.u32 2147483647, %v4452
        %vm4881 = vcmp.le.f32.partialorder %v4880, 0.7853982
        %vm4882 = vcmp.lt.s32.totalorder %v4452, 0
        %v4883 = vand.u32 %v4452, 2139095040
        %v4884 = vshrl.u32 %v4883, 23
        %v4885 = vsub.s32 %v4884, 127
        %v4886 = vand.u32 2147483647, %v4452
        %v4887 = vand.u32 %v4886, 8388607
        %v4888 = vor.u32 %v4887, 8388608
        %v4889 = vsub.s32 0, %v4888
        %v4890 = vadd.s32 %v4885, 1
        %vm4891 = vcmp.gt.s32.totalorder %v4890, 0
        %v4892 = vsel %vm4891, %v4890, 0
        %v4893 = vshrl.u32 %v4892, 5
        %v4894 = vand.u32 %v4892, 31
        %v4895 = vsub.s32 32, %v4894
        %v4896 = vshrl.u32 683565275, %v4895
        %v4897 = vshll.u32 683565275, %v4894
        %v4898 = vshrl.u32 2475754826, %v4895
        %v4899 = vor.u32 %v4897, %v4898
        %v4900 = vshll.u32 2475754826, %v4894
        %v4901 = vshrl.u32 2131351028, %v4895
        %v4902 = vor.u32 %v4900, %v4901
        %v4903 = vshll.u32 2131351028, %v4894
        %v4904 = vshrl.u32 2102212464, %v4895
        %v4905 = vor.u32 %v4903, %v4904
        %v4906 = vshll.u32 2102212464, %v4894
        %v4907 = vshrl.u32 920167782, %v4895
        %v4908 = vor.u32 %v4906, %v4907
        %v4909 = vshll.u32 920167782, %v4894
        %v4910 = vshrl.u32 1326507024, %v4895
        %v4911 = vor.u32 %v4909, %v4910
        %vm4912 = vcmp.lt.s32.totalorder %v4893, 1
        %vm4913 = vcmp.lt.s32.totalorder %v4893, 2
        %vm4914 = vcmp.lt.s32.totalorder %v4893, 3
        %vm4915 = vcmp.lt.s32.totalorder %v4893, 4
        %v4916 = vsel %vm4912, %v4896, %v4899
        %v4917 = vsel %vm4915, %v4905, 2102212464
        %v4918 = vsel %vm4914, %v4902, %v4917
        %v4919 = vsel %vm4913, %v4916, %v4918
        %v4920 = vsel %vm4912, %v4899, %v4902
        %v4921 = vsel %vm4915, %v4908, 920167782
        %v4922 = vsel %vm4914, %v4905, %v4921
        %v4923 = vsel %vm4913, %v4920, %v4922
        %v4924 = vsel %vm4912, %v4902, %v4905
        %v4925 = vsel %vm4915, %v4911, 1326507024
        %v4926 = vsel %vm4914, %v4908, %v4925
        %v4927 = vsel %vm4913, %v4924, %v4926
        %v4928 = vshll.u32 %v4888, 8
        %v4929 = vmul.u32.u64.compose %v4928, %v4927
        %v4930 = vextract.low.u32 %v4929
        %v4931 = vextract.high.u32 %v4929
        %v4932 = vmul.u32.u64.compose %v4928, %v4923
        %v4933 = vextract.low.u32 %v4932
        %v4934 = vextract.high.u32 %v4932
        %v4935 = vmul.u32 %v4928, %v4919
        %v4936 = vadd.s32 %v4931, %v4933
        %vm4937 = vc.u32 %v4931, %v4933
        %v4938 = vadd.s32 %v4934, 1
        %v4939 = vsel %vm4937, %v4938, %v4934
        %v4940 = vadd.s32 %v4935, %v4939
        %v4941 = vadd.s32 %v4940, 536870912
        %v4942 = vshrl.u32 %v4941, 30
        %v4943 = vshll.u32 %v4942, 30
        %v4944 = vsub.s32 %v4940, %v4943
        %vm4945 = vcmp.lt.s32.totalorder %v4944, 0
        %v4946 = vsub.s32 0, %v4944
        %v4947 = vsel %vm4945, %v4946, %v4944
        %v4948 = vclz %v4947
        %v4949 = vsub.s32 %v4948, 2
        %vm4950 = vcmp.gt.s32.totalorder 0, %v4949
        %v4951 = vsel %vm4950, 0, %v4949
        %v4952 = vsub.s32 32, %v4951
        %v4953 = vshll.u32 %v4944, %v4951
        %v4954 = vshrl.u32 %v4936, %v4952
        %v4955 = vor.u32 %v4953, %v4954
        %v4956 = vsub.s32 4294967266, %v4951
        %v4957 = vadd.s32 %v4956, 127
        %v4958 = vshll.u32 %v4957, 23
        %v4959 = vor.u32 4788187, %v4958
        %v4960 = vand.u32 2147483647, %v4959
        %v4962 = vcvt.s32.f32 %v4955
        %v4963 = vmul.f32 %v4962, %v4960
        %v4964 = vxor.u32 %v4963, 2147483648
        %v4965 = vsel %vm4882, %v4964, %v4963
        %v4966 = vsub.s32 4, %v4942
        %v4967 = vsel %vm4882, %v4966, %v4942
        %v4968 = vsel %vm4881, %v4452, %v4965
        %v4969 = vsel %vm4881, 0, %v4967
        %v4970 = vcosq.f32.pop %v4968
        %v4971 = vsinq.f32.pop %v4968
        %vm4972 = vweird.f32 %v4452
        %v4973 = vadd.s32 %v4969, 3
        %v4974 = vand.u32 %v4973, 3
        %vm4975 = vcmp.lt.s32.totalorder %v4974, 2
        %vm4976 = vcmp.eq.s32.totalorder %v4974, 0
        %v4977 = vxor.u32 %v4971, 2147483648
        %v4978 = vsel %vm4976, %v4970, %v4977
        %vm4979 = vcmp.eq.s32.totalorder %v4974, 2
        %v4980 = vxor.u32 %v4970, 2147483648
        %v4981 = vsel %vm4979, %v4980, %v4971
        %v4982 = vsel %vm4975, %v4978, %v4981
        %v4983 = vsel %vm4972, nan, %v4982
        %v4984 = vand.u32 2147483647, %v4453
        %vm4985 = vcmp.le.f32.partialorder %v4984, 0.7853982
        %vm4986 = vcmp.lt.s32.totalorder %v4453, 0
        %v4987 = vand.u32 %v4453, 2139095040
        %v4988 = vshrl.u32 %v4987, 23
        %v4989 = vsub.s32 %v4988, 127
        %v4990 = vand.u32 2147483647, %v4453
        %v4991 = vand.u32 %v4990, 8388607
        %v4992 = vor.u32 %v4991, 8388608
        %v4993 = vsub.s32 0, %v4992
        %v4994 = vadd.s32 %v4989, 1
        %vm4995 = vcmp.gt.s32.totalorder %v4994, 0
        %v4996 = vsel %vm4995, %v4994, 0
        %v4997 = vshrl.u32 %v4996, 5
        %v4998 = vand.u32 %v4996, 31
        %v4999 = vsub.s32 32, %v4998
        %v5000 = vshrl.u32 683565275, %v4999
        %v5001 = vshll.u32 683565275, %v4998
        %v5002 = vshrl.u32 2475754826, %v4999
        %v5003 = vor.u32 %v5001, %v5002
        %v5004 = vshll.u32 2475754826, %v4998
        %v5005 = vshrl.u32 2131351028, %v4999
        %v5006 = vor.u32 %v5004, %v5005
        %v5007 = vshll.u32 2131351028, %v4998
        %v5008 = vshrl.u32 2102212464, %v4999
        %v5009 = vor.u32 %v5007, %v5008
        %v5010 = vshll.u32 2102212464, %v4998
        %v5011 = vshrl.u32 920167782, %v4999
        %v5012 = vor.u32 %v5010, %v5011
        %v5013 = vshll.u32 920167782, %v4998
        %v5014 = vshrl.u32 1326507024, %v4999
        %v5015 = vor.u32 %v5013, %v5014
        %vm5016 = vcmp.lt.s32.totalorder %v4997, 1
        %vm5017 = vcmp.lt.s32.totalorder %v4997, 2
        %vm5018 = vcmp.lt.s32.totalorder %v4997, 3
        %vm5019 = vcmp.lt.s32.totalorder %v4997, 4
        %v5020 = vsel %vm5016, %v5000, %v5003
        %v5021 = vsel %vm5019, %v5009, 2102212464
        %v5022 = vsel %vm5018, %v5006, %v5021
        %v5023 = vsel %vm5017, %v5020, %v5022
        %v5024 = vsel %vm5016, %v5003, %v5006
        %v5025 = vsel %vm5019, %v5012, 920167782
        %v5026 = vsel %vm5018, %v5009, %v5025
        %v5027 = vsel %vm5017, %v5024, %v5026
        %v5028 = vsel %vm5016, %v5006, %v5009
        %v5029 = vsel %vm5019, %v5015, 1326507024
        %v5030 = vsel %vm5018, %v5012, %v5029
        %v5031 = vsel %vm5017, %v5028, %v5030
        %v5032 = vshll.u32 %v4992, 8
        %v5033 = vmul.u32.u64.compose %v5032, %v5031
        %v5034 = vextract.low.u32 %v5033
        %v5035 = vextract.high.u32 %v5033
        %v5036 = vmul.u32.u64.compose %v5032, %v5027
        %v5037 = vextract.low.u32 %v5036
        %v5038 = vextract.high.u32 %v5036
        %v5039 = vmul.u32 %v5032, %v5023
        %v5040 = vadd.s32 %v5035, %v5037
        %vm5041 = vc.u32 %v5035, %v5037
        %v5042 = vadd.s32 %v5038, 1
        %v5043 = vsel %vm5041, %v5042, %v5038
        %v5044 = vadd.s32 %v5039, %v5043
        %v5045 = vadd.s32 %v5044, 536870912
        %v5046 = vshrl.u32 %v5045, 30
        %v5047 = vshll.u32 %v5046, 30
        %v5048 = vsub.s32 %v5044, %v5047
        %vm5049 = vcmp.lt.s32.totalorder %v5048, 0
        %v5050 = vsub.s32 0, %v5048
        %v5051 = vsel %vm5049, %v5050, %v5048
        %v5052 = vclz %v5051
        %v5053 = vsub.s32 %v5052, 2
        %vm5054 = vcmp.gt.s32.totalorder 0, %v5053
        %v5055 = vsel %vm5054, 0, %v5053
        %v5056 = vsub.s32 32, %v5055
        %v5057 = vshll.u32 %v5048, %v5055
        %v5058 = vshrl.u32 %v5040, %v5056
        %v5059 = vor.u32 %v5057, %v5058
        %v5060 = vsub.s32 4294967266, %v5055
        %v5061 = vadd.s32 %v5060, 127
        %v5062 = vshll.u32 %v5061, 23
        %v5063 = vor.u32 4788187, %v5062
        %v5064 = vand.u32 2147483647, %v5063
        %v5066 = vcvt.s32.f32 %v5059
        %v5067 = vmul.f32 %v5066, %v5064
        %v5068 = vxor.u32 %v5067, 2147483648
        %v5069 = vsel %vm4986, %v5068, %v5067
        %v5070 = vsub.s32 4, %v5046
        %v5071 = vsel %vm4986, %v5070, %v5046
        %v5072 = vsel %vm4985, %v4453, %v5069
        %v5073 = vsel %vm4985, 0, %v5071
        %v5074 = vcosq.f32.pop %v5072
        %v5075 = vsinq.f32.pop %v5072
        %vm5076 = vweird.f32 %v4453
        %v5077 = vadd.s32 %v5073, 3
        %v5078 = vand.u32 %v5077, 3
        %vm5079 = vcmp.lt.s32.totalorder %v5078, 2
        %vm5080 = vcmp.eq.s32.totalorder %v5078, 0
        %v5081 = vxor.u32 %v5075, 2147483648
        %v5082 = vsel %vm5080, %v5074, %v5081
        %vm5083 = vcmp.eq.s32.totalorder %v5078, 2
        %v5084 = vxor.u32 %v5074, 2147483648
        %v5085 = vsel %vm5083, %v5084, %v5075
        %v5086 = vsel %vm5079, %v5082, %v5085
        %v5087 = vsel %vm5076, nan, %v5086
        %v5088 = vand.u32 2147483647, %v4454
        %vm5089 = vcmp.le.f32.partialorder %v5088, 0.7853982
        %vm5090 = vcmp.lt.s32.totalorder %v4454, 0
        %v5091 = vand.u32 %v4454, 2139095040
        %v5092 = vshrl.u32 %v5091, 23
        %v5093 = vsub.s32 %v5092, 127
        %v5094 = vand.u32 2147483647, %v4454
        %v5095 = vand.u32 %v5094, 8388607
        %v5096 = vor.u32 %v5095, 8388608
        %v5097 = vsub.s32 0, %v5096
        %v5098 = vadd.s32 %v5093, 1
        %vm5099 = vcmp.gt.s32.totalorder %v5098, 0
        %v5100 = vsel %vm5099, %v5098, 0
        %v5101 = vshrl.u32 %v5100, 5
        %v5102 = vand.u32 %v5100, 31
        %v5103 = vsub.s32 32, %v5102
        %v5104 = vshrl.u32 683565275, %v5103
        %v5105 = vshll.u32 683565275, %v5102
        %v5106 = vshrl.u32 2475754826, %v5103
        %v5107 = vor.u32 %v5105, %v5106
        %v5108 = vshll.u32 2475754826, %v5102
        %v5109 = vshrl.u32 2131351028, %v5103
        %v5110 = vor.u32 %v5108, %v5109
        %v5111 = vshll.u32 2131351028, %v5102
        %v5112 = vshrl.u32 2102212464, %v5103
        %v5113 = vor.u32 %v5111, %v5112
        %v5114 = vshll.u32 2102212464, %v5102
        %v5115 = vshrl.u32 920167782, %v5103
        %v5116 = vor.u32 %v5114, %v5115
        %v5117 = vshll.u32 920167782, %v5102
        %v5118 = vshrl.u32 1326507024, %v5103
        %v5119 = vor.u32 %v5117, %v5118
        %vm5120 = vcmp.lt.s32.totalorder %v5101, 1
        %vm5121 = vcmp.lt.s32.totalorder %v5101, 2
        %vm5122 = vcmp.lt.s32.totalorder %v5101, 3
        %vm5123 = vcmp.lt.s32.totalorder %v5101, 4
        %v5124 = vsel %vm5120, %v5104, %v5107
        %v5125 = vsel %vm5123, %v5113, 2102212464
        %v5126 = vsel %vm5122, %v5110, %v5125
        %v5127 = vsel %vm5121, %v5124, %v5126
        %v5128 = vsel %vm5120, %v5107, %v5110
        %v5129 = vsel %vm5123, %v5116, 920167782
        %v5130 = vsel %vm5122, %v5113, %v5129
        %v5131 = vsel %vm5121, %v5128, %v5130
        %v5132 = vsel %vm5120, %v5110, %v5113
        %v5133 = vsel %vm5123, %v5119, 1326507024
        %v5134 = vsel %vm5122, %v5116, %v5133
        %v5135 = vsel %vm5121, %v5132, %v5134
        %v5136 = vshll.u32 %v5096, 8
        %v5137 = vmul.u32.u64.compose %v5136, %v5135
        %v5138 = vextract.low.u32 %v5137
        %v5139 = vextract.high.u32 %v5137
        %v5140 = vmul.u32.u64.compose %v5136, %v5131
        %v5141 = vextract.low.u32 %v5140
        %v5142 = vextract.high.u32 %v5140
        %v5143 = vmul.u32 %v5136, %v5127
        %v5144 = vadd.s32 %v5139, %v5141
        %vm5145 = vc.u32 %v5139, %v5141
        %v5146 = vadd.s32 %v5142, 1
        %v5147 = vsel %vm5145, %v5146, %v5142
        %v5148 = vadd.s32 %v5143, %v5147
        %v5149 = vadd.s32 %v5148, 536870912
        %v5150 = vshrl.u32 %v5149, 30
        %v5151 = vshll.u32 %v5150, 30
        %v5152 = vsub.s32 %v5148, %v5151
        %vm5153 = vcmp.lt.s32.totalorder %v5152, 0
        %v5154 = vsub.s32 0, %v5152
        %v5155 = vsel %vm5153, %v5154, %v5152
        %v5156 = vclz %v5155
        %v5157 = vsub.s32 %v5156, 2
        %vm5158 = vcmp.gt.s32.totalorder 0, %v5157
        %v5159 = vsel %vm5158, 0, %v5157
        %v5160 = vsub.s32 32, %v5159
        %v5161 = vshll.u32 %v5152, %v5159
        %v5162 = vshrl.u32 %v5144, %v5160
        %v5163 = vor.u32 %v5161, %v5162
        %v5164 = vsub.s32 4294967266, %v5159
        %v5165 = vadd.s32 %v5164, 127
        %v5166 = vshll.u32 %v5165, 23
        %v5167 = vor.u32 4788187, %v5166
        %v5168 = vand.u32 2147483647, %v5167
        %v5170 = vcvt.s32.f32 %v5163
        %v5171 = vmul.f32 %v5170, %v5168
        %v5172 = vxor.u32 %v5171, 2147483648
        %v5173 = vsel %vm5090, %v5172, %v5171
        %v5174 = vsub.s32 4, %v5150
        %v5175 = vsel %vm5090, %v5174, %v5150
        %v5176 = vsel %vm5089, %v4454, %v5173
        %v5177 = vsel %vm5089, 0, %v5175
        %v5178 = vcosq.f32.pop %v5176
        %v5179 = vsinq.f32.pop %v5176
        %vm5180 = vweird.f32 %v4454
        %v5181 = vadd.s32 %v5177, 3
        %v5182 = vand.u32 %v5181, 3
        %vm5183 = vcmp.lt.s32.totalorder %v5182, 2
        %vm5184 = vcmp.eq.s32.totalorder %v5182, 0
        %v5185 = vxor.u32 %v5179, 2147483648
        %v5186 = vsel %vm5184, %v5178, %v5185
        %vm5187 = vcmp.eq.s32.totalorder %v5182, 2
        %v5188 = vxor.u32 %v5178, 2147483648
        %v5189 = vsel %vm5187, %v5188, %v5179
        %v5190 = vsel %vm5183, %v5186, %v5189
        %v5191 = vsel %vm5180, nan, %v5190
        %v5192 = vand.u32 2147483647, %v4455
        %vm5193 = vcmp.le.f32.partialorder %v5192, 0.7853982
        %vm5194 = vcmp.lt.s32.totalorder %v4455, 0
        %v5195 = vand.u32 %v4455, 2139095040
        %v5196 = vshrl.u32 %v5195, 23
        %v5197 = vsub.s32 %v5196, 127
        %v5198 = vand.u32 2147483647, %v4455
        %v5199 = vand.u32 %v5198, 8388607
        %v5200 = vor.u32 %v5199, 8388608
        %v5201 = vsub.s32 0, %v5200
        %v5202 = vadd.s32 %v5197, 1
        %vm5203 = vcmp.gt.s32.totalorder %v5202, 0
        %v5204 = vsel %vm5203, %v5202, 0
        %v5205 = vshrl.u32 %v5204, 5
        %v5206 = vand.u32 %v5204, 31
        %v5207 = vsub.s32 32, %v5206
        %v5208 = vshrl.u32 683565275, %v5207
        %v5209 = vshll.u32 683565275, %v5206
        %v5210 = vshrl.u32 2475754826, %v5207
        %v5211 = vor.u32 %v5209, %v5210
        %v5212 = vshll.u32 2475754826, %v5206
        %v5213 = vshrl.u32 2131351028, %v5207
        %v5214 = vor.u32 %v5212, %v5213
        %v5215 = vshll.u32 2131351028, %v5206
        %v5216 = vshrl.u32 2102212464, %v5207
        %v5217 = vor.u32 %v5215, %v5216
        %v5218 = vshll.u32 2102212464, %v5206
        %v5219 = vshrl.u32 920167782, %v5207
        %v5220 = vor.u32 %v5218, %v5219
        %v5221 = vshll.u32 920167782, %v5206
        %v5222 = vshrl.u32 1326507024, %v5207
        %v5223 = vor.u32 %v5221, %v5222
        %vm5224 = vcmp.lt.s32.totalorder %v5205, 1
        %vm5225 = vcmp.lt.s32.totalorder %v5205, 2
        %vm5226 = vcmp.lt.s32.totalorder %v5205, 3
        %vm5227 = vcmp.lt.s32.totalorder %v5205, 4
        %v5228 = vsel %vm5224, %v5208, %v5211
        %v5229 = vsel %vm5227, %v5217, 2102212464
        %v5230 = vsel %vm5226, %v5214, %v5229
        %v5231 = vsel %vm5225, %v5228, %v5230
        %v5232 = vsel %vm5224, %v5211, %v5214
        %v5233 = vsel %vm5227, %v5220, 920167782
        %v5234 = vsel %vm5226, %v5217, %v5233
        %v5235 = vsel %vm5225, %v5232, %v5234
        %v5236 = vsel %vm5224, %v5214, %v5217
        %v5237 = vsel %vm5227, %v5223, 1326507024
        %v5238 = vsel %vm5226, %v5220, %v5237
        %v5239 = vsel %vm5225, %v5236, %v5238
        %v5240 = vshll.u32 %v5200, 8
        %v5241 = vmul.u32.u64.compose %v5240, %v5239
        %v5242 = vextract.low.u32 %v5241
        %v5243 = vextract.high.u32 %v5241
        %v5244 = vmul.u32.u64.compose %v5240, %v5235
        %v5245 = vextract.low.u32 %v5244
        %v5246 = vextract.high.u32 %v5244
        %v5247 = vmul.u32 %v5240, %v5231
        %v5248 = vadd.s32 %v5243, %v5245
        %vm5249 = vc.u32 %v5243, %v5245
        %v5250 = vadd.s32 %v5246, 1
        %v5251 = vsel %vm5249, %v5250, %v5246
        %v5252 = vadd.s32 %v5247, %v5251
        %v5253 = vadd.s32 %v5252, 536870912
        %v5254 = vshrl.u32 %v5253, 30
        %v5255 = vshll.u32 %v5254, 30
        %v5256 = vsub.s32 %v5252, %v5255
        %vm5257 = vcmp.lt.s32.totalorder %v5256, 0
        %v5258 = vsub.s32 0, %v5256
        %v5259 = vsel %vm5257, %v5258, %v5256
        %v5260 = vclz %v5259
        %v5261 = vsub.s32 %v5260, 2
        %vm5262 = vcmp.gt.s32.totalorder 0, %v5261
        %v5263 = vsel %vm5262, 0, %v5261
        %v5264 = vsub.s32 32, %v5263
        %v5265 = vshll.u32 %v5256, %v5263
        %v5266 = vshrl.u32 %v5248, %v5264
        %v5267 = vor.u32 %v5265, %v5266
        %v5268 = vsub.s32 4294967266, %v5263
        %v5269 = vadd.s32 %v5268, 127
        %v5270 = vshll.u32 %v5269, 23
        %v5271 = vor.u32 4788187, %v5270
        %v5272 = vand.u32 2147483647, %v5271
        %v5274 = vcvt.s32.f32 %v5267
        %v5275 = vmul.f32 %v5274, %v5272
        %v5276 = vxor.u32 %v5275, 2147483648
        %v5277 = vsel %vm5194, %v5276, %v5275
        %v5278 = vsub.s32 4, %v5254
        %v5279 = vsel %vm5194, %v5278, %v5254
        %v5280 = vsel %vm5193, %v4455, %v5277
        %v5281 = vsel %vm5193, 0, %v5279
        %v5282 = vcosq.f32.pop %v5280
        %v5283 = vsinq.f32.pop %v5280
        %vm5284 = vweird.f32 %v4455
        %v5285 = vadd.s32 %v5281, 3
        %v5286 = vand.u32 %v5285, 3
        %vm5287 = vcmp.lt.s32.totalorder %v5286, 2
        %vm5288 = vcmp.eq.s32.totalorder %v5286, 0
        %v5289 = vxor.u32 %v5283, 2147483648
        %v5290 = vsel %vm5288, %v5282, %v5289
        %vm5291 = vcmp.eq.s32.totalorder %v5286, 2
        %v5292 = vxor.u32 %v5282, 2147483648
        %v5293 = vsel %vm5291, %v5292, %v5283
        %v5294 = vsel %vm5287, %v5290, %v5293
        %v5295 = vsel %vm5284, nan, %v5294
        %v5296 = vand.u32 2147483647, %v4456
        %vm5297 = vcmp.le.f32.partialorder %v5296, 0.7853982
        %vm5298 = vcmp.lt.s32.totalorder %v4456, 0
        %v5299 = vand.u32 %v4456, 2139095040
        %v5300 = vshrl.u32 %v5299, 23
        %v5301 = vsub.s32 %v5300, 127
        %v5302 = vand.u32 2147483647, %v4456
        %v5303 = vand.u32 %v5302, 8388607
        %v5304 = vor.u32 %v5303, 8388608
        %v5305 = vsub.s32 0, %v5304
        %v5306 = vadd.s32 %v5301, 1
        %vm5307 = vcmp.gt.s32.totalorder %v5306, 0
        %v5308 = vsel %vm5307, %v5306, 0
        %v5309 = vshrl.u32 %v5308, 5
        %v5310 = vand.u32 %v5308, 31
        %v5311 = vsub.s32 32, %v5310
        %v5312 = vshrl.u32 683565275, %v5311
        %v5313 = vshll.u32 683565275, %v5310
        %v5314 = vshrl.u32 2475754826, %v5311
        %v5315 = vor.u32 %v5313, %v5314
        %v5316 = vshll.u32 2475754826, %v5310
        %v5317 = vshrl.u32 2131351028, %v5311
        %v5318 = vor.u32 %v5316, %v5317
        %v5319 = vshll.u32 2131351028, %v5310
        %v5320 = vshrl.u32 2102212464, %v5311
        %v5321 = vor.u32 %v5319, %v5320
        %v5322 = vshll.u32 2102212464, %v5310
        %v5323 = vshrl.u32 920167782, %v5311
        %v5324 = vor.u32 %v5322, %v5323
        %v5325 = vshll.u32 920167782, %v5310
        %v5326 = vshrl.u32 1326507024, %v5311
        %v5327 = vor.u32 %v5325, %v5326
        %vm5328 = vcmp.lt.s32.totalorder %v5309, 1
        %vm5329 = vcmp.lt.s32.totalorder %v5309, 2
        %vm5330 = vcmp.lt.s32.totalorder %v5309, 3
        %vm5331 = vcmp.lt.s32.totalorder %v5309, 4
        %v5332 = vsel %vm5328, %v5312, %v5315
        %v5333 = vsel %vm5331, %v5321, 2102212464
        %v5334 = vsel %vm5330, %v5318, %v5333
        %v5335 = vsel %vm5329, %v5332, %v5334
        %v5336 = vsel %vm5328, %v5315, %v5318
        %v5337 = vsel %vm5331, %v5324, 920167782
        %v5338 = vsel %vm5330, %v5321, %v5337
        %v5339 = vsel %vm5329, %v5336, %v5338
        %v5340 = vsel %vm5328, %v5318, %v5321
        %v5341 = vsel %vm5331, %v5327, 1326507024
        %v5342 = vsel %vm5330, %v5324, %v5341
        %v5343 = vsel %vm5329, %v5340, %v5342
        %v5344 = vshll.u32 %v5304, 8
        %v5345 = vmul.u32.u64.compose %v5344, %v5343
        %v5346 = vextract.low.u32 %v5345
        %v5347 = vextract.high.u32 %v5345
        %v5348 = vmul.u32.u64.compose %v5344, %v5339
        %v5349 = vextract.low.u32 %v5348
        %v5350 = vextract.high.u32 %v5348
        %v5351 = vmul.u32 %v5344, %v5335
        %v5352 = vadd.s32 %v5347, %v5349
        %vm5353 = vc.u32 %v5347, %v5349
        %v5354 = vadd.s32 %v5350, 1
        %v5355 = vsel %vm5353, %v5354, %v5350
        %v5356 = vadd.s32 %v5351, %v5355
        %v5357 = vadd.s32 %v5356, 536870912
        %v5358 = vshrl.u32 %v5357, 30
        %v5359 = vshll.u32 %v5358, 30
        %v5360 = vsub.s32 %v5356, %v5359
        %vm5361 = vcmp.lt.s32.totalorder %v5360, 0
        %v5362 = vsub.s32 0, %v5360
        %v5363 = vsel %vm5361, %v5362, %v5360
        %v5364 = vclz %v5363
        %v5365 = vsub.s32 %v5364, 2
        %vm5366 = vcmp.gt.s32.totalorder 0, %v5365
        %v5367 = vsel %vm5366, 0, %v5365
        %v5368 = vsub.s32 32, %v5367
        %v5369 = vshll.u32 %v5360, %v5367
        %v5370 = vshrl.u32 %v5352, %v5368
        %v5371 = vor.u32 %v5369, %v5370
        %v5372 = vsub.s32 4294967266, %v5367
        %v5373 = vadd.s32 %v5372, 127
        %v5374 = vshll.u32 %v5373, 23
        %v5375 = vor.u32 4788187, %v5374
        %v5376 = vand.u32 2147483647, %v5375
        %v5378 = vcvt.s32.f32 %v5371
        %v5379 = vmul.f32 %v5378, %v5376
        %v5380 = vxor.u32 %v5379, 2147483648
        %v5381 = vsel %vm5298, %v5380, %v5379
        %v5382 = vsub.s32 4, %v5358
        %v5383 = vsel %vm5298, %v5382, %v5358
        %v5384 = vsel %vm5297, %v4456, %v5381
        %v5385 = vsel %vm5297, 0, %v5383
        %v5386 = vcosq.f32.pop %v5384
        %v5387 = vsinq.f32.pop %v5384
        %vm5388 = vweird.f32 %v4456
        %v5389 = vadd.s32 %v5385, 3
        %v5390 = vand.u32 %v5389, 3
        %vm5391 = vcmp.lt.s32.totalorder %v5390, 2
        %vm5392 = vcmp.eq.s32.totalorder %v5390, 0
        %v5393 = vxor.u32 %v5387, 2147483648
        %v5394 = vsel %vm5392, %v5386, %v5393
        %vm5395 = vcmp.eq.s32.totalorder %v5390, 2
        %v5396 = vxor.u32 %v5386, 2147483648
        %v5397 = vsel %vm5395, %v5396, %v5387
        %v5398 = vsel %vm5391, %v5394, %v5397
        %v5399 = vsel %vm5388, nan, %v5398
        %v5400 = vand.u32 2147483647, %v4457
        %vm5401 = vcmp.le.f32.partialorder %v5400, 0.7853982
        %vm5402 = vcmp.lt.s32.totalorder %v4457, 0
        %v5403 = vand.u32 %v4457, 2139095040
        %v5404 = vshrl.u32 %v5403, 23
        %v5405 = vsub.s32 %v5404, 127
        %v5406 = vand.u32 2147483647, %v4457
        %v5407 = vand.u32 %v5406, 8388607
        %v5408 = vor.u32 %v5407, 8388608
        %v5409 = vsub.s32 0, %v5408
        %v5410 = vadd.s32 %v5405, 1
        %vm5411 = vcmp.gt.s32.totalorder %v5410, 0
        %v5412 = vsel %vm5411, %v5410, 0
        %v5413 = vshrl.u32 %v5412, 5
        %v5414 = vand.u32 %v5412, 31
        %v5415 = vsub.s32 32, %v5414
        %v5416 = vshrl.u32 683565275, %v5415
        %v5417 = vshll.u32 683565275, %v5414
        %v5418 = vshrl.u32 2475754826, %v5415
        %v5419 = vor.u32 %v5417, %v5418
        %v5420 = vshll.u32 2475754826, %v5414
        %v5421 = vshrl.u32 2131351028, %v5415
        %v5422 = vor.u32 %v5420, %v5421
        %v5423 = vshll.u32 2131351028, %v5414
        %v5424 = vshrl.u32 2102212464, %v5415
        %v5425 = vor.u32 %v5423, %v5424
        %v5426 = vshll.u32 2102212464, %v5414
        %v5427 = vshrl.u32 920167782, %v5415
        %v5428 = vor.u32 %v5426, %v5427
        %v5429 = vshll.u32 920167782, %v5414
        %v5430 = vshrl.u32 1326507024, %v5415
        %v5431 = vor.u32 %v5429, %v5430
        %vm5432 = vcmp.lt.s32.totalorder %v5413, 1
        %vm5433 = vcmp.lt.s32.totalorder %v5413, 2
        %vm5434 = vcmp.lt.s32.totalorder %v5413, 3
        %vm5435 = vcmp.lt.s32.totalorder %v5413, 4
        %v5436 = vsel %vm5432, %v5416, %v5419
        %v5437 = vsel %vm5435, %v5425, 2102212464
        %v5438 = vsel %vm5434, %v5422, %v5437
        %v5439 = vsel %vm5433, %v5436, %v5438
        %v5440 = vsel %vm5432, %v5419, %v5422
        %v5441 = vsel %vm5435, %v5428, 920167782
        %v5442 = vsel %vm5434, %v5425, %v5441
        %v5443 = vsel %vm5433, %v5440, %v5442
        %v5444 = vsel %vm5432, %v5422, %v5425
        %v5445 = vsel %vm5435, %v5431, 1326507024
        %v5446 = vsel %vm5434, %v5428, %v5445
        %v5447 = vsel %vm5433, %v5444, %v5446
        %v5448 = vshll.u32 %v5408, 8
        %v5449 = vmul.u32.u64.compose %v5448, %v5447
        %v5450 = vextract.low.u32 %v5449
        %v5451 = vextract.high.u32 %v5449
        %v5452 = vmul.u32.u64.compose %v5448, %v5443
        %v5453 = vextract.low.u32 %v5452
        %v5454 = vextract.high.u32 %v5452
        %v5455 = vmul.u32 %v5448, %v5439
        %v5456 = vadd.s32 %v5451, %v5453
        %vm5457 = vc.u32 %v5451, %v5453
        %v5458 = vadd.s32 %v5454, 1
        %v5459 = vsel %vm5457, %v5458, %v5454
        %v5460 = vadd.s32 %v5455, %v5459
        %v5461 = vadd.s32 %v5460, 536870912
        %v5462 = vshrl.u32 %v5461, 30
        %v5463 = vshll.u32 %v5462, 30
        %v5464 = vsub.s32 %v5460, %v5463
        %vm5465 = vcmp.lt.s32.totalorder %v5464, 0
        %v5466 = vsub.s32 0, %v5464
        %v5467 = vsel %vm5465, %v5466, %v5464
        %v5468 = vclz %v5467
        %v5469 = vsub.s32 %v5468, 2
        %vm5470 = vcmp.gt.s32.totalorder 0, %v5469
        %v5471 = vsel %vm5470, 0, %v5469
        %v5472 = vsub.s32 32, %v5471
        %v5473 = vshll.u32 %v5464, %v5471
        %v5474 = vshrl.u32 %v5456, %v5472
        %v5475 = vor.u32 %v5473, %v5474
        %v5476 = vsub.s32 4294967266, %v5471
        %v5477 = vadd.s32 %v5476, 127
        %v5478 = vshll.u32 %v5477, 23
        %v5479 = vor.u32 4788187, %v5478
        %v5480 = vand.u32 2147483647, %v5479
        %v5482 = vcvt.s32.f32 %v5475
        %v5483 = vmul.f32 %v5482, %v5480
        %v5484 = vxor.u32 %v5483, 2147483648
        %v5485 = vsel %vm5402, %v5484, %v5483
        %v5486 = vsub.s32 4, %v5462
        %v5487 = vsel %vm5402, %v5486, %v5462
        %v5488 = vsel %vm5401, %v4457, %v5485
        %v5489 = vsel %vm5401, 0, %v5487
        %v5490 = vcosq.f32.pop %v5488
        %v5491 = vsinq.f32.pop %v5488
        %vm5492 = vweird.f32 %v4457
        %v5493 = vadd.s32 %v5489, 3
        %v5494 = vand.u32 %v5493, 3
        %vm5495 = vcmp.lt.s32.totalorder %v5494, 2
        %vm5496 = vcmp.eq.s32.totalorder %v5494, 0
        %v5497 = vxor.u32 %v5491, 2147483648
        %v5498 = vsel %vm5496, %v5490, %v5497
        %vm5499 = vcmp.eq.s32.totalorder %v5494, 2
        %v5500 = vxor.u32 %v5490, 2147483648
        %v5501 = vsel %vm5499, %v5500, %v5491
        %v5502 = vsel %vm5495, %v5498, %v5501
        %v5503 = vsel %vm5492, nan, %v5502
        %v5504 = vand.u32 2147483647, %v4458
        %vm5505 = vcmp.le.f32.partialorder %v5504, 0.7853982
        %vm5506 = vcmp.lt.s32.totalorder %v4458, 0
        %v5507 = vand.u32 %v4458, 2139095040
        %v5508 = vshrl.u32 %v5507, 23
        %v5509 = vsub.s32 %v5508, 127
        %v5510 = vand.u32 2147483647, %v4458
        %v5511 = vand.u32 %v5510, 8388607
        %v5512 = vor.u32 %v5511, 8388608
        %v5513 = vsub.s32 0, %v5512
        %v5514 = vadd.s32 %v5509, 1
        %vm5515 = vcmp.gt.s32.totalorder %v5514, 0
        %v5516 = vsel %vm5515, %v5514, 0
        %v5517 = vshrl.u32 %v5516, 5
        %v5518 = vand.u32 %v5516, 31
        %v5519 = vsub.s32 32, %v5518
        %v5520 = vshrl.u32 683565275, %v5519
        %v5521 = vshll.u32 683565275, %v5518
        %v5522 = vshrl.u32 2475754826, %v5519
        %v5523 = vor.u32 %v5521, %v5522
        %v5524 = vshll.u32 2475754826, %v5518
        %v5525 = vshrl.u32 2131351028, %v5519
        %v5526 = vor.u32 %v5524, %v5525
        %v5527 = vshll.u32 2131351028, %v5518
        %v5528 = vshrl.u32 2102212464, %v5519
        %v5529 = vor.u32 %v5527, %v5528
        %v5530 = vshll.u32 2102212464, %v5518
        %v5531 = vshrl.u32 920167782, %v5519
        %v5532 = vor.u32 %v5530, %v5531
        %v5533 = vshll.u32 920167782, %v5518
        %v5534 = vshrl.u32 1326507024, %v5519
        %v5535 = vor.u32 %v5533, %v5534
        %vm5536 = vcmp.lt.s32.totalorder %v5517, 1
        %vm5537 = vcmp.lt.s32.totalorder %v5517, 2
        %vm5538 = vcmp.lt.s32.totalorder %v5517, 3
        %vm5539 = vcmp.lt.s32.totalorder %v5517, 4
        %v5540 = vsel %vm5536, %v5520, %v5523
        %v5541 = vsel %vm5539, %v5529, 2102212464
        %v5542 = vsel %vm5538, %v5526, %v5541
        %v5543 = vsel %vm5537, %v5540, %v5542
        %v5544 = vsel %vm5536, %v5523, %v5526
        %v5545 = vsel %vm5539, %v5532, 920167782
        %v5546 = vsel %vm5538, %v5529, %v5545
        %v5547 = vsel %vm5537, %v5544, %v5546
        %v5548 = vsel %vm5536, %v5526, %v5529
        %v5549 = vsel %vm5539, %v5535, 1326507024
        %v5550 = vsel %vm5538, %v5532, %v5549
        %v5551 = vsel %vm5537, %v5548, %v5550
        %v5552 = vshll.u32 %v5512, 8
        %v5553 = vmul.u32.u64.compose %v5552, %v5551
        %v5554 = vextract.low.u32 %v5553
        %v5555 = vextract.high.u32 %v5553
        %v5556 = vmul.u32.u64.compose %v5552, %v5547
        %v5557 = vextract.low.u32 %v5556
        %v5558 = vextract.high.u32 %v5556
        %v5559 = vmul.u32 %v5552, %v5543
        %v5560 = vadd.s32 %v5555, %v5557
        %vm5561 = vc.u32 %v5555, %v5557
        %v5562 = vadd.s32 %v5558, 1
        %v5563 = vsel %vm5561, %v5562, %v5558
        %v5564 = vadd.s32 %v5559, %v5563
        %v5565 = vadd.s32 %v5564, 536870912
        %v5566 = vshrl.u32 %v5565, 30
        %v5567 = vshll.u32 %v5566, 30
        %v5568 = vsub.s32 %v5564, %v5567
        %vm5569 = vcmp.lt.s32.totalorder %v5568, 0
        %v5570 = vsub.s32 0, %v5568
        %v5571 = vsel %vm5569, %v5570, %v5568
        %v5572 = vclz %v5571
        %v5573 = vsub.s32 %v5572, 2
        %vm5574 = vcmp.gt.s32.totalorder 0, %v5573
        %v5575 = vsel %vm5574, 0, %v5573
        %v5576 = vsub.s32 32, %v5575
        %v5577 = vshll.u32 %v5568, %v5575
        %v5578 = vshrl.u32 %v5560, %v5576
        %v5579 = vor.u32 %v5577, %v5578
        %v5580 = vsub.s32 4294967266, %v5575
        %v5581 = vadd.s32 %v5580, 127
        %v5582 = vshll.u32 %v5581, 23
        %v5583 = vor.u32 4788187, %v5582
        %v5584 = vand.u32 2147483647, %v5583
        %v5586 = vcvt.s32.f32 %v5579
        %v5587 = vmul.f32 %v5586, %v5584
        %v5588 = vxor.u32 %v5587, 2147483648
        %v5589 = vsel %vm5506, %v5588, %v5587
        %v5590 = vsub.s32 4, %v5566
        %v5591 = vsel %vm5506, %v5590, %v5566
        %v5592 = vsel %vm5505, %v4458, %v5589
        %v5593 = vsel %vm5505, 0, %v5591
        %v5594 = vcosq.f32.pop %v5592
        %v5595 = vsinq.f32.pop %v5592
        %vm5596 = vweird.f32 %v4458
        %v5597 = vadd.s32 %v5593, 3
        %v5598 = vand.u32 %v5597, 3
        %vm5599 = vcmp.lt.s32.totalorder %v5598, 2
        %vm5600 = vcmp.eq.s32.totalorder %v5598, 0
        %v5601 = vxor.u32 %v5595, 2147483648
        %v5602 = vsel %vm5600, %v5594, %v5601
        %vm5603 = vcmp.eq.s32.totalorder %v5598, 2
        %v5604 = vxor.u32 %v5594, 2147483648
        %v5605 = vsel %vm5603, %v5604, %v5595
        %v5606 = vsel %vm5599, %v5602, %v5605
        %v5607 = vsel %vm5596, nan, %v5606
        %v5608 = vand.u32 2147483647, %v4459
        %vm5609 = vcmp.le.f32.partialorder %v5608, 0.7853982
        %vm5610 = vcmp.lt.s32.totalorder %v4459, 0
        %v5611 = vand.u32 %v4459, 2139095040
        %v5612 = vshrl.u32 %v5611, 23
        %v5613 = vsub.s32 %v5612, 127
        %v5614 = vand.u32 2147483647, %v4459
        %v5615 = vand.u32 %v5614, 8388607
        %v5616 = vor.u32 %v5615, 8388608
        %v5617 = vsub.s32 0, %v5616
        %v5618 = vadd.s32 %v5613, 1
        %vm5619 = vcmp.gt.s32.totalorder %v5618, 0
        %v5620 = vsel %vm5619, %v5618, 0
        %v5621 = vshrl.u32 %v5620, 5
        %v5622 = vand.u32 %v5620, 31
        %v5623 = vsub.s32 32, %v5622
        %v5624 = vshrl.u32 683565275, %v5623
        %v5625 = vshll.u32 683565275, %v5622
        %v5626 = vshrl.u32 2475754826, %v5623
        %v5627 = vor.u32 %v5625, %v5626
        %v5628 = vshll.u32 2475754826, %v5622
        %v5629 = vshrl.u32 2131351028, %v5623
        %v5630 = vor.u32 %v5628, %v5629
        %v5631 = vshll.u32 2131351028, %v5622
        %v5632 = vshrl.u32 2102212464, %v5623
        %v5633 = vor.u32 %v5631, %v5632
        %v5634 = vshll.u32 2102212464, %v5622
        %v5635 = vshrl.u32 920167782, %v5623
        %v5636 = vor.u32 %v5634, %v5635
        %v5637 = vshll.u32 920167782, %v5622
        %v5638 = vshrl.u32 1326507024, %v5623
        %v5639 = vor.u32 %v5637, %v5638
        %vm5640 = vcmp.lt.s32.totalorder %v5621, 1
        %vm5641 = vcmp.lt.s32.totalorder %v5621, 2
        %vm5642 = vcmp.lt.s32.totalorder %v5621, 3
        %vm5643 = vcmp.lt.s32.totalorder %v5621, 4
        %v5644 = vsel %vm5640, %v5624, %v5627
        %v5645 = vsel %vm5643, %v5633, 2102212464
        %v5646 = vsel %vm5642, %v5630, %v5645
        %v5647 = vsel %vm5641, %v5644, %v5646
        %v5648 = vsel %vm5640, %v5627, %v5630
        %v5649 = vsel %vm5643, %v5636, 920167782
        %v5650 = vsel %vm5642, %v5633, %v5649
        %v5651 = vsel %vm5641, %v5648, %v5650
        %v5652 = vsel %vm5640, %v5630, %v5633
        %v5653 = vsel %vm5643, %v5639, 1326507024
        %v5654 = vsel %vm5642, %v5636, %v5653
        %v5655 = vsel %vm5641, %v5652, %v5654
        %v5656 = vshll.u32 %v5616, 8
        %v5657 = vmul.u32.u64.compose %v5656, %v5655
        %v5658 = vextract.low.u32 %v5657
        %v5659 = vextract.high.u32 %v5657
        %v5660 = vmul.u32.u64.compose %v5656, %v5651
        %v5661 = vextract.low.u32 %v5660
        %v5662 = vextract.high.u32 %v5660
        %v5663 = vmul.u32 %v5656, %v5647
        %v5664 = vadd.s32 %v5659, %v5661
        %vm5665 = vc.u32 %v5659, %v5661
        %v5666 = vadd.s32 %v5662, 1
        %v5667 = vsel %vm5665, %v5666, %v5662
        %v5668 = vadd.s32 %v5663, %v5667
        %v5669 = vadd.s32 %v5668, 536870912
        %v5670 = vshrl.u32 %v5669, 30
        %v5671 = vshll.u32 %v5670, 30
        %v5672 = vsub.s32 %v5668, %v5671
        %vm5673 = vcmp.lt.s32.totalorder %v5672, 0
        %v5674 = vsub.s32 0, %v5672
        %v5675 = vsel %vm5673, %v5674, %v5672
        %v5676 = vclz %v5675
        %v5677 = vsub.s32 %v5676, 2
        %vm5678 = vcmp.gt.s32.totalorder 0, %v5677
        %v5679 = vsel %vm5678, 0, %v5677
        %v5680 = vsub.s32 32, %v5679
        %v5681 = vshll.u32 %v5672, %v5679
        %v5682 = vshrl.u32 %v5664, %v5680
        %v5683 = vor.u32 %v5681, %v5682
        %v5684 = vsub.s32 4294967266, %v5679
        %v5685 = vadd.s32 %v5684, 127
        %v5686 = vshll.u32 %v5685, 23
        %v5687 = vor.u32 4788187, %v5686
        %v5688 = vand.u32 2147483647, %v5687
        %v5690 = vcvt.s32.f32 %v5683
        %v5691 = vmul.f32 %v5690, %v5688
        %v5692 = vxor.u32 %v5691, 2147483648
        %v5693 = vsel %vm5610, %v5692, %v5691
        %v5694 = vsub.s32 4, %v5670
        %v5695 = vsel %vm5610, %v5694, %v5670
        %v5696 = vsel %vm5609, %v4459, %v5693
        %v5697 = vsel %vm5609, 0, %v5695
        %v5698 = vcosq.f32.pop %v5696
        %v5699 = vsinq.f32.pop %v5696
        %vm5700 = vweird.f32 %v4459
        %v5701 = vadd.s32 %v5697, 3
        %v5702 = vand.u32 %v5701, 3
        %vm5703 = vcmp.lt.s32.totalorder %v5702, 2
        %vm5704 = vcmp.eq.s32.totalorder %v5702, 0
        %v5705 = vxor.u32 %v5699, 2147483648
        %v5706 = vsel %vm5704, %v5698, %v5705
        %vm5707 = vcmp.eq.s32.totalorder %v5702, 2
        %v5708 = vxor.u32 %v5698, 2147483648
        %v5709 = vsel %vm5707, %v5708, %v5699
        %v5710 = vsel %vm5703, %v5706, %v5709
        %v5711 = vsel %vm5700, nan, %v5710
        %v5712 = vand.u32 2147483647, %v4460
        %vm5713 = vcmp.le.f32.partialorder %v5712, 0.7853982
        %vm5714 = vcmp.lt.s32.totalorder %v4460, 0
        %v5715 = vand.u32 %v4460, 2139095040
        %v5716 = vshrl.u32 %v5715, 23
        %v5717 = vsub.s32 %v5716, 127
        %v5718 = vand.u32 2147483647, %v4460
        %v5719 = vand.u32 %v5718, 8388607
        %v5720 = vor.u32 %v5719, 8388608
        %v5721 = vsub.s32 0, %v5720
        %v5722 = vadd.s32 %v5717, 1
        %vm5723 = vcmp.gt.s32.totalorder %v5722, 0
        %v5724 = vsel %vm5723, %v5722, 0
        %v5725 = vshrl.u32 %v5724, 5
        %v5726 = vand.u32 %v5724, 31
        %v5727 = vsub.s32 32, %v5726
        %v5728 = vshrl.u32 683565275, %v5727
        %v5729 = vshll.u32 683565275, %v5726
        %v5730 = vshrl.u32 2475754826, %v5727
        %v5731 = vor.u32 %v5729, %v5730
        %v5732 = vshll.u32 2475754826, %v5726
        %v5733 = vshrl.u32 2131351028, %v5727
        %v5734 = vor.u32 %v5732, %v5733
        %v5735 = vshll.u32 2131351028, %v5726
        %v5736 = vshrl.u32 2102212464, %v5727
        %v5737 = vor.u32 %v5735, %v5736
        %v5738 = vshll.u32 2102212464, %v5726
        %v5739 = vshrl.u32 920167782, %v5727
        %v5740 = vor.u32 %v5738, %v5739
        %v5741 = vshll.u32 920167782, %v5726
        %v5742 = vshrl.u32 1326507024, %v5727
        %v5743 = vor.u32 %v5741, %v5742
        %vm5744 = vcmp.lt.s32.totalorder %v5725, 1
        %vm5745 = vcmp.lt.s32.totalorder %v5725, 2
        %vm5746 = vcmp.lt.s32.totalorder %v5725, 3
        %vm5747 = vcmp.lt.s32.totalorder %v5725, 4
        %v5748 = vsel %vm5744, %v5728, %v5731
        %v5749 = vsel %vm5747, %v5737, 2102212464
        %v5750 = vsel %vm5746, %v5734, %v5749
        %v5751 = vsel %vm5745, %v5748, %v5750
        %v5752 = vsel %vm5744, %v5731, %v5734
        %v5753 = vsel %vm5747, %v5740, 920167782
        %v5754 = vsel %vm5746, %v5737, %v5753
        %v5755 = vsel %vm5745, %v5752, %v5754
        %v5756 = vsel %vm5744, %v5734, %v5737
        %v5757 = vsel %vm5747, %v5743, 1326507024
        %v5758 = vsel %vm5746, %v5740, %v5757
        %v5759 = vsel %vm5745, %v5756, %v5758
        %v5760 = vshll.u32 %v5720, 8
        %v5761 = vmul.u32.u64.compose %v5760, %v5759
        %v5762 = vextract.low.u32 %v5761
        %v5763 = vextract.high.u32 %v5761
        %v5764 = vmul.u32.u64.compose %v5760, %v5755
        %v5765 = vextract.low.u32 %v5764
        %v5766 = vextract.high.u32 %v5764
        %v5767 = vmul.u32 %v5760, %v5751
        %v5768 = vadd.s32 %v5763, %v5765
        %vm5769 = vc.u32 %v5763, %v5765
        %v5770 = vadd.s32 %v5766, 1
        %v5771 = vsel %vm5769, %v5770, %v5766
        %v5772 = vadd.s32 %v5767, %v5771
        %v5773 = vadd.s32 %v5772, 536870912
        %v5774 = vshrl.u32 %v5773, 30
        %v5775 = vshll.u32 %v5774, 30
        %v5776 = vsub.s32 %v5772, %v5775
        %vm5777 = vcmp.lt.s32.totalorder %v5776, 0
        %v5778 = vsub.s32 0, %v5776
        %v5779 = vsel %vm5777, %v5778, %v5776
        %v5780 = vclz %v5779
        %v5781 = vsub.s32 %v5780, 2
        %vm5782 = vcmp.gt.s32.totalorder 0, %v5781
        %v5783 = vsel %vm5782, 0, %v5781
        %v5784 = vsub.s32 32, %v5783
        %v5785 = vshll.u32 %v5776, %v5783
        %v5786 = vshrl.u32 %v5768, %v5784
        %v5787 = vor.u32 %v5785, %v5786
        %v5788 = vsub.s32 4294967266, %v5783
        %v5789 = vadd.s32 %v5788, 127
        %v5790 = vshll.u32 %v5789, 23
        %v5791 = vor.u32 4788187, %v5790
        %v5792 = vand.u32 2147483647, %v5791
        %v5794 = vcvt.s32.f32 %v5787
        %v5795 = vmul.f32 %v5794, %v5792
        %v5796 = vxor.u32 %v5795, 2147483648
        %v5797 = vsel %vm5714, %v5796, %v5795
        %v5798 = vsub.s32 4, %v5774
        %v5799 = vsel %vm5714, %v5798, %v5774
        %v5800 = vsel %vm5713, %v4460, %v5797
        %v5801 = vsel %vm5713, 0, %v5799
        %v5802 = vcosq.f32.pop %v5800
        %v5803 = vsinq.f32.pop %v5800
        %vm5804 = vweird.f32 %v4460
        %v5805 = vadd.s32 %v5801, 3
        %v5806 = vand.u32 %v5805, 3
        %vm5807 = vcmp.lt.s32.totalorder %v5806, 2
        %vm5808 = vcmp.eq.s32.totalorder %v5806, 0
        %v5809 = vxor.u32 %v5803, 2147483648
        %v5810 = vsel %vm5808, %v5802, %v5809
        %vm5811 = vcmp.eq.s32.totalorder %v5806, 2
        %v5812 = vxor.u32 %v5802, 2147483648
        %v5813 = vsel %vm5811, %v5812, %v5803
        %v5814 = vsel %vm5807, %v5810, %v5813
        %v5815 = vsel %vm5804, nan, %v5814
        %v5816 = vand.u32 2147483647, %v4461
        %vm5817 = vcmp.le.f32.partialorder %v5816, 0.7853982
        %vm5818 = vcmp.lt.s32.totalorder %v4461, 0
        %v5819 = vand.u32 %v4461, 2139095040
        %v5820 = vshrl.u32 %v5819, 23
        %v5821 = vsub.s32 %v5820, 127
        %v5822 = vand.u32 2147483647, %v4461
        %v5823 = vand.u32 %v5822, 8388607
        %v5824 = vor.u32 %v5823, 8388608
        %v5825 = vsub.s32 0, %v5824
        %v5826 = vadd.s32 %v5821, 1
        %vm5827 = vcmp.gt.s32.totalorder %v5826, 0
        %v5828 = vsel %vm5827, %v5826, 0
        %v5829 = vshrl.u32 %v5828, 5
        %v5830 = vand.u32 %v5828, 31
        %v5831 = vsub.s32 32, %v5830
        %v5832 = vshrl.u32 683565275, %v5831
        %v5833 = vshll.u32 683565275, %v5830
        %v5834 = vshrl.u32 2475754826, %v5831
        %v5835 = vor.u32 %v5833, %v5834
        %v5836 = vshll.u32 2475754826, %v5830
        %v5837 = vshrl.u32 2131351028, %v5831
        %v5838 = vor.u32 %v5836, %v5837
        %v5839 = vshll.u32 2131351028, %v5830
        %v5840 = vshrl.u32 2102212464, %v5831
        %v5841 = vor.u32 %v5839, %v5840
        %v5842 = vshll.u32 2102212464, %v5830
        %v5843 = vshrl.u32 920167782, %v5831
        %v5844 = vor.u32 %v5842, %v5843
        %v5845 = vshll.u32 920167782, %v5830
        %v5846 = vshrl.u32 1326507024, %v5831
        %v5847 = vor.u32 %v5845, %v5846
        %vm5848 = vcmp.lt.s32.totalorder %v5829, 1
        %vm5849 = vcmp.lt.s32.totalorder %v5829, 2
        %vm5850 = vcmp.lt.s32.totalorder %v5829, 3
        %vm5851 = vcmp.lt.s32.totalorder %v5829, 4
        %v5852 = vsel %vm5848, %v5832, %v5835
        %v5853 = vsel %vm5851, %v5841, 2102212464
        %v5854 = vsel %vm5850, %v5838, %v5853
        %v5855 = vsel %vm5849, %v5852, %v5854
        %v5856 = vsel %vm5848, %v5835, %v5838
        %v5857 = vsel %vm5851, %v5844, 920167782
        %v5858 = vsel %vm5850, %v5841, %v5857
        %v5859 = vsel %vm5849, %v5856, %v5858
        %v5860 = vsel %vm5848, %v5838, %v5841
        %v5861 = vsel %vm5851, %v5847, 1326507024
        %v5862 = vsel %vm5850, %v5844, %v5861
        %v5863 = vsel %vm5849, %v5860, %v5862
        %v5864 = vshll.u32 %v5824, 8
        %v5865 = vmul.u32.u64.compose %v5864, %v5863
        %v5866 = vextract.low.u32 %v5865
        %v5867 = vextract.high.u32 %v5865
        %v5868 = vmul.u32.u64.compose %v5864, %v5859
        %v5869 = vextract.low.u32 %v5868
        %v5870 = vextract.high.u32 %v5868
        %v5871 = vmul.u32 %v5864, %v5855
        %v5872 = vadd.s32 %v5867, %v5869
        %vm5873 = vc.u32 %v5867, %v5869
        %v5874 = vadd.s32 %v5870, 1
        %v5875 = vsel %vm5873, %v5874, %v5870
        %v5876 = vadd.s32 %v5871, %v5875
        %v5877 = vadd.s32 %v5876, 536870912
        %v5878 = vshrl.u32 %v5877, 30
        %v5879 = vshll.u32 %v5878, 30
        %v5880 = vsub.s32 %v5876, %v5879
        %vm5881 = vcmp.lt.s32.totalorder %v5880, 0
        %v5882 = vsub.s32 0, %v5880
        %v5883 = vsel %vm5881, %v5882, %v5880
        %v5884 = vclz %v5883
        %v5885 = vsub.s32 %v5884, 2
        %vm5886 = vcmp.gt.s32.totalorder 0, %v5885
        %v5887 = vsel %vm5886, 0, %v5885
        %v5888 = vsub.s32 32, %v5887
        %v5889 = vshll.u32 %v5880, %v5887
        %v5890 = vshrl.u32 %v5872, %v5888
        %v5891 = vor.u32 %v5889, %v5890
        %v5892 = vsub.s32 4294967266, %v5887
        %v5893 = vadd.s32 %v5892, 127
        %v5894 = vshll.u32 %v5893, 23
        %v5895 = vor.u32 4788187, %v5894
        %v5896 = vand.u32 2147483647, %v5895
        %v5898 = vcvt.s32.f32 %v5891
        %v5899 = vmul.f32 %v5898, %v5896
        %v5900 = vxor.u32 %v5899, 2147483648
        %v5901 = vsel %vm5818, %v5900, %v5899
        %v5902 = vsub.s32 4, %v5878
        %v5903 = vsel %vm5818, %v5902, %v5878
        %v5904 = vsel %vm5817, %v4461, %v5901
        %v5905 = vsel %vm5817, 0, %v5903
        %v5906 = vcosq.f32.pop %v5904
        %v5907 = vsinq.f32.pop %v5904
        %vm5908 = vweird.f32 %v4461
        %v5909 = vadd.s32 %v5905, 3
        %v5910 = vand.u32 %v5909, 3
        %vm5911 = vcmp.lt.s32.totalorder %v5910, 2
        %vm5912 = vcmp.eq.s32.totalorder %v5910, 0
        %v5913 = vxor.u32 %v5907, 2147483648
        %v5914 = vsel %vm5912, %v5906, %v5913
        %vm5915 = vcmp.eq.s32.totalorder %v5910, 2
        %v5916 = vxor.u32 %v5906, 2147483648
        %v5917 = vsel %vm5915, %v5916, %v5907
        %v5918 = vsel %vm5911, %v5914, %v5917
        %v5919 = vsel %vm5908, nan, %v5918
        %v5920 = vand.u32 2147483647, %v4462
        %vm5921 = vcmp.le.f32.partialorder %v5920, 0.7853982
        %vm5922 = vcmp.lt.s32.totalorder %v4462, 0
        %v5923 = vand.u32 %v4462, 2139095040
        %v5924 = vshrl.u32 %v5923, 23
        %v5925 = vsub.s32 %v5924, 127
        %v5926 = vand.u32 2147483647, %v4462
        %v5927 = vand.u32 %v5926, 8388607
        %v5928 = vor.u32 %v5927, 8388608
        %v5929 = vsub.s32 0, %v5928
        %v5930 = vadd.s32 %v5925, 1
        %vm5931 = vcmp.gt.s32.totalorder %v5930, 0
        %v5932 = vsel %vm5931, %v5930, 0
        %v5933 = vshrl.u32 %v5932, 5
        %v5934 = vand.u32 %v5932, 31
        %v5935 = vsub.s32 32, %v5934
        %v5936 = vshrl.u32 683565275, %v5935
        %v5937 = vshll.u32 683565275, %v5934
        %v5938 = vshrl.u32 2475754826, %v5935
        %v5939 = vor.u32 %v5937, %v5938
        %v5940 = vshll.u32 2475754826, %v5934
        %v5941 = vshrl.u32 2131351028, %v5935
        %v5942 = vor.u32 %v5940, %v5941
        %v5943 = vshll.u32 2131351028, %v5934
        %v5944 = vshrl.u32 2102212464, %v5935
        %v5945 = vor.u32 %v5943, %v5944
        %v5946 = vshll.u32 2102212464, %v5934
        %v5947 = vshrl.u32 920167782, %v5935
        %v5948 = vor.u32 %v5946, %v5947
        %v5949 = vshll.u32 920167782, %v5934
        %v5950 = vshrl.u32 1326507024, %v5935
        %v5951 = vor.u32 %v5949, %v5950
        %vm5952 = vcmp.lt.s32.totalorder %v5933, 1
        %vm5953 = vcmp.lt.s32.totalorder %v5933, 2
        %vm5954 = vcmp.lt.s32.totalorder %v5933, 3
        %vm5955 = vcmp.lt.s32.totalorder %v5933, 4
        %v5956 = vsel %vm5952, %v5936, %v5939
        %v5957 = vsel %vm5955, %v5945, 2102212464
        %v5958 = vsel %vm5954, %v5942, %v5957
        %v5959 = vsel %vm5953, %v5956, %v5958
        %v5960 = vsel %vm5952, %v5939, %v5942
        %v5961 = vsel %vm5955, %v5948, 920167782
        %v5962 = vsel %vm5954, %v5945, %v5961
        %v5963 = vsel %vm5953, %v5960, %v5962
        %v5964 = vsel %vm5952, %v5942, %v5945
        %v5965 = vsel %vm5955, %v5951, 1326507024
        %v5966 = vsel %vm5954, %v5948, %v5965
        %v5967 = vsel %vm5953, %v5964, %v5966
        %v5968 = vshll.u32 %v5928, 8
        %v5969 = vmul.u32.u64.compose %v5968, %v5967
        %v5970 = vextract.low.u32 %v5969
        %v5971 = vextract.high.u32 %v5969
        %v5972 = vmul.u32.u64.compose %v5968, %v5963
        %v5973 = vextract.low.u32 %v5972
        %v5974 = vextract.high.u32 %v5972
        %v5975 = vmul.u32 %v5968, %v5959
        %v5976 = vadd.s32 %v5971, %v5973
        %vm5977 = vc.u32 %v5971, %v5973
        %v5978 = vadd.s32 %v5974, 1
        %v5979 = vsel %vm5977, %v5978, %v5974
        %v5980 = vadd.s32 %v5975, %v5979
        %v5981 = vadd.s32 %v5980, 536870912
        %v5982 = vshrl.u32 %v5981, 30
        %v5983 = vshll.u32 %v5982, 30
        %v5984 = vsub.s32 %v5980, %v5983
        %vm5985 = vcmp.lt.s32.totalorder %v5984, 0
        %v5986 = vsub.s32 0, %v5984
        %v5987 = vsel %vm5985, %v5986, %v5984
        %v5988 = vclz %v5987
        %v5989 = vsub.s32 %v5988, 2
        %vm5990 = vcmp.gt.s32.totalorder 0, %v5989
        %v5991 = vsel %vm5990, 0, %v5989
        %v5992 = vsub.s32 32, %v5991
        %v5993 = vshll.u32 %v5984, %v5991
        %v5994 = vshrl.u32 %v5976, %v5992
        %v5995 = vor.u32 %v5993, %v5994
        %v5996 = vsub.s32 4294967266, %v5991
        %v5997 = vadd.s32 %v5996, 127
        %v5998 = vshll.u32 %v5997, 23
        %v5999 = vor.u32 4788187, %v5998
        %v6000 = vand.u32 2147483647, %v5999
        %v6002 = vcvt.s32.f32 %v5995
        %v6003 = vmul.f32 %v6002, %v6000
        %v6004 = vxor.u32 %v6003, 2147483648
        %v6005 = vsel %vm5922, %v6004, %v6003
        %v6006 = vsub.s32 4, %v5982
        %v6007 = vsel %vm5922, %v6006, %v5982
        %v6008 = vsel %vm5921, %v4462, %v6005
        %v6009 = vsel %vm5921, 0, %v6007
        %v6010 = vcosq.f32.pop %v6008
        %v6011 = vsinq.f32.pop %v6008
        %vm6012 = vweird.f32 %v4462
        %v6013 = vadd.s32 %v6009, 3
        %v6014 = vand.u32 %v6013, 3
        %vm6015 = vcmp.lt.s32.totalorder %v6014, 2
        %vm6016 = vcmp.eq.s32.totalorder %v6014, 0
        %v6017 = vxor.u32 %v6011, 2147483648
        %v6018 = vsel %vm6016, %v6010, %v6017
        %vm6019 = vcmp.eq.s32.totalorder %v6014, 2
        %v6020 = vxor.u32 %v6010, 2147483648
        %v6021 = vsel %vm6019, %v6020, %v6011
        %v6022 = vsel %vm6015, %v6018, %v6021
        %v6023 = vsel %vm6012, nan, %v6022
        %v6024 = vand.u32 2147483647, %v4463
        %vm6025 = vcmp.le.f32.partialorder %v6024, 0.7853982
        %vm6026 = vcmp.lt.s32.totalorder %v4463, 0
        %v6027 = vand.u32 %v4463, 2139095040
        %v6028 = vshrl.u32 %v6027, 23
        %v6029 = vsub.s32 %v6028, 127
        %v6030 = vand.u32 2147483647, %v4463
        %v6031 = vand.u32 %v6030, 8388607
        %v6032 = vor.u32 %v6031, 8388608
        %v6033 = vsub.s32 0, %v6032
        %v6034 = vadd.s32 %v6029, 1
        %vm6035 = vcmp.gt.s32.totalorder %v6034, 0
        %v6036 = vsel %vm6035, %v6034, 0
        %v6037 = vshrl.u32 %v6036, 5
        %v6038 = vand.u32 %v6036, 31
        %v6039 = vsub.s32 32, %v6038
        %v6040 = vshrl.u32 683565275, %v6039
        %v6041 = vshll.u32 683565275, %v6038
        %v6042 = vshrl.u32 2475754826, %v6039
        %v6043 = vor.u32 %v6041, %v6042
        %v6044 = vshll.u32 2475754826, %v6038
        %v6045 = vshrl.u32 2131351028, %v6039
        %v6046 = vor.u32 %v6044, %v6045
        %v6047 = vshll.u32 2131351028, %v6038
        %v6048 = vshrl.u32 2102212464, %v6039
        %v6049 = vor.u32 %v6047, %v6048
        %v6050 = vshll.u32 2102212464, %v6038
        %v6051 = vshrl.u32 920167782, %v6039
        %v6052 = vor.u32 %v6050, %v6051
        %v6053 = vshll.u32 920167782, %v6038
        %v6054 = vshrl.u32 1326507024, %v6039
        %v6055 = vor.u32 %v6053, %v6054
        %vm6056 = vcmp.lt.s32.totalorder %v6037, 1
        %vm6057 = vcmp.lt.s32.totalorder %v6037, 2
        %vm6058 = vcmp.lt.s32.totalorder %v6037, 3
        %vm6059 = vcmp.lt.s32.totalorder %v6037, 4
        %v6060 = vsel %vm6056, %v6040, %v6043
        %v6061 = vsel %vm6059, %v6049, 2102212464
        %v6062 = vsel %vm6058, %v6046, %v6061
        %v6063 = vsel %vm6057, %v6060, %v6062
        %v6064 = vsel %vm6056, %v6043, %v6046
        %v6065 = vsel %vm6059, %v6052, 920167782
        %v6066 = vsel %vm6058, %v6049, %v6065
        %v6067 = vsel %vm6057, %v6064, %v6066
        %v6068 = vsel %vm6056, %v6046, %v6049
        %v6069 = vsel %vm6059, %v6055, 1326507024
        %v6070 = vsel %vm6058, %v6052, %v6069
        %v6071 = vsel %vm6057, %v6068, %v6070
        %v6072 = vshll.u32 %v6032, 8
        %v6073 = vmul.u32.u64.compose %v6072, %v6071
        %v6074 = vextract.low.u32 %v6073
        %v6075 = vextract.high.u32 %v6073
        %v6076 = vmul.u32.u64.compose %v6072, %v6067
        %v6077 = vextract.low.u32 %v6076
        %v6078 = vextract.high.u32 %v6076
        %v6079 = vmul.u32 %v6072, %v6063
        %v6080 = vadd.s32 %v6075, %v6077
        %vm6081 = vc.u32 %v6075, %v6077
        %v6082 = vadd.s32 %v6078, 1
        %v6083 = vsel %vm6081, %v6082, %v6078
        %v6084 = vadd.s32 %v6079, %v6083
        %v6085 = vadd.s32 %v6084, 536870912
        %v6086 = vshrl.u32 %v6085, 30
        %v6087 = vshll.u32 %v6086, 30
        %v6088 = vsub.s32 %v6084, %v6087
        %vm6089 = vcmp.lt.s32.totalorder %v6088, 0
        %v6090 = vsub.s32 0, %v6088
        %v6091 = vsel %vm6089, %v6090, %v6088
        %v6092 = vclz %v6091
        %v6093 = vsub.s32 %v6092, 2
        %vm6094 = vcmp.gt.s32.totalorder 0, %v6093
        %v6095 = vsel %vm6094, 0, %v6093
        %v6096 = vsub.s32 32, %v6095
        %v6097 = vshll.u32 %v6088, %v6095
        %v6098 = vshrl.u32 %v6080, %v6096
        %v6099 = vor.u32 %v6097, %v6098
        %v6100 = vsub.s32 4294967266, %v6095
        %v6101 = vadd.s32 %v6100, 127
        %v6102 = vshll.u32 %v6101, 23
        %v6103 = vor.u32 4788187, %v6102
        %v6104 = vand.u32 2147483647, %v6103
        %v6106 = vcvt.s32.f32 %v6099
        %v6107 = vmul.f32 %v6106, %v6104
        %v6108 = vxor.u32 %v6107, 2147483648
        %v6109 = vsel %vm6026, %v6108, %v6107
        %v6110 = vsub.s32 4, %v6086
        %v6111 = vsel %vm6026, %v6110, %v6086
        %v6112 = vsel %vm6025, %v4463, %v6109
        %v6113 = vsel %vm6025, 0, %v6111
        %v6114 = vcosq.f32.pop %v6112
        %v6115 = vsinq.f32.pop %v6112
        %vm6116 = vweird.f32 %v4463
        %v6117 = vadd.s32 %v6113, 3
        %v6118 = vand.u32 %v6117, 3
        %vm6119 = vcmp.lt.s32.totalorder %v6118, 2
        %vm6120 = vcmp.eq.s32.totalorder %v6118, 0
        %v6121 = vxor.u32 %v6115, 2147483648
        %v6122 = vsel %vm6120, %v6114, %v6121
        %vm6123 = vcmp.eq.s32.totalorder %v6118, 2
        %v6124 = vxor.u32 %v6114, 2147483648
        %v6125 = vsel %vm6123, %v6124, %v6115
        %v6126 = vsel %vm6119, %v6122, %v6125
        %v6127 = vsel %vm6116, nan, %v6126
        %6128 = vst [vmem:[%s322] sm:$0xff] %v4567
        %6129 = vst [vmem:[%s322 + $0x8] sm:$0xff] %v4671
        %6130 = vst [vmem:[%s322 + $0x10] sm:$0xff] %v4775
        %6131 = vst [vmem:[%s322 + $0x18] sm:$0xff] %v4879
        %6132 = vst [vmem:[%s322 + $0x20] sm:$0xff] %v4983
        %6133 = vst [vmem:[%s322 + $0x28] sm:$0xff] %v5087
        %6134 = vst [vmem:[%s322 + $0x30] sm:$0xff] %v5191
        %6135 = vst [vmem:[%s322 + $0x38] sm:$0xff] %v5295
        %6136 = vst [vmem:[%s322 + $0x40] sm:$0xff] %v5399
        %6137 = vst [vmem:[%s322 + $0x48] sm:$0xff] %v5503
        %6138 = vst [vmem:[%s322 + $0x50] sm:$0xff] %v5607
        %6139 = vst [vmem:[%s322 + $0x58] sm:$0xff] %v5711
        %6140 = vst [vmem:[%s322 + $0x60] sm:$0xff] %v5815
        %6141 = vst [vmem:[%s322 + $0x68] sm:$0xff] %v5919
        %6142 = vst [vmem:[%s322 + $0x70] sm:$0xff] %v6023
        %6143 = vst [vmem:[%s322 + $0x78] sm:$0xff] %v6127
        %s6144 = sand.u32 %s207, 1
        %s6145 = scalar_lea.sflag [#allocation3], %s6144
        %s6146 = sand.u32 %s207, 1
        %s6147 = smul.addr %s6146, 128
        %s6148 = scalar_lea.vmem [#allocation2], %s6147
        // Predicated region
        $region49: #{tpu_custom_call.1} parent=47 // pred_check
          %p6149 = pneg %p217
        $region50: #{tpu_custom_call.1} parent=47 // pred_check_branch
          %6151 = sbr.rel (%p6149) target = $region52
        $region51: #{tpu_custom_call.1} parent=47 // pred_region
          %s6152 = smul.u32 16, %s26
          %s6154 = ssub.s32 2048, 2048
          %6155 = vsyncadd %s6145, %s6154
          %s6156 = smul.addr %s25, 32
          %s6157 = sadd.s32 %s6152, %s6156
          %s6158 = smul.addr %s6157, 128
          %s6159 = scalar_lea.hbm %s7, %s6158
          %s6160 = sshll.u32 %s6148, 4
          %s6161 = int_to_ptr.vmem [resolvable:$true] %s6160
          %6166 = dma.vmem_to_hbm [thread:$0]  %s6161, 2048, %s6159, %s6145, 128, 128, 8
        $region52: #{tpu_custom_call.1} parent=47 // pred_fallthru
          _
      $region48: #{tpu_custom_call.1} parent=5 // pred_fallthru
        _
      %p6167 = scmp.le.s32.totalorder 2, %s16
      // Predicated region
      $region53: #{tpu_custom_call.1} parent=5 // pred_check
        %p6168 = pneg %p6167
      $region54: #{tpu_custom_call.1} parent=5 // pred_check_branch
        %6170 = sbr.rel (%p6168) target = $region56
      $region55: #{tpu_custom_call.1} parent=5 // pred_region
        %s6171 = ssub.s32 %s16, 2
        // Predicated region
        $region57: #{tpu_custom_call.1} parent=55 // pred_check
          %p6172 = pneg %p223
        $region58: #{tpu_custom_call.1} parent=55 // pred_check_branch
          %6174 = sbr.rel (%p6172) target = $region60
        $region59: #{tpu_custom_call.1} parent=55 // pred_region
          %s6175 = sand.u32 %s208, 1
          %s6176 = scalar_lea.sflag [#allocation3], %s6175
          %s6177 = sand.u32 %s208, 1
          %s6178 = smul.addr %s6177, 128
          %s6179 = scalar_lea.vmem [#allocation2], %s6178
          %6180 = dma.done %s6176, 2048
        $region60: #{tpu_custom_call.1} parent=55 // pred_fallthru
          _
      $region56: #{tpu_custom_call.1} parent=5 // pred_fallthru
        _
    $region6: #{tpu_custom_call.1} parent=1 // loop_footer
      %s20 = sadd.s32 1, %s16
    $region7: #{tpu_custom_call.1} parent=1 // loop_footer_branch
      %15 = sbr.rel target = $region3
    $region8: #{tpu_custom_call.1} parent=1 // loop_exit
      _
    %6181 = vsyncpa [#allocation3], 1
    %s6182 = scalar_lea.sflag [#allocation3], 1
    %6183 = vsyncpa %s6182, 1

</llo_original>
